<compile_context>
chip_gen: v7x
topology: tpu7x:2x2x1
jax: 0.10.0
libtpu: 0.0.40
codegen_flags: <defaults>
</compile_context>

<pallas_src>
import functools

import jax
import jax.numpy as jnp
from jax.experimental import pallas as pl
from jax.experimental.pallas import tpu as pltpu


_VMEM_LIMIT = 48 * 1024 * 1024  # below v7x 64 MiB physical, above v5e 16 MiB default


# ----------------------------- helpers --------------------------------------

def _round_up(x, m):
    return (x + m - 1) // m * m


def _choose_tm(m):
    # Bigger tiles for the large-M early layers, full (aligned) tile otherwise.
    if m >= 1024:
        return 512
    if m >= 512:
        return 256
    return _round_up(m, 16)  # multiple of 16 -> valid bf16 sublane block


def _choose_tn(np_):
    return 256 if np_ % 256 == 0 else 128


def _apply_act(y, act):
    if act == "leaky":
        return jnp.where(y > 0, y, 0.2 * y)
    if act == "sigmoid":
        # numerically stable sigmoid (no overflow of exp for large |y|)
        z = jnp.exp(-jnp.abs(y))
        return jnp.where(y >= 0, 1.0 / (1.0 + z), z / (1.0 + z))
    return y


# ----------------------------- Pallas kernels ------------------------------

def _matmul_act_kernel(a_ref, b_ref, o_ref, *, act):
    # bf16 operands, f32 MXU accumulator, activation fused in the epilogue.
    acc = jnp.dot(a_ref[...], b_ref[...], preferred_element_type=jnp.float32)
    o_ref[...] = _apply_act(acc, act).astype(o_ref.dtype)


def _matmul_stats_kernel(a_ref, b_ref, o_ref, sum_ref, ssq_ref):
    # Conv output (bf16) plus per-tile partial sum / sum-of-squares for BN,
    # both reductions taken from the exact f32 accumulator.
    acc = jnp.dot(a_ref[...], b_ref[...], preferred_element_type=jnp.float32)
    o_ref[...] = acc.astype(o_ref.dtype)
    s = jnp.sum(acc, axis=0, keepdims=True)
    q = jnp.sum(acc * acc, axis=0, keepdims=True)
    # broadcast over the 8-sublane block (host divides by 8 afterwards) so the
    # stats output block stays (8, tn)-aligned.
    sum_ref[...] = jnp.broadcast_to(s, sum_ref.shape)
    ssq_ref[...] = jnp.broadcast_to(q, ssq_ref.shape)


def _affine_act_kernel(x_ref, s_ref, b_ref, o_ref, *, act):
    # y = act(x * scale + shift); scale/shift broadcast over rows. f32 math.
    y = x_ref[...].astype(jnp.float32) * s_ref[...] + b_ref[...]
    o_ref[...] = _apply_act(y, act).astype(o_ref.dtype)


# ------------------------------ wrappers ------------------------------------

def _prep_operands(a, b):
    """Pad M and N to tile multiples, cast operands to bf16. K left unpadded
    (it is the full array extent of both A's lane dim and B's sublane dim)."""
    m, k = a.shape
    _, n = b.shape
    tm = _choose_tm(m)
    mp = _round_up(m, tm)
    np_ = _round_up(n, 128)
    tn = _choose_tn(np_)
    a_p = jnp.pad(a.astype(jnp.bfloat16), ((0, mp - m), (0, 0)))
    b_p = jnp.pad(b.astype(jnp.bfloat16), ((0, 0), (0, np_ - n)))
    return a_p, b_p, m, k, n, mp, np_, tm, tn


def pallas_matmul_act(a, b, act, out_dtype):
    """Fused matmul + activation (no-BN layers). Returns padded [Mp, Np], M."""
    a_p, b_p, m, k, n, mp, np_, tm, tn = _prep_operands(a, b)
    out_bytes = jnp.dtype(out_dtype).itemsize
    cost = pl.CostEstimate(
        flops=2 * m * k * n,
        transcendentals=(m * n if act == "sigmoid" else 0),
        bytes_accessed=a_p.size * 2 + b_p.size * 2 + mp * np_ * out_bytes)
    out = pl.pallas_call(
        functools.partial(_matmul_act_kernel, act=act),
        out_shape=jax.ShapeDtypeStruct((mp, np_), out_dtype),
        grid=(mp // tm, np_ // tn),
        in_specs=[
            pl.BlockSpec((tm, k), lambda i, j: (i, 0)),
            pl.BlockSpec((k, tn), lambda i, j: (0, j)),
        ],
        out_specs=pl.BlockSpec((tm, tn), lambda i, j: (i, j)),
        compiler_params=pltpu.CompilerParams(
            dimension_semantics=("parallel", "parallel"),
            vmem_limit_bytes=_VMEM_LIMIT),
        cost_estimate=cost,
    )(a_p, b_p)
    return out, m


def pallas_matmul_stats(a, b):
    """Matmul that also emits per-M-tile partial BN statistics (f32)."""
    a_p, b_p, m, k, n, mp, np_, tm, tn = _prep_operands(a, b)
    n_mt = mp // tm
    cost = pl.CostEstimate(
        flops=2 * m * k * n + 2 * m * n,
        transcendentals=0,
        bytes_accessed=(a_p.size * 2 + b_p.size * 2 + mp * np_ * 2
                        + 2 * n_mt * 8 * np_ * 4))
    conv_p, sums, ssqs = pl.pallas_call(
        _matmul_stats_kernel,
        out_shape=(
            jax.ShapeDtypeStruct((mp, np_), jnp.bfloat16),
            jax.ShapeDtypeStruct((n_mt * 8, np_), jnp.float32),
            jax.ShapeDtypeStruct((n_mt * 8, np_), jnp.float32),
        ),
        grid=(n_mt, np_ // tn),
        in_specs=[
            pl.BlockSpec((tm, k), lambda i, j: (i, 0)),
            pl.BlockSpec((k, tn), lambda i, j: (0, j)),
        ],
        out_specs=(
            pl.BlockSpec((tm, tn), lambda i, j: (i, j)),
            pl.BlockSpec((8, tn), lambda i, j: (i, j)),
            pl.BlockSpec((8, tn), lambda i, j: (i, j)),
        ),
        compiler_params=pltpu.CompilerParams(
            dimension_semantics=("parallel", "parallel"),
            vmem_limit_bytes=_VMEM_LIMIT),
        cost_estimate=cost,
    )(a_p, b_p)
    return conv_p, sums, ssqs, m, tm


def pallas_affine_act(x_p, scale, shift, act, tm):
    """x_p: padded [Mp, Np] bf16; scale/shift: [Cout] f32. y = act(x*s + b)."""
    mp, np_ = x_p.shape
    cout = scale.shape[0]
    s_p = jnp.pad(scale.astype(jnp.float32).reshape(1, -1),
                  ((0, 0), (0, np_ - cout)))
    b_p = jnp.pad(shift.astype(jnp.float32).reshape(1, -1),
                  ((0, 0), (0, np_ - cout)))
    return pl.pallas_call(
        functools.partial(_affine_act_kernel, act=act),
        out_shape=jax.ShapeDtypeStruct((mp, np_), jnp.bfloat16),
        grid=(mp // tm,),
        in_specs=[
            pl.BlockSpec((tm, np_), lambda i: (i, 0)),
            pl.BlockSpec((1, np_), lambda i: (0, 0)),
            pl.BlockSpec((1, np_), lambda i: (0, 0)),
        ],
        out_specs=pl.BlockSpec((tm, np_), lambda i: (i, 0)),
        compiler_params=pltpu.CompilerParams(
            dimension_semantics=("parallel",),
            vmem_limit_bytes=_VMEM_LIMIT),
    )(x_p, s_p, b_p)


# ------------------------------ conv blocks ----------------------------------

def _im2col(x, kh, kw, stride, pad):
    """x: [N, H, W, C] -> patches [N*OH*OW, KH*KW*C], plus (OH, OW)."""
    # TODO(synk): im2col still materialized in XLA; an in-kernel haloed-tile
    # patch build (manual DMA) would cut matmul-input HBM reads ~4x more.
    if pad:
        x = jnp.pad(x, ((0, 0), (pad, pad), (pad, pad), (0, 0)))
    n, h, w, c = x.shape
    oh = (h - kh) // stride + 1
    ow = (w - kw) // stride + 1
    cols = []
    for i in range(kh):
        for j in range(kw):
            cols.append(x[:, i:i + stride * oh:stride,
                          j:j + stride * ow:stride, :])
    # Channel-axis concat -> flattened index (i*kw + j)*C + c, which matches
    # HWIO weight flattening; avoids a stack+reshape transpose.
    p = jnp.concatenate(cols, axis=-1)
    return p.reshape(n * oh * ow, kh * kw * c), oh, ow


def conv_block(x_nhwc, w_hwio, stride, pad, *, bn_params, act, out_dtype):
    n = x_nhwc.shape[0]
    kh, kw, cin, cout = w_hwio.shape
    patches, oh, ow = _im2col(x_nhwc, kh, kw, stride, pad)
    w_mat = w_hwio.reshape(kh * kw * cin, cout)

    if bn_params is None:
        # Conv + activation fused into a single Pallas call.
        y_p, m = pallas_matmul_act(patches, w_mat, act, out_dtype)
    else:
        # Conv + in-kernel partial BN stats; fold stats, then one affine+act pass.
        conv_p, sums, ssqs, m, tm = pallas_matmul_stats(patches, w_mat)
        gamma, beta = bn_params
        # stats were broadcast across 8 sublanes inside the kernel -> /8.
        total = jnp.sum(sums[:, :cout], axis=0) / 8.0
        total2 = jnp.sum(ssqs[:, :cout], axis=0) / 8.0
        mean = total / m
        var = jnp.maximum(total2 / m - mean * mean, 0.0)  # clamp: no NaN sqrt
        inv = gamma * jax.lax.rsqrt(var + 1e-5)
        scale = inv
        shift = beta - mean * inv
        y_p = pallas_affine_act(conv_p, scale, shift, act, tm)

    return y_p[:m, :cout].reshape(n, oh, ow, cout)


# ------------------------------ model ----------------------------------------

def init_params(key, nc, ndf):
    ks = jax.random.split(key, 5)
    std = 0.05
    w1 = std * jax.random.normal(ks[0], (4, 4, nc, ndf), jnp.float32)
    w2 = std * jax.random.normal(ks[1], (4, 4, ndf, ndf * 2), jnp.float32)
    w3 = std * jax.random.normal(ks[2], (4, 4, ndf * 2, ndf * 4), jnp.float32)
    w4 = std * jax.random.normal(ks[3], (4, 4, ndf * 4, ndf * 8), jnp.float32)
    w5 = std * jax.random.normal(ks[4], (4, 4, ndf * 8, 1), jnp.float32)
    # BatchNorm2d default init: weight=1, bias=0
    g2, b2 = jnp.ones((ndf * 2,), jnp.float32), jnp.zeros((ndf * 2,), jnp.float32)
    g3, b3 = jnp.ones((ndf * 4,), jnp.float32), jnp.zeros((ndf * 4,), jnp.float32)
    g4, b4 = jnp.ones((ndf * 8,), jnp.float32), jnp.zeros((ndf * 8,), jnp.float32)
    return dict(w1=w1, w2=w2, g2=g2, b2=b2, w3=w3, g3=g3, b3=b3,
                w4=w4, g4=g4, b4=b4, w5=w5)


@jax.jit
def dcgan_d_forward(x_nchw, params):
    # Accept NCHW (PyTorch) at the boundary, transpose to NHWC inside.
    # bf16 activations throughout (matmul operands were bf16 anyway); the
    # final sigmoid layer stays f32 so the batch mean is exact.
    x = jnp.transpose(x_nchw, (0, 2, 3, 1)).astype(jnp.bfloat16)
    x = conv_block(x, params["w1"], 2, 1, bn_params=None, act="leaky",
                   out_dtype=jnp.bfloat16)
    x = conv_block(x, params["w2"], 2, 1,
                   bn_params=(params["g2"], params["b2"]), act="leaky",
                   out_dtype=jnp.bfloat16)
    x = conv_block(x, params["w3"], 2, 1,
                   bn_params=(params["g3"], params["b3"]), act="leaky",
                   out_dtype=jnp.bfloat16)
    x = conv_block(x, params["w4"], 2, 1,
                   bn_params=(params["g4"], params["b4"]), act="leaky",
                   out_dtype=jnp.bfloat16)
    x = conv_block(x, params["w5"], 1, 0, bn_params=None, act="sigmoid",
                   out_dtype=jnp.float32)
    # x: [N, 1, 1, 1]; output.mean(0).view(1)
    # TODO(synk): final 2-element batch mean kept in plain JAX (trivial glue).
    return jnp.mean(x.reshape(x.shape[0])).reshape(1)


if __name__ == "__main__":
    # Architecture-consistent shapes: 4 stride-2 convs + final 4x4 valid conv
    # require isize = 64; batch/channel counts kept small.
    batch, nc, ndf, isize = 2, 3, 8, 64
    key = jax.random.PRNGKey(0)
    k_x, k_p = jax.random.split(key)
    x = jax.random.normal(k_x, (batch, nc, isize, isize), jnp.float32)
    params = init_params(k_p, nc, ndf)

    out = dcgan_d_forward(x, params)
    out = jax.block_until_ready(out)
    assert out.shape == (1,), out.shape
    assert bool(jnp.all(jnp.isfinite(out)))
    print("KERNEL_OK")
</pallas_src>

<mosaic_0001>
module attributes {stable_mosaic.version = 11 : i64} {
  func.func @_matmul_act_kernel(%arg0: i32, %arg1: i32, %arg2: memref<512x48xbf16, #tpu.memory_space<vmem>>, %arg3: memref<48x128xbf16, #tpu.memory_space<vmem>>, %arg4: memref<512x128xbf16, #tpu.memory_space<vmem>>) attributes {dimension_semantics = [#tpu.dimension_semantics<parallel>, #tpu.dimension_semantics<parallel>], iteration_bounds = array<i64: 4, 1>, scalar_prefetch = 0 : i64, scratch_operands = 0 : i64, tpu.core_type = #tpu.core_type<tc>, window_params = [{transform_indices = @transform_0, window_bounds = array<i64: 512, 48>}, {transform_indices = @transform_1, window_bounds = array<i64: 48, 128>}, {transform_indices = @transform_2, window_bounds = array<i64: 512, 128>}]} {
    %c0 = arith.constant 0 : index
    %c0_0 = arith.constant 0 : index
    %0 = vector.load %arg2[%c0, %c0_0] : memref<512x48xbf16, #tpu.memory_space<vmem>>, vector<512x48xbf16>
    %c0_1 = arith.constant 0 : index
    %c0_2 = arith.constant 0 : index
    %1 = vector.load %arg3[%c0_1, %c0_2] : memref<48x128xbf16, #tpu.memory_space<vmem>>, vector<48x128xbf16>
    %cst = arith.constant dense<0.000000e+00> : vector<512x128xf32>
    %2 = tpu.matmul %0, %1, %cst {dimension_numbers = #tpu.dot_dimension_numbers<[1], [0], [0], [1], [0, 0, 1, 1], [], []>} : vector<512x48xbf16>, vector<48x128xbf16>, vector<512x128xf32> -> vector<512x128xf32>
    %cst_3 = arith.constant 0.000000e+00 : f32
    %3 = vector.broadcast %cst_3 : f32 to vector<512x128xf32>
    %4 = arith.cmpf ogt, %2, %3 : vector<512x128xf32>
    %cst_4 = arith.constant 2.000000e-01 : f32
    %5 = vector.broadcast %cst_4 : f32 to vector<512x128xf32>
    %6 = arith.mulf %5, %2 : vector<512x128xf32>
    %7 = arith.select %4, %2, %6 : vector<512x128xi1>, vector<512x128xf32>
    %8 = arith.truncf %7 : vector<512x128xf32> to vector<512x128xbf16>
    %c0_5 = arith.constant 0 : index
    %c0_6 = arith.constant 0 : index
    %9 = vector.load %arg4[%c0_5, %c0_6] : memref<512x128xbf16, #tpu.memory_space<vmem>>, vector<512x128xbf16>
    tpu.vector_store %arg4[%c0_5, %c0_6], %8 {strides = array<i32>} : memref<512x128xbf16, #tpu.memory_space<vmem>>, vector<512x128xbf16>,
    return
  }
  func.func @transform_0(%arg0: i32, %arg1: i32) -> (i32, i32) {
    %c0_i32 = arith.constant 0 : i32
    %c0_i32_0 = arith.constant 0 : i32
    return %arg0, %c0_i32 : i32, i32
  }
  func.func @transform_1(%arg0: i32, %arg1: i32) -> (i32, i32) {
    %c0_i32 = arith.constant 0 : i32
    %c0_i32_0 = arith.constant 0 : i32
    return %c0_i32, %arg1 : i32, i32
  }
  func.func @transform_2(%arg0: i32, %arg1: i32) -> (i32, i32) {
    %c0_i32 = arith.constant 0 : i32
    return %arg0, %arg1 : i32, i32
  }
}

module attributes {stable_mosaic.version = 11 : i64} {
  func.func @_matmul_stats_kernel(%arg0: i32, %arg1: i32, %arg2: memref<256x128xbf16, #tpu.memory_space<vmem>>, %arg3: memref<128x128xbf16, #tpu.memory_space<vmem>>, %arg4: memref<256x128xbf16, #tpu.memory_space<vmem>>, %arg5: memref<8x128xf32, #tpu.memory_space<vmem>>, %arg6: memref<8x128xf32, #tpu.memory_space<vmem>>) attributes {dimension_semantics = [#tpu.dimension_semantics<parallel>, #tpu.dimension_semantics<parallel>], iteration_bounds = array<i64: 2, 1>, scalar_prefetch = 0 : i64, scratch_operands = 0 : i64, tpu.core_type = #tpu.core_type<tc>, window_params = [{transform_indices = @transform_0, window_bounds = array<i64: 256, 128>}, {transform_indices = @transform_1, window_bounds = array<i64: 128, 128>}, {transform_indices = @transform_2, window_bounds = array<i64: 256, 128>}, {transform_indices = @transform_3, window_bounds = array<i64: 8, 128>}, {transform_indices = @transform_4, window_bounds = array<i64: 8, 128>}]} {
    %c0 = arith.constant 0 : index
    %c0_0 = arith.constant 0 : index
    %0 = vector.load %arg2[%c0, %c0_0] : memref<256x128xbf16, #tpu.memory_space<vmem>>, vector<256x128xbf16>
    %c0_1 = arith.constant 0 : index
    %c0_2 = arith.constant 0 : index
    %1 = vector.load %arg3[%c0_1, %c0_2] : memref<128x128xbf16, #tpu.memory_space<vmem>>, vector<128x128xbf16>
    %cst = arith.constant dense<0.000000e+00> : vector<256x128xf32>
    %2 = tpu.matmul %0, %1, %cst {dimension_numbers = #tpu.dot_dimension_numbers<[1], [0], [0], [1], [0, 0, 1, 1], [], []>} : vector<256x128xbf16>, vector<128x128xbf16>, vector<256x128xf32> -> vector<256x128xf32>
    %3 = arith.truncf %2 : vector<256x128xf32> to vector<256x128xbf16>
    %c0_3 = arith.constant 0 : index
    %c0_4 = arith.constant 0 : index
    %4 = vector.load %arg4[%c0_3, %c0_4] : memref<256x128xbf16, #tpu.memory_space<vmem>>, vector<256x128xbf16>
    tpu.vector_store %arg4[%c0_3, %c0_4], %3 {strides = array<i32>} : memref<256x128xbf16, #tpu.memory_space<vmem>>, vector<256x128xbf16>,
    %cst_5 = arith.constant dense<0.000000e+00> : vector<128xf32>
    %5 = vector.multi_reduction <add>, %2, %cst_5 [0] : vector<256x128xf32> to vector<128xf32>
    %6 = vector.shape_cast %5 : vector<128xf32> to vector<1x128xf32>
    %7 = arith.mulf %2, %2 : vector<256x128xf32>
    %cst_6 = arith.constant dense<0.000000e+00> : vector<128xf32>
    %8 = vector.multi_reduction <add>, %7, %cst_6 [0] : vector<256x128xf32> to vector<128xf32>
    %9 = vector.shape_cast %8 : vector<128xf32> to vector<1x128xf32>
    %10 = vector.shape_cast %6 : vector<1x128xf32> to vector<1x128xf32>
    %11 = vector.broadcast %10 : vector<1x128xf32> to vector<8x128xf32>
    %c0_7 = arith.constant 0 : index
    %c0_8 = arith.constant 0 : index
    %12 = vector.load %arg5[%c0_7, %c0_8] : memref<8x128xf32, #tpu.memory_space<vmem>>, vector<8x128xf32>
    tpu.vector_store %arg5[%c0_7, %c0_8], %11 {strides = array<i32>} : memref<8x128xf32, #tpu.memory_space<vmem>>, vector<8x128xf32>,
    %13 = vector.shape_cast %9 : vector<1x128xf32> to vector<1x128xf32>
    %14 = vector.broadcast %13 : vector<1x128xf32> to vector<8x128xf32>
    %c0_9 = arith.constant 0 : index
    %c0_10 = arith.constant 0 : index
    %15 = vector.load %arg6[%c0_9, %c0_10] : memref<8x128xf32, #tpu.memory_space<vmem>>, vector<8x128xf32>
    tpu.vector_store %arg6[%c0_9, %c0_10], %14 {strides = array<i32>} : memref<8x128xf32, #tpu.memory_space<vmem>>, vector<8x128xf32>,
    return
  }
  func.func @transform_0(%arg0: i32, %arg1: i32) -> (i32, i32) {
    %c0_i32 = arith.constant 0 : i32
    %c0_i32_0 = arith.constant 0 : i32
    return %arg0, %c0_i32 : i32, i32
  }
  func.func @transform_1(%arg0: i32, %arg1: i32) -> (i32, i32) {
    %c0_i32 = arith.constant 0 : i32
    %c0_i32_0 = arith.constant 0 : i32
    return %c0_i32, %arg1 : i32, i32
  }
  func.func @transform_2(%arg0: i32, %arg1: i32) -> (i32, i32) {
    %c0_i32 = arith.constant 0 : i32
    return %arg0, %arg1 : i32, i32
  }
  func.func @transform_3(%arg0: i32, %arg1: i32) -> (i32, i32) {
    %c0_i32 = arith.constant 0 : i32
    return %arg0, %arg1 : i32, i32
  }
  func.func @transform_4(%arg0: i32, %arg1: i32) -> (i32, i32) {
    %c0_i32 = arith.constant 0 : i32
    return %arg0, %arg1 : i32, i32
  }
}

module attributes {stable_mosaic.version = 11 : i64} {
  func.func @_affine_act_kernel(%arg0: i32, %arg1: memref<256x128xbf16, #tpu.memory_space<vmem>>, %arg2: memref<1x128xf32, #tpu.memory_space<vmem>>, %arg3: memref<1x128xf32, #tpu.memory_space<vmem>>, %arg4: memref<256x128xbf16, #tpu.memory_space<vmem>>) attributes {dimension_semantics = [#tpu.dimension_semantics<parallel>], iteration_bounds = array<i64: 2>, scalar_prefetch = 0 : i64, scratch_operands = 0 : i64, tpu.core_type = #tpu.core_type<tc>, window_params = [{transform_indices = @transform_0, window_bounds = array<i64: 256, 128>}, {pipeline_mode = #tpu.pipeline_mode<synchronous>, transform_indices = @transform_1, window_bounds = array<i64: 1, 128>}, {pipeline_mode = #tpu.pipeline_mode<synchronous>, transform_indices = @transform_2, window_bounds = array<i64: 1, 128>}, {transform_indices = @transform_3, window_bounds = array<i64: 256, 128>}]} {
    %c0 = arith.constant 0 : index
    %c0_0 = arith.constant 0 : index
    %0 = vector.load %arg1[%c0, %c0_0] : memref<256x128xbf16, #tpu.memory_space<vmem>>, vector<256x128xbf16>
    %1 = arith.extf %0 : vector<256x128xbf16> to vector<256x128xf32>
    %c0_1 = arith.constant 0 : index
    %c0_2 = arith.constant 0 : index
    %2 = vector.load %arg2[%c0_1, %c0_2] : memref<1x128xf32, #tpu.memory_space<vmem>>, vector<1x128xf32>
    %3 = vector.broadcast %2 : vector<1x128xf32> to vector<256x128xf32>
    %4 = arith.mulf %1, %3 : vector<256x128xf32>
    %c0_3 = arith.constant 0 : index
    %c0_4 = arith.constant 0 : index
    %5 = vector.load %arg3[%c0_3, %c0_4] : memref<1x128xf32, #tpu.memory_space<vmem>>, vector<1x128xf32>
    %6 = vector.broadcast %5 : vector<1x128xf32> to vector<256x128xf32>
    %7 = arith.addf %4, %6 : vector<256x128xf32>
    %cst = arith.constant 0.000000e+00 : f32
    %8 = vector.broadcast %cst : f32 to vector<256x128xf32>
    %9 = arith.cmpf ogt, %7, %8 : vector<256x128xf32>
    %cst_5 = arith.constant 2.000000e-01 : f32
    %10 = vector.broadcast %cst_5 : f32 to vector<256x128xf32>
    %11 = arith.mulf %10, %7 : vector<256x128xf32>
    %12 = arith.select %9, %7, %11 : vector<256x128xi1>, vector<256x128xf32>
    %13 = arith.truncf %12 : vector<256x128xf32> to vector<256x128xbf16>
    %c0_6 = arith.constant 0 : index
    %c0_7 = arith.constant 0 : index
    %14 = vector.load %arg4[%c0_6, %c0_7] : memref<256x128xbf16, #tpu.memory_space<vmem>>, vector<256x128xbf16>
    tpu.vector_store %arg4[%c0_6, %c0_7], %13 {strides = array<i32>} : memref<256x128xbf16, #tpu.memory_space<vmem>>, vector<256x128xbf16>,
    return
  }
  func.func @transform_0(%arg0: i32) -> (i32, i32) {
    %c0_i32 = arith.constant 0 : i32
    %c0_i32_0 = arith.constant 0 : i32
    return %arg0, %c0_i32 : i32, i32
  }
  func.func @transform_1(%arg0: i32) -> (i32, i32) {
    %c0_i32 = arith.constant 0 : i32
    %c0_i32_0 = arith.constant 0 : i32
    %c0_i32_1 = arith.constant 0 : i32
    return %c0_i32, %c0_i32_0 : i32, i32
  }
  func.func @transform_2(%arg0: i32) -> (i32, i32) {
    %c0_i32 = arith.constant 0 : i32
    %c0_i32_0 = arith.constant 0 : i32
    %c0_i32_1 = arith.constant 0 : i32
    return %c0_i32, %c0_i32_0 : i32, i32
  }
  func.func @transform_3(%arg0: i32) -> (i32, i32) {
    %c0_i32 = arith.constant 0 : i32
    %c0_i32_0 = arith.constant 0 : i32
    return %arg0, %c0_i32 : i32, i32
  }
}

module attributes {stable_mosaic.version = 11 : i64} {
  func.func @_matmul_stats_kernel(%arg0: i32, %arg1: i32, %arg2: memref<128x256xbf16, #tpu.memory_space<vmem>>, %arg3: memref<256x128xbf16, #tpu.memory_space<vmem>>, %arg4: memref<128x128xbf16, #tpu.memory_space<vmem>>, %arg5: memref<8x128xf32, #tpu.memory_space<vmem>>, %arg6: memref<8x128xf32, #tpu.memory_space<vmem>>) attributes {dimension_semantics = [#tpu.dimension_semantics<parallel>, #tpu.dimension_semantics<parallel>], iteration_bounds = array<i64: 1, 1>, scalar_prefetch = 0 : i64, scratch_operands = 0 : i64, tpu.core_type = #tpu.core_type<tc>, window_params = [{transform_indices = @transform_0, window_bounds = array<i64: 128, 256>}, {transform_indices = @transform_1, window_bounds = array<i64: 256, 128>}, {transform_indices = @transform_2, window_bounds = array<i64: 128, 128>}, {transform_indices = @transform_3, window_bounds = array<i64: 8, 128>}, {transform_indices = @transform_4, window_bounds = array<i64: 8, 128>}]} {
    %c0 = arith.constant 0 : index
    %c0_0 = arith.constant 0 : index
    %0 = vector.load %arg2[%c0, %c0_0] : memref<128x256xbf16, #tpu.memory_space<vmem>>, vector<128x256xbf16>
    %c0_1 = arith.constant 0 : index
    %c0_2 = arith.constant 0 : index
    %1 = vector.load %arg3[%c0_1, %c0_2] : memref<256x128xbf16, #tpu.memory_space<vmem>>, vector<256x128xbf16>
    %cst = arith.constant dense<0.000000e+00> : vector<128x128xf32>
    %2 = tpu.matmul %0, %1, %cst {dimension_numbers = #tpu.dot_dimension_numbers<[1], [0], [0], [1], [0, 0, 1, 1], [], []>} : vector<128x256xbf16>, vector<256x128xbf16>, vector<128x128xf32> -> vector<128x128xf32>
    %3 = arith.truncf %2 : vector<128x128xf32> to vector<128x128xbf16>
    %c0_3 = arith.constant 0 : index
    %c0_4 = arith.constant 0 : index
    %4 = vector.load %arg4[%c0_3, %c0_4] : memref<128x128xbf16, #tpu.memory_space<vmem>>, vector<128x128xbf16>
    tpu.vector_store %arg4[%c0_3, %c0_4], %3 {strides = array<i32>} : memref<128x128xbf16, #tpu.memory_space<vmem>>, vector<128x128xbf16>,
    %cst_5 = arith.constant dense<0.000000e+00> : vector<128xf32>
    %5 = vector.multi_reduction <add>, %2, %cst_5 [0] : vector<128x128xf32> to vector<128xf32>
    %6 = vector.shape_cast %5 : vector<128xf32> to vector<1x128xf32>
    %7 = arith.mulf %2, %2 : vector<128x128xf32>
    %cst_6 = arith.constant dense<0.000000e+00> : vector<128xf32>
    %8 = vector.multi_reduction <add>, %7, %cst_6 [0] : vector<128x128xf32> to vector<128xf32>
    %9 = vector.shape_cast %8 : vector<128xf32> to vector<1x128xf32>
    %10 = vector.shape_cast %6 : vector<1x128xf32> to vector<1x128xf32>
    %11 = vector.broadcast %10 : vector<1x128xf32> to vector<8x128xf32>
    %c0_7 = arith.constant 0 : index
    %c0_8 = arith.constant 0 : index
    %12 = vector.load %arg5[%c0_7, %c0_8] : memref<8x128xf32, #tpu.memory_space<vmem>>, vector<8x128xf32>
    tpu.vector_store %arg5[%c0_7, %c0_8], %11 {strides = array<i32>} : memref<8x128xf32, #tpu.memory_space<vmem>>, vector<8x128xf32>,
    %13 = vector.shape_cast %9 : vector<1x128xf32> to vector<1x128xf32>
    %14 = vector.broadcast %13 : vector<1x128xf32> to vector<8x128xf32>
    %c0_9 = arith.constant 0 : index
    %c0_10 = arith.constant 0 : index
    %15 = vector.load %arg6[%c0_9, %c0_10] : memref<8x128xf32, #tpu.memory_space<vmem>>, vector<8x128xf32>
    tpu.vector_store %arg6[%c0_9, %c0_10], %14 {strides = array<i32>} : memref<8x128xf32, #tpu.memory_space<vmem>>, vector<8x128xf32>,
    return
  }
  func.func @transform_0(%arg0: i32, %arg1: i32) -> (i32, i32) {
    %c0_i32 = arith.constant 0 : i32
    %c0_i32_0 = arith.constant 0 : i32
    return %arg0, %c0_i32 : i32, i32
  }
  func.func @transform_1(%arg0: i32, %arg1: i32) -> (i32, i32) {
    %c0_i32 = arith.constant 0 : i32
    %c0_i32_0 = arith.constant 0 : i32
    return %c0_i32, %arg1 : i32, i32
  }
  func.func @transform_2(%arg0: i32, %arg1: i32) -> (i32, i32) {
    %c0_i32 = arith.constant 0 : i32
    return %arg0, %arg1 : i32, i32
  }
  func.func @transform_3(%arg0: i32, %arg1: i32) -> (i32, i32) {
    %c0_i32 = arith.constant 0 : i32
    return %arg0, %arg1 : i32, i32
  }
  func.func @transform_4(%arg0: i32, %arg1: i32) -> (i32, i32) {
    %c0_i32 = arith.constant 0 : i32
    return %arg0, %arg1 : i32, i32
  }
}

module attributes {stable_mosaic.version = 11 : i64} {
  func.func @_affine_act_kernel(%arg0: i32, %arg1: memref<128x128xbf16, #tpu.memory_space<vmem>>, %arg2: memref<1x128xf32, #tpu.memory_space<vmem>>, %arg3: memref<1x128xf32, #tpu.memory_space<vmem>>, %arg4: memref<128x128xbf16, #tpu.memory_space<vmem>>) attributes {dimension_semantics = [#tpu.dimension_semantics<parallel>], iteration_bounds = array<i64: 1>, scalar_prefetch = 0 : i64, scratch_operands = 0 : i64, tpu.core_type = #tpu.core_type<tc>, window_params = [{transform_indices = @transform_0, window_bounds = array<i64: 128, 128>}, {pipeline_mode = #tpu.pipeline_mode<synchronous>, transform_indices = @transform_1, window_bounds = array<i64: 1, 128>}, {pipeline_mode = #tpu.pipeline_mode<synchronous>, transform_indices = @transform_2, window_bounds = array<i64: 1, 128>}, {transform_indices = @transform_3, window_bounds = array<i64: 128, 128>}]} {
    %c0 = arith.constant 0 : index
    %c0_0 = arith.constant 0 : index
    %0 = vector.load %arg1[%c0, %c0_0] : memref<128x128xbf16, #tpu.memory_space<vmem>>, vector<128x128xbf16>
    %1 = arith.extf %0 : vector<128x128xbf16> to vector<128x128xf32>
    %c0_1 = arith.constant 0 : index
    %c0_2 = arith.constant 0 : index
    %2 = vector.load %arg2[%c0_1, %c0_2] : memref<1x128xf32, #tpu.memory_space<vmem>>, vector<1x128xf32>
    %3 = vector.broadcast %2 : vector<1x128xf32> to vector<128x128xf32>
    %4 = arith.mulf %1, %3 : vector<128x128xf32>
    %c0_3 = arith.constant 0 : index
    %c0_4 = arith.constant 0 : index
    %5 = vector.load %arg3[%c0_3, %c0_4] : memref<1x128xf32, #tpu.memory_space<vmem>>, vector<1x128xf32>
    %6 = vector.broadcast %5 : vector<1x128xf32> to vector<128x128xf32>
    %7 = arith.addf %4, %6 : vector<128x128xf32>
    %cst = arith.constant 0.000000e+00 : f32
    %8 = vector.broadcast %cst : f32 to vector<128x128xf32>
    %9 = arith.cmpf ogt, %7, %8 : vector<128x128xf32>
    %cst_5 = arith.constant 2.000000e-01 : f32
    %10 = vector.broadcast %cst_5 : f32 to vector<128x128xf32>
    %11 = arith.mulf %10, %7 : vector<128x128xf32>
    %12 = arith.select %9, %7, %11 : vector<128x128xi1>, vector<128x128xf32>
    %13 = arith.truncf %12 : vector<128x128xf32> to vector<128x128xbf16>
    %c0_6 = arith.constant 0 : index
    %c0_7 = arith.constant 0 : index
    %14 = vector.load %arg4[%c0_6, %c0_7] : memref<128x128xbf16, #tpu.memory_space<vmem>>, vector<128x128xbf16>
    tpu.vector_store %arg4[%c0_6, %c0_7], %13 {strides = array<i32>} : memref<128x128xbf16, #tpu.memory_space<vmem>>, vector<128x128xbf16>,
    return
  }
  func.func @transform_0(%arg0: i32) -> (i32, i32) {
    %c0_i32 = arith.constant 0 : i32
    %c0_i32_0 = arith.constant 0 : i32
    return %arg0, %c0_i32 : i32, i32
  }
  func.func @transform_1(%arg0: i32) -> (i32, i32) {
    %c0_i32 = arith.constant 0 : i32
    %c0_i32_0 = arith.constant 0 : i32
    %c0_i32_1 = arith.constant 0 : i32
    return %c0_i32, %c0_i32_0 : i32, i32
  }
  func.func @transform_2(%arg0: i32) -> (i32, i32) {
    %c0_i32 = arith.constant 0 : i32
    %c0_i32_0 = arith.constant 0 : i32
    %c0_i32_1 = arith.constant 0 : i32
    return %c0_i32, %c0_i32_0 : i32, i32
  }
  func.func @transform_3(%arg0: i32) -> (i32, i32) {
    %c0_i32 = arith.constant 0 : i32
    %c0_i32_0 = arith.constant 0 : i32
    return %arg0, %c0_i32 : i32, i32
  }
}

module attributes {stable_mosaic.version = 11 : i64} {
  func.func @_matmul_stats_kernel(%arg0: i32, %arg1: i32, %arg2: memref<32x512xbf16, #tpu.memory_space<vmem>>, %arg3: memref<512x128xbf16, #tpu.memory_space<vmem>>, %arg4: memref<32x128xbf16, #tpu.memory_space<vmem>>, %arg5: memref<8x128xf32, #tpu.memory_space<vmem>>, %arg6: memref<8x128xf32, #tpu.memory_space<vmem>>) attributes {dimension_semantics = [#tpu.dimension_semantics<parallel>, #tpu.dimension_semantics<parallel>], iteration_bounds = array<i64: 1, 1>, scalar_prefetch = 0 : i64, scratch_operands = 0 : i64, tpu.core_type = #tpu.core_type<tc>, window_params = [{transform_indices = @transform_0, window_bounds = array<i64: 32, 512>}, {transform_indices = @transform_1, window_bounds = array<i64: 512, 128>}, {transform_indices = @transform_2, window_bounds = array<i64: 32, 128>}, {transform_indices = @transform_3, window_bounds = array<i64: 8, 128>}, {transform_indices = @transform_4, window_bounds = array<i64: 8, 128>}]} {
    %c0 = arith.constant 0 : index
    %c0_0 = arith.constant 0 : index
    %0 = vector.load %arg2[%c0, %c0_0] : memref<32x512xbf16, #tpu.memory_space<vmem>>, vector<32x512xbf16>
    %c0_1 = arith.constant 0 : index
    %c0_2 = arith.constant 0 : index
    %1 = vector.load %arg3[%c0_1, %c0_2] : memref<512x128xbf16, #tpu.memory_space<vmem>>, vector<512x128xbf16>
    %cst = arith.constant dense<0.000000e+00> : vector<32x128xf32>
    %2 = tpu.matmul %0, %1, %cst {dimension_numbers = #tpu.dot_dimension_numbers<[1], [0], [0], [1], [0, 0, 1, 1], [], []>} : vector<32x512xbf16>, vector<512x128xbf16>, vector<32x128xf32> -> vector<32x128xf32>
    %3 = arith.truncf %2 : vector<32x128xf32> to vector<32x128xbf16>
    %c0_3 = arith.constant 0 : index
    %c0_4 = arith.constant 0 : index
    %4 = vector.load %arg4[%c0_3, %c0_4] : memref<32x128xbf16, #tpu.memory_space<vmem>>, vector<32x128xbf16>
    tpu.vector_store %arg4[%c0_3, %c0_4], %3 {strides = array<i32>} : memref<32x128xbf16, #tpu.memory_space<vmem>>, vector<32x128xbf16>,
    %cst_5 = arith.constant dense<0.000000e+00> : vector<128xf32>
    %5 = vector.multi_reduction <add>, %2, %cst_5 [0] : vector<32x128xf32> to vector<128xf32>
    %6 = vector.shape_cast %5 : vector<128xf32> to vector<1x128xf32>
    %7 = arith.mulf %2, %2 : vector<32x128xf32>
    %cst_6 = arith.constant dense<0.000000e+00> : vector<128xf32>
    %8 = vector.multi_reduction <add>, %7, %cst_6 [0] : vector<32x128xf32> to vector<128xf32>
    %9 = vector.shape_cast %8 : vector<128xf32> to vector<1x128xf32>
    %10 = vector.shape_cast %6 : vector<1x128xf32> to vector<1x128xf32>
    %11 = vector.broadcast %10 : vector<1x128xf32> to vector<8x128xf32>
    %c0_7 = arith.constant 0 : index
    %c0_8 = arith.constant 0 : index
    %12 = vector.load %arg5[%c0_7, %c0_8] : memref<8x128xf32, #tpu.memory_space<vmem>>, vector<8x128xf32>
    tpu.vector_store %arg5[%c0_7, %c0_8], %11 {strides = array<i32>} : memref<8x128xf32, #tpu.memory_space<vmem>>, vector<8x128xf32>,
    %13 = vector.shape_cast %9 : vector<1x128xf32> to vector<1x128xf32>
    %14 = vector.broadcast %13 : vector<1x128xf32> to vector<8x128xf32>
    %c0_9 = arith.constant 0 : index
    %c0_10 = arith.constant 0 : index
    %15 = vector.load %arg6[%c0_9, %c0_10] : memref<8x128xf32, #tpu.memory_space<vmem>>, vector<8x128xf32>
    tpu.vector_store %arg6[%c0_9, %c0_10], %14 {strides = array<i32>} : memref<8x128xf32, #tpu.memory_space<vmem>>, vector<8x128xf32>,
    return
  }
  func.func @transform_0(%arg0: i32, %arg1: i32) -> (i32, i32) {
    %c0_i32 = arith.constant 0 : i32
    %c0_i32_0 = arith.constant 0 : i32
    return %arg0, %c0_i32 : i32, i32
  }
  func.func @transform_1(%arg0: i32, %arg1: i32) -> (i32, i32) {
    %c0_i32 = arith.constant 0 : i32
    %c0_i32_0 = arith.constant 0 : i32
    return %c0_i32, %arg1 : i32, i32
  }
  func.func @transform_2(%arg0: i32, %arg1: i32) -> (i32, i32) {
    %c0_i32 = arith.constant 0 : i32
    return %arg0, %arg1 : i32, i32
  }
  func.func @transform_3(%arg0: i32, %arg1: i32) -> (i32, i32) {
    %c0_i32 = arith.constant 0 : i32
    return %arg0, %arg1 : i32, i32
  }
  func.func @transform_4(%arg0: i32, %arg1: i32) -> (i32, i32) {
    %c0_i32 = arith.constant 0 : i32
    return %arg0, %arg1 : i32, i32
  }
}

module attributes {stable_mosaic.version = 11 : i64} {
  func.func @_affine_act_kernel(%arg0: i32, %arg1: memref<32x128xbf16, #tpu.memory_space<vmem>>, %arg2: memref<1x128xf32, #tpu.memory_space<vmem>>, %arg3: memref<1x128xf32, #tpu.memory_space<vmem>>, %arg4: memref<32x128xbf16, #tpu.memory_space<vmem>>) attributes {dimension_semantics = [#tpu.dimension_semantics<parallel>], iteration_bounds = array<i64: 1>, scalar_prefetch = 0 : i64, scratch_operands = 0 : i64, tpu.core_type = #tpu.core_type<tc>, window_params = [{transform_indices = @transform_0, window_bounds = array<i64: 32, 128>}, {pipeline_mode = #tpu.pipeline_mode<synchronous>, transform_indices = @transform_1, window_bounds = array<i64: 1, 128>}, {pipeline_mode = #tpu.pipeline_mode<synchronous>, transform_indices = @transform_2, window_bounds = array<i64: 1, 128>}, {transform_indices = @transform_3, window_bounds = array<i64: 32, 128>}]} {
    %c0 = arith.constant 0 : index
    %c0_0 = arith.constant 0 : index
    %0 = vector.load %arg1[%c0, %c0_0] : memref<32x128xbf16, #tpu.memory_space<vmem>>, vector<32x128xbf16>
    %1 = arith.extf %0 : vector<32x128xbf16> to vector<32x128xf32>
    %c0_1 = arith.constant 0 : index
    %c0_2 = arith.constant 0 : index
    %2 = vector.load %arg2[%c0_1, %c0_2] : memref<1x128xf32, #tpu.memory_space<vmem>>, vector<1x128xf32>
    %3 = vector.broadcast %2 : vector<1x128xf32> to vector<32x128xf32>
    %4 = arith.mulf %1, %3 : vector<32x128xf32>
    %c0_3 = arith.constant 0 : index
    %c0_4 = arith.constant 0 : index
    %5 = vector.load %arg3[%c0_3, %c0_4] : memref<1x128xf32, #tpu.memory_space<vmem>>, vector<1x128xf32>
    %6 = vector.broadcast %5 : vector<1x128xf32> to vector<32x128xf32>
    %7 = arith.addf %4, %6 : vector<32x128xf32>
    %cst = arith.constant 0.000000e+00 : f32
    %8 = vector.broadcast %cst : f32 to vector<32x128xf32>
    %9 = arith.cmpf ogt, %7, %8 : vector<32x128xf32>
    %cst_5 = arith.constant 2.000000e-01 : f32
    %10 = vector.broadcast %cst_5 : f32 to vector<32x128xf32>
    %11 = arith.mulf %10, %7 : vector<32x128xf32>
    %12 = arith.select %9, %7, %11 : vector<32x128xi1>, vector<32x128xf32>
    %13 = arith.truncf %12 : vector<32x128xf32> to vector<32x128xbf16>
    %c0_6 = arith.constant 0 : index
    %c0_7 = arith.constant 0 : index
    %14 = vector.load %arg4[%c0_6, %c0_7] : memref<32x128xbf16, #tpu.memory_space<vmem>>, vector<32x128xbf16>
    tpu.vector_store %arg4[%c0_6, %c0_7], %13 {strides = array<i32>} : memref<32x128xbf16, #tpu.memory_space<vmem>>, vector<32x128xbf16>,
    return
  }
  func.func @transform_0(%arg0: i32) -> (i32, i32) {
    %c0_i32 = arith.constant 0 : i32
    %c0_i32_0 = arith.constant 0 : i32
    return %arg0, %c0_i32 : i32, i32
  }
  func.func @transform_1(%arg0: i32) -> (i32, i32) {
    %c0_i32 = arith.constant 0 : i32
    %c0_i32_0 = arith.constant 0 : i32
    %c0_i32_1 = arith.constant 0 : i32
    return %c0_i32, %c0_i32_0 : i32, i32
  }
  func.func @transform_2(%arg0: i32) -> (i32, i32) {
    %c0_i32 = arith.constant 0 : i32
    %c0_i32_0 = arith.constant 0 : i32
    %c0_i32_1 = arith.constant 0 : i32
    return %c0_i32, %c0_i32_0 : i32, i32
  }
  func.func @transform_3(%arg0: i32) -> (i32, i32) {
    %c0_i32 = arith.constant 0 : i32
    %c0_i32_0 = arith.constant 0 : i32
    return %arg0, %c0_i32 : i32, i32
  }
}

module attributes {stable_mosaic.version = 11 : i64} {
  func.func @_matmul_act_kernel(%arg0: i32, %arg1: i32, %arg2: memref<16x1024xbf16, #tpu.memory_space<vmem>>, %arg3: memref<1024x128xbf16, #tpu.memory_space<vmem>>, %arg4: memref<16x128xf32, #tpu.memory_space<vmem>>) attributes {dimension_semantics = [#tpu.dimension_semantics<parallel>, #tpu.dimension_semantics<parallel>], iteration_bounds = array<i64: 1, 1>, scalar_prefetch = 0 : i64, scratch_operands = 0 : i64, tpu.core_type = #tpu.core_type<tc>, window_params = [{transform_indices = @transform_0, window_bounds = array<i64: 16, 1024>}, {transform_indices = @transform_1, window_bounds = array<i64: 1024, 128>}, {transform_indices = @transform_2, window_bounds = array<i64: 16, 128>}]} {
    %c0 = arith.constant 0 : index
    %c0_0 = arith.constant 0 : index
    %0 = vector.load %arg2[%c0, %c0_0] : memref<16x1024xbf16, #tpu.memory_space<vmem>>, vector<16x1024xbf16>
    %c0_1 = arith.constant 0 : index
    %c0_2 = arith.constant 0 : index
    %1 = vector.load %arg3[%c0_1, %c0_2] : memref<1024x128xbf16, #tpu.memory_space<vmem>>, vector<1024x128xbf16>
    %cst = arith.constant dense<0.000000e+00> : vector<16x128xf32>
    %2 = tpu.matmul %0, %1, %cst {dimension_numbers = #tpu.dot_dimension_numbers<[1], [0], [0], [1], [0, 0, 1, 1], [], []>} : vector<16x1024xbf16>, vector<1024x128xbf16>, vector<16x128xf32> -> vector<16x128xf32>
    %3 = math.absf %2 : vector<16x128xf32>
    %cst_3 = arith.constant 0.000000e+00 : f32
    %4 = vector.broadcast %cst_3 : f32 to vector<16x128xf32>
    %5 = arith.subf %4, %3 : vector<16x128xf32>
    %6 = math.exp %5 : vector<16x128xf32>
    %cst_4 = arith.constant 0.000000e+00 : f32
    %7 = vector.broadcast %cst_4 : f32 to vector<16x128xf32>
    %8 = arith.cmpf oge, %2, %7 : vector<16x128xf32>
    %cst_5 = arith.constant 1.000000e+00 : f32
    %9 = vector.broadcast %cst_5 : f32 to vector<16x128xf32>
    %10 = arith.addf %9, %6 : vector<16x128xf32>
    %cst_6 = arith.constant 1.000000e+00 : f32
    %11 = vector.broadcast %cst_6 : f32 to vector<16x128xf32>
    %12 = arith.divf %11, %10 : vector<16x128xf32>
    %cst_7 = arith.constant 1.000000e+00 : f32
    %13 = vector.broadcast %cst_7 : f32 to vector<16x128xf32>
    %14 = arith.addf %13, %6 : vector<16x128xf32>
    %15 = arith.divf %6, %14 : vector<16x128xf32>
    %16 = arith.select %8, %12, %15 : vector<16x128xi1>, vector<16x128xf32>
    %c0_8 = arith.constant 0 : index
    %c0_9 = arith.constant 0 : index
    %17 = vector.load %arg4[%c0_8, %c0_9] : memref<16x128xf32, #tpu.memory_space<vmem>>, vector<16x128xf32>
    tpu.vector_store %arg4[%c0_8, %c0_9], %16 {strides = array<i32>} : memref<16x128xf32, #tpu.memory_space<vmem>>, vector<16x128xf32>,
    return
  }
  func.func @transform_0(%arg0: i32, %arg1: i32) -> (i32, i32) {
    %c0_i32 = arith.constant 0 : i32
    %c0_i32_0 = arith.constant 0 : i32
    return %arg0, %c0_i32 : i32, i32
  }
  func.func @transform_1(%arg0: i32, %arg1: i32) -> (i32, i32) {
    %c0_i32 = arith.constant 0 : i32
    %c0_i32_0 = arith.constant 0 : i32
    return %c0_i32, %arg1 : i32, i32
  }
  func.func @transform_2(%arg0: i32, %arg1: i32) -> (i32, i32) {
    %c0_i32 = arith.constant 0 : i32
    return %arg0, %arg1 : i32, i32
  }
}

</mosaic_0001>

<llo_original>
// kernel: dcgan_d_forward.8
$region0: #{dcgan_d_forward.8}
  #allocation0 [shape = 'u32[]', space=smem, size = 0x4, offset = 0x4, fixed_abs, tag = 'smem constant byte address 0x4 - core index']
  #allocation1 [shape = 'u32[144,128]{1,0:T(1,128)}', space=vmem, size = 0x12000, scoped, tag = 'internal scratch']
  %s0 = inlined_call_operand.vmem [shape: bf16[2048,48], index: 0, kind: input, shape index: {}]
  %s1 = inlined_call_operand.vmem [shape: bf16[48,128], index: 1, kind: input, shape index: {}]
  %s2 = inlined_call_operand.vmem [shape: bf16[2048,128], index: 2, kind: output, shape index: {}]
  %s3 = sld [smem:[#allocation0]]
  $region41: #{dcgan_d_forward.8} parent=0
    _
  %s5 = ssub.s32 1, %s3
  %s6 = scalar_select 0, %s5, %s3
  loop: start=0, step=1, limit=6
  $region2: #{dcgan_d_forward.8} parent=0 // loop_pre_header
    _
  $region3: #{dcgan_d_forward.8} parent=0 // loop_header
    %s8 = sphi 0, %s12
    %p9 = scmp.ge.s32.totalorder %s8, 6
    %s15 = sphi 0, %s27
    %s16 = sphi 0, %s23
    %s17 = sphi 0, %s15
    %s18 = sphi 0, %s16
    %s19 = sphi 0, %s17
    %s20 = sphi 0, %s18
    %s30 = sphi 0, %s32
    %s33 = sphi 0, %s30
    %s34 = sphi 0, %s33
    %s50 = sphi 0, %s34
    %s56 = sphi 0, %s58
    %s59 = sphi 0, %s56
    %s60 = sphi 0, %s59
    %s76 = sphi 0, %s60
    %s84 = sphi 0, %s86
    %s87 = sphi 0, %s84
    %s88 = sphi 0, %s87
    %s104 = sphi 0, %s88
  $region4: #{dcgan_d_forward.8} parent=0 // loop_header_branch
    %11 = sbr.rel (%p9) target = $region8
  $region5: #{dcgan_d_forward.8} parent=0 // loop_body
    %s13 = ssub.s32 %s8, 1
    %s14 = ssub.s32 %s8, 2
    %s21 = sadd.s32 1, %s16
    %p22 = scmp.ge.s32.totalorder %s21, 1
    %s23 = scalar_select %p22, 0, %s21
    %s24 = sadd.s32 1, %s15
    %s25 = scalar_select %p22, %s24, %s15
    %p26 = scmp.ge.s32.totalorder %s25, 4
    %s27 = scalar_select %p26, 0, %s25
    %s28 = ssub.s32 %s15, %s27
    %p29 = scmp.eq.s32.totalorder %s28, 0
    %s31 = sadd.s32 %s30, 1
    %s32 = scalar_select %p29, %s30, %s31
    %p35 = pneg %p29
    %p36 = scmp.eq.s32.totalorder %s8, 3
    %p37 = por %p35, %p36
    %p38 = scmp.ne.s32.totalorder %s30, %s33
    %p39 = scmp.eq.s32.totalorder %s8, 0
    %p40 = por %p38, %p39
    %p41 = scmp.ne.s32.totalorder %s30, %s33
    %p42 = scmp.eq.s32.totalorder %s13, 3
    %p43 = por %p41, %p42
    %p44 = scmp.ne.s32.totalorder %s33, %s34
    %p45 = scmp.eq.s32.totalorder %s13, 0
    %p46 = por %p44, %p45
    %p47 = scmp.ne.s32.totalorder %s33, %s34
    %p48 = scmp.eq.s32.totalorder %s14, 3
    %p49 = por %p47, %p48
    %p51 = scmp.ne.s32.totalorder %s34, %s50
    %p52 = scmp.eq.s32.totalorder %s14, 0
    %p53 = por %p51, %p52
    %s54 = ssub.s32 %s16, %s23
    %p55 = scmp.eq.s32.totalorder %s54, 0
    %s57 = sadd.s32 %s56, 1
    %s58 = scalar_select %p55, %s56, %s57
    %p61 = pneg %p55
    %p62 = scmp.eq.s32.totalorder %s8, 3
    %p63 = por %p61, %p62
    %p64 = scmp.ne.s32.totalorder %s56, %s59
    %p65 = scmp.eq.s32.totalorder %s8, 0
    %p66 = por %p64, %p65
    %p67 = scmp.ne.s32.totalorder %s56, %s59
    %p68 = scmp.eq.s32.totalorder %s13, 3
    %p69 = por %p67, %p68
    %p70 = scmp.ne.s32.totalorder %s59, %s60
    %p71 = scmp.eq.s32.totalorder %s13, 0
    %p72 = por %p70, %p71
    %p73 = scmp.ne.s32.totalorder %s59, %s60
    %p74 = scmp.eq.s32.totalorder %s14, 3
    %p75 = por %p73, %p74
    %p77 = scmp.ne.s32.totalorder %s60, %s76
    %p78 = scmp.eq.s32.totalorder %s14, 0
    %p79 = por %p77, %p78
    %s80 = ssub.s32 %s15, %s27
    %s81 = ssub.s32 %s16, %s23
    %s82 = sor.u32 %s80, %s81
    %p83 = scmp.eq.s32.totalorder %s82, 0
    %s85 = sadd.s32 %s84, 1
    %s86 = scalar_select %p83, %s84, %s85
    %p89 = pneg %p83
    %p90 = scmp.eq.s32.totalorder %s8, 3
    %p91 = por %p89, %p90
    %p92 = scmp.ne.s32.totalorder %s84, %s87
    %p93 = scmp.eq.s32.totalorder %s8, 0
    %p94 = por %p92, %p93
    %p95 = scmp.ne.s32.totalorder %s84, %s87
    %p96 = scmp.eq.s32.totalorder %s13, 3
    %p97 = por %p95, %p96
    %p98 = scmp.ne.s32.totalorder %s87, %s88
    %p99 = scmp.eq.s32.totalorder %s13, 0
    %p100 = por %p98, %p99
    %p101 = scmp.ne.s32.totalorder %s87, %s88
    %p102 = scmp.eq.s32.totalorder %s14, 3
    %p103 = por %p101, %p102
    %p105 = scmp.ne.s32.totalorder %s88, %s104
    %p106 = scmp.eq.s32.totalorder %s14, 0
    %p107 = por %p105, %p106
    %p108 = scmp.le.s32.totalorder 1, %s8
    %p109 = scmp.lt.s32.totalorder %s8, 5
    %p110 = pnand %p108, %p109
    %p111 = pneg %p110
    // Predicated region
    $region9: #{dcgan_d_forward.8} parent=5 // pred_check
      _
    $region10: #{dcgan_d_forward.8} parent=5 // pred_check_branch
      %113 = sbr.rel (%p110) target = $region12
    $region11: #{dcgan_d_forward.8} parent=5 // pred_region
      %s114 = ssub.s32 %s8, 1
      // Predicated region
      $region13: #{dcgan_d_forward.8} parent=11 // pred_check
        %p115 = pneg %p72
      $region14: #{dcgan_d_forward.8} parent=11 // pred_check_branch
        %117 = sbr.rel (%p115) target = $region16
      $region15: #{dcgan_d_forward.8} parent=11 // pred_region
        %p118 = scmp.lt.s32.totalorder %s18, 0
        %s119 = scalar_select %p118, %s18, 0
        %s120 = smul.addr %s119, 4
        %s121 = scalar_lea.vmem %s1, %s120
      $region16: #{dcgan_d_forward.8} parent=11 // pred_fallthru
        _
    $region12: #{dcgan_d_forward.8} parent=5 // pred_fallthru
      _
    %p122 = scmp.lt.s32.totalorder %s8, 4
    // Predicated region
    $region17: #{dcgan_d_forward.8} parent=5 // pred_check
      %p123 = pneg %p122
    $region18: #{dcgan_d_forward.8} parent=5 // pred_check_branch
      %125 = sbr.rel (%p123) target = $region20
    $region19: #{dcgan_d_forward.8} parent=5 // pred_region
      // Predicated region
      $region21: #{dcgan_d_forward.8} parent=19 // pred_check
        %p126 = pneg %p40
      $region22: #{dcgan_d_forward.8} parent=19 // pred_check_branch
        %128 = sbr.rel (%p126) target = $region24
      $region23: #{dcgan_d_forward.8} parent=19 // pred_region
        %s129 = smul.u32 64, %s15
        %p130 = scmp.lt.s32.totalorder %s129, 255
        %s131 = scalar_select %p130, %s129, 255
        %s132 = smul.addr %s131, 4
        %s133 = scalar_lea.vmem %s0, %s132
        %s134 = smul.u32 64, %s15
      $region24: #{dcgan_d_forward.8} parent=19 // pred_fallthru
        _
    $region20: #{dcgan_d_forward.8} parent=5 // pred_fallthru
      _
    %p135 = scmp.le.s32.totalorder 1, %s8
    %p136 = scmp.lt.s32.totalorder %s8, 5
    %p137 = pnand %p135, %p136
    %p138 = pneg %p137
    // Predicated region
    $region25: #{dcgan_d_forward.8} parent=5 // pred_check
      _
    $region26: #{dcgan_d_forward.8} parent=5 // pred_check_branch
      %140 = sbr.rel (%p137) target = $region28
    $region27: #{dcgan_d_forward.8} parent=5 // pred_region
      %s141 = ssub.s32 %s8, 1
      %s142 = smul.u32 64, %s17
      %p143 = scmp.lt.s32.totalorder %s142, 255
      %s144 = scalar_select %p143, %s142, 255
      %s145 = smul.addr %s144, 4
      %s146 = scalar_lea.vmem %s0, %s145
      %p147 = pneg %p46
      %p148 = pneg %p43
      %p149 = scmp.lt.s32.totalorder %s18, 0
      %s150 = scalar_select %p149, %s18, 0
      %s151 = smul.addr %s150, 4
      %s152 = scalar_lea.vmem %s1, %s151
      %p153 = pneg %p72
      %p154 = pneg %p69
      %p155 = pneg %p100
      %p156 = pneg %p97
      %s157 = smul.u32 64, %s17
      %p158 = scmp.lt.s32.totalorder %s157, 255
      %s159 = scalar_select %p158, %s157, 255
      %p160 = scmp.lt.s32.totalorder %s18, 0
      %s161 = scalar_select %p160, %s18, 0
      %s162 = sadd.s32 %s161, %s159
      %s163 = smul.addr %s162, 4
      %s164 = scalar_lea.vmem %s2, %s163
      %s165 = smul.u32 64, %s17
      %p166 = scmp.lt.s32.totalorder %s165, 255
      %s167 = scalar_select %p166, %s165, 255
      %s168 = smul.addr %s167, 4
      %s169 = scalar_lea.vmem %s0, %s168
      %s170 = smul.u32 64, %s17
      %p171 = scmp.lt.s32.totalorder %s18, 0
      %s172 = scalar_select %p171, %s18, 0
      %s173 = smul.addr %s172, 4
      %s174 = scalar_lea.vmem %s1, %s173
      %s175 = smul.u32 64, %s17
      %p176 = scmp.lt.s32.totalorder %s175, 255
      %s177 = scalar_select %p176, %s175, 255
      %p178 = scmp.lt.s32.totalorder %s18, 0
      %s179 = scalar_select %p178, %s18, 0
      %s180 = sadd.s32 %s179, %s177
      %s181 = smul.addr %s180, 4
      %s182 = scalar_lea.vmem %s2, %s181
      %s183 = smul.u32 64, %s17
      %v185 = vld [vmem:[%s169] sm:$0xf]
      %v186 = vld [vmem:[%s169 + $0x4] sm:$0xf]
      %v187 = vld [vmem:[%s169 + $0x8] sm:$0xf]
      %v188 = vld [vmem:[%s169 + $0xc] sm:$0xf]
      %v189 = vld [vmem:[%s169 + $0x10] sm:$0xf]
      %v190 = vld [vmem:[%s169 + $0x14] sm:$0xf]
      %v191 = vld [vmem:[%s169 + $0x18] sm:$0xf]
      %v192 = vld [vmem:[%s169 + $0x1c] sm:$0xf]
      %v193 = vld [vmem:[%s169 + $0x20] sm:$0xf]
      %v194 = vld [vmem:[%s169 + $0x24] sm:$0xf]
      %v195 = vld [vmem:[%s169 + $0x28] sm:$0xf]
      %v196 = vld [vmem:[%s169 + $0x2c] sm:$0xf]
      %v197 = vld [vmem:[%s169 + $0x30] sm:$0xf]
      %v198 = vld [vmem:[%s169 + $0x34] sm:$0xf]
      %v199 = vld [vmem:[%s169 + $0x38] sm:$0xf]
      %v200 = vld [vmem:[%s169 + $0x3c] sm:$0xf]
      %v201 = vld [vmem:[%s169 + $0x40] sm:$0xf]
      %v202 = vld [vmem:[%s169 + $0x44] sm:$0xf]
      %v203 = vld [vmem:[%s169 + $0x48] sm:$0xf]
      %v204 = vld [vmem:[%s169 + $0x4c] sm:$0xf]
      %v205 = vld [vmem:[%s169 + $0x50] sm:$0xf]
      %v206 = vld [vmem:[%s169 + $0x54] sm:$0xf]
      %v207 = vld [vmem:[%s169 + $0x58] sm:$0xf]
      %v208 = vld [vmem:[%s169 + $0x5c] sm:$0xf]
      %v209 = vld [vmem:[%s169 + $0x60] sm:$0xf]
      %v210 = vld [vmem:[%s169 + $0x64] sm:$0xf]
      %v211 = vld [vmem:[%s169 + $0x68] sm:$0xf]
      %v212 = vld [vmem:[%s169 + $0x6c] sm:$0xf]
      %v213 = vld [vmem:[%s169 + $0x70] sm:$0xf]
      %v214 = vld [vmem:[%s169 + $0x74] sm:$0xf]
      %v215 = vld [vmem:[%s169 + $0x78] sm:$0xf]
      %v216 = vld [vmem:[%s169 + $0x7c] sm:$0xf]
      %v217 = vld [vmem:[%s169 + $0x80] sm:$0xf]
      %v218 = vld [vmem:[%s169 + $0x84] sm:$0xf]
      %v219 = vld [vmem:[%s169 + $0x88] sm:$0xf]
      %v220 = vld [vmem:[%s169 + $0x8c] sm:$0xf]
      %v221 = vld [vmem:[%s169 + $0x90] sm:$0xf]
      %v222 = vld [vmem:[%s169 + $0x94] sm:$0xf]
      %v223 = vld [vmem:[%s169 + $0x98] sm:$0xf]
      %v224 = vld [vmem:[%s169 + $0x9c] sm:$0xf]
      %v225 = vld [vmem:[%s169 + $0xa0] sm:$0xf]
      %v226 = vld [vmem:[%s169 + $0xa4] sm:$0xf]
      %v227 = vld [vmem:[%s169 + $0xa8] sm:$0xf]
      %v228 = vld [vmem:[%s169 + $0xac] sm:$0xf]
      %v229 = vld [vmem:[%s169 + $0xb0] sm:$0xf]
      %v230 = vld [vmem:[%s169 + $0xb4] sm:$0xf]
      %v231 = vld [vmem:[%s169 + $0xb8] sm:$0xf]
      %v232 = vld [vmem:[%s169 + $0xbc] sm:$0xf]
      %v233 = vld [vmem:[%s169 + $0xc0] sm:$0xf]
      %v234 = vld [vmem:[%s169 + $0xc4] sm:$0xf]
      %v235 = vld [vmem:[%s169 + $0xc8] sm:$0xf]
      %v236 = vld [vmem:[%s169 + $0xcc] sm:$0xf]
      %v237 = vld [vmem:[%s169 + $0xd0] sm:$0xf]
      %v238 = vld [vmem:[%s169 + $0xd4] sm:$0xf]
      %v239 = vld [vmem:[%s169 + $0xd8] sm:$0xf]
      %v240 = vld [vmem:[%s169 + $0xdc] sm:$0xf]
      %v241 = vld [vmem:[%s169 + $0xe0] sm:$0xf]
      %v242 = vld [vmem:[%s169 + $0xe4] sm:$0xf]
      %v243 = vld [vmem:[%s169 + $0xe8] sm:$0xf]
      %v244 = vld [vmem:[%s169 + $0xec] sm:$0xf]
      %v245 = vld [vmem:[%s169 + $0xf0] sm:$0xf]
      %v246 = vld [vmem:[%s169 + $0xf4] sm:$0xf]
      %v247 = vld [vmem:[%s169 + $0xf8] sm:$0xf]
      %v248 = vld [vmem:[%s169 + $0xfc] sm:$0xf]
      %v249 = vld [vmem:[%s174] sm:$0xf]
      %v250 = vld [vmem:[%s174 + $0x4] sm:$0xf]
      %v251 = vld [vmem:[%s174 + $0x8] sm:$0xf]
      %v252 = vld [vmem:[%s174 + $0xc] sm:$0xf]
      %v253 = vld [vmem:[%s174 + $0x10] sm:$0xf]
      %v254 = vld [vmem:[%s174 + $0x14] sm:$0xf]
      %v319 = vunpack.c.l.b16 %v185
      %v320 = vunpack.c.l.b16 %v186
      %v321 = vunpack.c.l.b16 %v187
      %v322 = vunpack.c.l.b16 %v188
      %v323 = vunpack.c.l.b16 %v189
      %v324 = vunpack.c.l.b16 %v190
      %v325 = vunpack.c.l.b16 %v191
      %v326 = vunpack.c.l.b16 %v192
      %v327 = vunpack.c.l.b16 %v193
      %v328 = vunpack.c.l.b16 %v194
      %v329 = vunpack.c.l.b16 %v195
      %v330 = vunpack.c.l.b16 %v196
      %v331 = vunpack.c.l.b16 %v197
      %v332 = vunpack.c.l.b16 %v198
      %v333 = vunpack.c.l.b16 %v199
      %v334 = vunpack.c.l.b16 %v200
      %v335 = vunpack.c.l.b16 %v201
      %v336 = vunpack.c.l.b16 %v202
      %v337 = vunpack.c.l.b16 %v203
      %v338 = vunpack.c.l.b16 %v204
      %v339 = vunpack.c.l.b16 %v205
      %v340 = vunpack.c.l.b16 %v206
      %v341 = vunpack.c.l.b16 %v207
      %v342 = vunpack.c.l.b16 %v208
      %v343 = vunpack.c.l.b16 %v209
      %v344 = vunpack.c.l.b16 %v210
      %v345 = vunpack.c.l.b16 %v211
      %v346 = vunpack.c.l.b16 %v212
      %v347 = vunpack.c.l.b16 %v213
      %v348 = vunpack.c.l.b16 %v214
      %v349 = vunpack.c.l.b16 %v215
      %v350 = vunpack.c.l.b16 %v216
      %v351 = vunpack.c.l.b16 %v217
      %v352 = vunpack.c.l.b16 %v218
      %v353 = vunpack.c.l.b16 %v219
      %v354 = vunpack.c.l.b16 %v220
      %v355 = vunpack.c.l.b16 %v221
      %v356 = vunpack.c.l.b16 %v222
      %v357 = vunpack.c.l.b16 %v223
      %v358 = vunpack.c.l.b16 %v224
      %v359 = vunpack.c.l.b16 %v225
      %v360 = vunpack.c.l.b16 %v226
      %v361 = vunpack.c.l.b16 %v227
      %v362 = vunpack.c.l.b16 %v228
      %v363 = vunpack.c.l.b16 %v229
      %v364 = vunpack.c.l.b16 %v230
      %v365 = vunpack.c.l.b16 %v231
      %v366 = vunpack.c.l.b16 %v232
      %v367 = vunpack.c.l.b16 %v233
      %v368 = vunpack.c.l.b16 %v234
      %v369 = vunpack.c.l.b16 %v235
      %v370 = vunpack.c.l.b16 %v236
      %v371 = vunpack.c.l.b16 %v237
      %v372 = vunpack.c.l.b16 %v238
      %v373 = vunpack.c.l.b16 %v239
      %v374 = vunpack.c.l.b16 %v240
      %v375 = vunpack.c.l.b16 %v241
      %v376 = vunpack.c.l.b16 %v242
      %v377 = vunpack.c.l.b16 %v243
      %v378 = vunpack.c.l.b16 %v244
      %v379 = vunpack.c.l.b16 %v245
      %v380 = vunpack.c.l.b16 %v246
      %v381 = vunpack.c.l.b16 %v247
      %v382 = vunpack.c.l.b16 %v248
      %v383 = vpack.c.b16 %v320, %v319
      %v384 = vpack.c.b16 %v322, %v321
      %v385 = vpack.c.b16 %v324, %v323
      %v386 = vpack.c.b16 %v326, %v325
      %v387 = vpack.c.b16 %v328, %v327
      %v388 = vpack.c.b16 %v330, %v329
      %v389 = vpack.c.b16 %v332, %v331
      %v390 = vpack.c.b16 %v334, %v333
      %v391 = vpack.c.b16 %v336, %v335
      %v392 = vpack.c.b16 %v338, %v337
      %v393 = vpack.c.b16 %v340, %v339
      %v394 = vpack.c.b16 %v342, %v341
      %v395 = vpack.c.b16 %v344, %v343
      %v396 = vpack.c.b16 %v346, %v345
      %v397 = vpack.c.b16 %v348, %v347
      %v398 = vpack.c.b16 %v350, %v349
      %v399 = vpack.c.b16 %v352, %v351
      %v400 = vpack.c.b16 %v354, %v353
      %v401 = vpack.c.b16 %v356, %v355
      %v402 = vpack.c.b16 %v358, %v357
      %v403 = vpack.c.b16 %v360, %v359
      %v404 = vpack.c.b16 %v362, %v361
      %v405 = vpack.c.b16 %v364, %v363
      %v406 = vpack.c.b16 %v366, %v365
      %v407 = vpack.c.b16 %v368, %v367
      %v408 = vpack.c.b16 %v370, %v369
      %v409 = vpack.c.b16 %v372, %v371
      %v410 = vpack.c.b16 %v374, %v373
      %v411 = vpack.c.b16 %v376, %v375
      %v412 = vpack.c.b16 %v378, %v377
      %v413 = vpack.c.b16 %v380, %v379
      %v414 = vpack.c.b16 %v382, %v381
      %v421 = vunpack.c.l.b16 %v249
      %v422 = vunpack.c.l.b16 %v250
      %v423 = vunpack.c.l.b16 %v251
      %v424 = vunpack.c.l.b16 %v252
      %v425 = vunpack.c.l.b16 %v253
      %v426 = vunpack.c.l.b16 %v254
      %v427 = vpack.c.b16 %v422, %v421
      %v428 = vpack.c.b16 %v424, %v423
      %v429 = vpack.c.b16 %v426, %v425
      %vm433 = vcmask 392192
      %v435 = vsel %vm433, %v383, 0
      %v438 = vsel %vm433, %v384, 0
      %v441 = vsel %vm433, %v385, 0
      %v444 = vsel %vm433, %v386, 0
      %v447 = vsel %vm433, %v387, 0
      %v450 = vsel %vm433, %v388, 0
      %v453 = vsel %vm433, %v389, 0
      %v456 = vsel %vm433, %v390, 0
      %v459 = vsel %vm433, %v391, 0
      %v462 = vsel %vm433, %v392, 0
      %v465 = vsel %vm433, %v393, 0
      %v468 = vsel %vm433, %v394, 0
      %v471 = vsel %vm433, %v395, 0
      %v474 = vsel %vm433, %v396, 0
      %v477 = vsel %vm433, %v397, 0
      %v480 = vsel %vm433, %v398, 0
      %v483 = vsel %vm433, %v399, 0
      %v486 = vsel %vm433, %v400, 0
      %v489 = vsel %vm433, %v401, 0
      %v492 = vsel %vm433, %v402, 0
      %v495 = vsel %vm433, %v403, 0
      %v498 = vsel %vm433, %v404, 0
      %v501 = vsel %vm433, %v405, 0
      %v504 = vsel %vm433, %v406, 0
      %v507 = vsel %vm433, %v407, 0
      %v510 = vsel %vm433, %v408, 0
      %v513 = vsel %vm433, %v409, 0
      %v516 = vsel %vm433, %v410, 0
      %v519 = vsel %vm433, %v411, 0
      %v522 = vsel %vm433, %v412, 0
      %v525 = vsel %vm433, %v413, 0
      %v528 = vsel %vm433, %v414, 0
      %530 = vmatprep.subr.bf16.mxu0 0
      %531 = vmatpush1.bf16.msra.mxu0 %v427
      %532 = vmatprep.subr.bf16.mxu0 0
      %533 = vmatpush1.bf16.msra.mxu0 %v428
      %534 = vmatprep.subr.bf16.mxu0 0
      %535 = vmatpush1.bf16.msra.mxu0 %v429
      %536 = vmatprep.subr.bf16.mxu0 0
      %537 = vmatpush1.bf16.msra.mxu0 0
      %538 = vmatprep.subr.bf16.mxu0 0
      %539 = vmatpush1.bf16.msra.mxu0 0
      %540 = vmatprep.subr.bf16.mxu0 0
      %541 = vmatpush1.bf16.msra.mxu0 0
      %542 = vmatprep.subr.bf16.mxu0 0
      %543 = vmatpush1.bf16.msra.mxu0 0
      %544 = vmatprep.subr.bf16.mxu0 0
      %545 = vmatpush1.bf16.msra.mxu0 0
      %546 = vmatprep.subr.bf16.mxu0 0
      %547 = vmatpush1.bf16.msra.mxu0 0
      %548 = vmatprep.subr.bf16.mxu0 0
      %549 = vmatpush1.bf16.msra.mxu0 0
      %550 = vmatprep.subr.bf16.mxu0 0
      %551 = vmatpush1.bf16.msra.mxu0 0
      %552 = vmatprep.subr.bf16.mxu0 0
      %553 = vmatpush1.bf16.msra.mxu0 0
      %554 = vmatprep.subr.bf16.mxu0 0
      %555 = vmatpush1.bf16.msra.mxu0 0
      %556 = vmatprep.subr.bf16.mxu0 0
      %557 = vmatpush1.bf16.msra.mxu0 0
      %558 = vmatprep.subr.bf16.mxu0 0
      %559 = vmatpush1.bf16.msra.mxu0 0
      %560 = vmatprep.subr.bf16.mxu0 0
      %561 = vmatpush1.bf16.msra.mxu0 0
      %562 = vmatprep.mubr.bf16.mxu0 0
      %563 = vmatmul.mubr.bf16.gmra.mrb[0].mxu0 %v435
      %v564 = vpop.f32.mrb[0].mxu0
      %v565 = vadd.f32 0.0, %v564
      %v566 = vpop.f32.mrb[0].mxu0
      %v567 = vpop.f32.mrb[0].mxu0
      %v568 = vadd.f32 0.0, %v567
      %v569 = vpop.f32.mrb[0].mxu0
      %570 = vmatprep.mubr.bf16.mxu0 0
      %571 = vmatmul.mubr.bf16.gmra.mrb[0].mxu0 %v438
      %v572 = vpop.f32.mrb[0].mxu0
      %v573 = vadd.f32 0.0, %v572
      %v574 = vpop.f32.mrb[0].mxu0
      %v575 = vpop.f32.mrb[0].mxu0
      %v576 = vadd.f32 0.0, %v575
      %v577 = vpop.f32.mrb[0].mxu0
      %578 = vmatprep.mubr.bf16.mxu0 0
      %579 = vmatmul.mubr.bf16.gmra.mrb[0].mxu0 %v441
      %v580 = vpop.f32.mrb[0].mxu0
      %v581 = vadd.f32 0.0, %v580
      %v582 = vpop.f32.mrb[0].mxu0
      %v583 = vpop.f32.mrb[0].mxu0
      %v584 = vadd.f32 0.0, %v583
      %v585 = vpop.f32.mrb[0].mxu0
      %586 = vmatprep.mubr.bf16.mxu0 0
      %587 = vmatmul.mubr.bf16.gmra.mrb[0].mxu0 %v444
      %v588 = vpop.f32.mrb[0].mxu0
      %v589 = vadd.f32 0.0, %v588
      %v590 = vpop.f32.mrb[0].mxu0
      %v591 = vpop.f32.mrb[0].mxu0
      %v592 = vadd.f32 0.0, %v591
      %v593 = vpop.f32.mrb[0].mxu0
      %594 = vmatprep.mubr.bf16.mxu0 0
      %595 = vmatmul.mubr.bf16.gmra.mrb[0].mxu0 %v447
      %v596 = vpop.f32.mrb[0].mxu0
      %v597 = vadd.f32 0.0, %v596
      %v598 = vpop.f32.mrb[0].mxu0
      %v599 = vpop.f32.mrb[0].mxu0
      %v600 = vadd.f32 0.0, %v599
      %v601 = vpop.f32.mrb[0].mxu0
      %602 = vmatprep.mubr.bf16.mxu0 0
      %603 = vmatmul.mubr.bf16.gmra.mrb[0].mxu0 %v450
      %v604 = vpop.f32.mrb[0].mxu0
      %v605 = vadd.f32 0.0, %v604
      %v606 = vpop.f32.mrb[0].mxu0
      %v607 = vpop.f32.mrb[0].mxu0
      %v608 = vadd.f32 0.0, %v607
      %v609 = vpop.f32.mrb[0].mxu0
      %610 = vmatprep.mubr.bf16.mxu0 0
      %611 = vmatmul.mubr.bf16.gmra.mrb[0].mxu0 %v453
      %v612 = vpop.f32.mrb[0].mxu0
      %v613 = vadd.f32 0.0, %v612
      %v614 = vpop.f32.mrb[0].mxu0
      %v615 = vpop.f32.mrb[0].mxu0
      %v616 = vadd.f32 0.0, %v615
      %v617 = vpop.f32.mrb[0].mxu0
      %618 = vmatprep.mubr.bf16.mxu0 0
      %619 = vmatmul.mubr.bf16.gmra.mrb[0].mxu0 %v456
      %v620 = vpop.f32.mrb[0].mxu0
      %v621 = vadd.f32 0.0, %v620
      %v622 = vpop.f32.mrb[0].mxu0
      %v623 = vpop.f32.mrb[0].mxu0
      %v624 = vadd.f32 0.0, %v623
      %v625 = vpop.f32.mrb[0].mxu0
      %626 = vmatprep.mubr.bf16.mxu0 0
      %627 = vmatmul.mubr.bf16.gmra.mrb[0].mxu0 %v459
      %v628 = vpop.f32.mrb[0].mxu0
      %v629 = vadd.f32 0.0, %v628
      %v630 = vpop.f32.mrb[0].mxu0
      %v631 = vpop.f32.mrb[0].mxu0
      %v632 = vadd.f32 0.0, %v631
      %v633 = vpop.f32.mrb[0].mxu0
      %634 = vmatprep.mubr.bf16.mxu0 0
      %635 = vmatmul.mubr.bf16.gmra.mrb[0].mxu0 %v462
      %v636 = vpop.f32.mrb[0].mxu0
      %v637 = vadd.f32 0.0, %v636
      %v638 = vpop.f32.mrb[0].mxu0
      %v639 = vpop.f32.mrb[0].mxu0
      %v640 = vadd.f32 0.0, %v639
      %v641 = vpop.f32.mrb[0].mxu0
      %642 = vmatprep.mubr.bf16.mxu0 0
      %643 = vmatmul.mubr.bf16.gmra.mrb[0].mxu0 %v465
      %v644 = vpop.f32.mrb[0].mxu0
      %v645 = vadd.f32 0.0, %v644
      %v646 = vpop.f32.mrb[0].mxu0
      %v647 = vpop.f32.mrb[0].mxu0
      %v648 = vadd.f32 0.0, %v647
      %v649 = vpop.f32.mrb[0].mxu0
      %650 = vmatprep.mubr.bf16.mxu0 0
      %651 = vmatmul.mubr.bf16.gmra.mrb[0].mxu0 %v468
      %v652 = vpop.f32.mrb[0].mxu0
      %v653 = vadd.f32 0.0, %v652
      %v654 = vpop.f32.mrb[0].mxu0
      %v655 = vpop.f32.mrb[0].mxu0
      %v656 = vadd.f32 0.0, %v655
      %v657 = vpop.f32.mrb[0].mxu0
      %658 = vmatprep.mubr.bf16.mxu0 0
      %659 = vmatmul.mubr.bf16.gmra.mrb[0].mxu0 %v471
      %v660 = vpop.f32.mrb[0].mxu0
      %v661 = vadd.f32 0.0, %v660
      %v662 = vpop.f32.mrb[0].mxu0
      %v663 = vpop.f32.mrb[0].mxu0
      %v664 = vadd.f32 0.0, %v663
      %v665 = vpop.f32.mrb[0].mxu0
      %666 = vmatprep.mubr.bf16.mxu0 0
      %667 = vmatmul.mubr.bf16.gmra.mrb[0].mxu0 %v474
      %v668 = vpop.f32.mrb[0].mxu0
      %v669 = vadd.f32 0.0, %v668
      %v670 = vpop.f32.mrb[0].mxu0
      %v671 = vpop.f32.mrb[0].mxu0
      %v672 = vadd.f32 0.0, %v671
      %v673 = vpop.f32.mrb[0].mxu0
      %674 = vmatprep.mubr.bf16.mxu0 0
      %675 = vmatmul.mubr.bf16.gmra.mrb[0].mxu0 %v477
      %v676 = vpop.f32.mrb[0].mxu0
      %v677 = vadd.f32 0.0, %v676
      %v678 = vpop.f32.mrb[0].mxu0
      %v679 = vpop.f32.mrb[0].mxu0
      %v680 = vadd.f32 0.0, %v679
      %v681 = vpop.f32.mrb[0].mxu0
      %682 = vmatprep.mubr.bf16.mxu0 0
      %683 = vmatmul.mubr.bf16.gmra.mrb[0].mxu0 %v480
      %v684 = vpop.f32.mrb[0].mxu0
      %v685 = vadd.f32 0.0, %v684
      %v686 = vpop.f32.mrb[0].mxu0
      %v687 = vpop.f32.mrb[0].mxu0
      %v688 = vadd.f32 0.0, %v687
      %v689 = vpop.f32.mrb[0].mxu0
      %690 = vmatprep.mubr.bf16.mxu0 0
      %691 = vmatmul.mubr.bf16.gmra.mrb[0].mxu0 %v483
      %v692 = vpop.f32.mrb[0].mxu0
      %v693 = vadd.f32 0.0, %v692
      %v694 = vpop.f32.mrb[0].mxu0
      %v695 = vpop.f32.mrb[0].mxu0
      %v696 = vadd.f32 0.0, %v695
      %v697 = vpop.f32.mrb[0].mxu0
      %698 = vmatprep.mubr.bf16.mxu0 0
      %699 = vmatmul.mubr.bf16.gmra.mrb[0].mxu0 %v486
      %v700 = vpop.f32.mrb[0].mxu0
      %v701 = vadd.f32 0.0, %v700
      %v702 = vpop.f32.mrb[0].mxu0
      %v703 = vpop.f32.mrb[0].mxu0
      %v704 = vadd.f32 0.0, %v703
      %v705 = vpop.f32.mrb[0].mxu0
      %706 = vmatprep.mubr.bf16.mxu0 0
      %707 = vmatmul.mubr.bf16.gmra.mrb[0].mxu0 %v489
      %v708 = vpop.f32.mrb[0].mxu0
      %v709 = vadd.f32 0.0, %v708
      %v710 = vpop.f32.mrb[0].mxu0
      %v711 = vpop.f32.mrb[0].mxu0
      %v712 = vadd.f32 0.0, %v711
      %v713 = vpop.f32.mrb[0].mxu0
      %714 = vmatprep.mubr.bf16.mxu0 0
      %715 = vmatmul.mubr.bf16.gmra.mrb[0].mxu0 %v492
      %v716 = vpop.f32.mrb[0].mxu0
      %v717 = vadd.f32 0.0, %v716
      %v718 = vpop.f32.mrb[0].mxu0
      %v719 = vpop.f32.mrb[0].mxu0
      %v720 = vadd.f32 0.0, %v719
      %v721 = vpop.f32.mrb[0].mxu0
      %722 = vmatprep.mubr.bf16.mxu0 0
      %723 = vmatmul.mubr.bf16.gmra.mrb[0].mxu0 %v495
      %v724 = vpop.f32.mrb[0].mxu0
      %v725 = vadd.f32 0.0, %v724
      %v726 = vpop.f32.mrb[0].mxu0
      %v727 = vpop.f32.mrb[0].mxu0
      %v728 = vadd.f32 0.0, %v727
      %v729 = vpop.f32.mrb[0].mxu0
      %730 = vmatprep.mubr.bf16.mxu0 0
      %731 = vmatmul.mubr.bf16.gmra.mrb[0].mxu0 %v498
      %v732 = vpop.f32.mrb[0].mxu0
      %v733 = vadd.f32 0.0, %v732
      %v734 = vpop.f32.mrb[0].mxu0
      %v735 = vpop.f32.mrb[0].mxu0
      %v736 = vadd.f32 0.0, %v735
      %v737 = vpop.f32.mrb[0].mxu0
      %738 = vmatprep.mubr.bf16.mxu0 0
      %739 = vmatmul.mubr.bf16.gmra.mrb[0].mxu0 %v501
      %v740 = vpop.f32.mrb[0].mxu0
      %v741 = vadd.f32 0.0, %v740
      %v742 = vpop.f32.mrb[0].mxu0
      %v743 = vpop.f32.mrb[0].mxu0
      %v744 = vadd.f32 0.0, %v743
      %v745 = vpop.f32.mrb[0].mxu0
      %746 = vmatprep.mubr.bf16.mxu0 0
      %747 = vmatmul.mubr.bf16.gmra.mrb[0].mxu0 %v504
      %v748 = vpop.f32.mrb[0].mxu0
      %v749 = vadd.f32 0.0, %v748
      %v750 = vpop.f32.mrb[0].mxu0
      %v751 = vpop.f32.mrb[0].mxu0
      %v752 = vadd.f32 0.0, %v751
      %v753 = vpop.f32.mrb[0].mxu0
      %754 = vmatprep.mubr.bf16.mxu0 0
      %755 = vmatmul.mubr.bf16.gmra.mrb[0].mxu0 %v507
      %v756 = vpop.f32.mrb[0].mxu0
      %v757 = vadd.f32 0.0, %v756
      %v758 = vpop.f32.mrb[0].mxu0
      %v759 = vpop.f32.mrb[0].mxu0
      %v760 = vadd.f32 0.0, %v759
      %v761 = vpop.f32.mrb[0].mxu0
      %762 = vmatprep.mubr.bf16.mxu0 0
      %763 = vmatmul.mubr.bf16.gmra.mrb[0].mxu0 %v510
      %v764 = vpop.f32.mrb[0].mxu0
      %v765 = vadd.f32 0.0, %v764
      %v766 = vpop.f32.mrb[0].mxu0
      %v767 = vpop.f32.mrb[0].mxu0
      %v768 = vadd.f32 0.0, %v767
      %v769 = vpop.f32.mrb[0].mxu0
      %770 = vmatprep.mubr.bf16.mxu0 0
      %771 = vmatmul.mubr.bf16.gmra.mrb[0].mxu0 %v513
      %v772 = vpop.f32.mrb[0].mxu0
      %v773 = vadd.f32 0.0, %v772
      %v774 = vpop.f32.mrb[0].mxu0
      %v775 = vpop.f32.mrb[0].mxu0
      %v776 = vadd.f32 0.0, %v775
      %v777 = vpop.f32.mrb[0].mxu0
      %778 = vmatprep.mubr.bf16.mxu0 0
      %779 = vmatmul.mubr.bf16.gmra.mrb[0].mxu0 %v516
      %v780 = vpop.f32.mrb[0].mxu0
      %v781 = vadd.f32 0.0, %v780
      %v782 = vpop.f32.mrb[0].mxu0
      %v783 = vpop.f32.mrb[0].mxu0
      %v784 = vadd.f32 0.0, %v783
      %v785 = vpop.f32.mrb[0].mxu0
      %786 = vmatprep.mubr.bf16.mxu0 0
      %787 = vmatmul.mubr.bf16.gmra.mrb[0].mxu0 %v519
      %v788 = vpop.f32.mrb[0].mxu0
      %v789 = vadd.f32 0.0, %v788
      %v790 = vpop.f32.mrb[0].mxu0
      %v791 = vpop.f32.mrb[0].mxu0
      %v792 = vadd.f32 0.0, %v791
      %v793 = vpop.f32.mrb[0].mxu0
      %794 = vmatprep.mubr.bf16.mxu0 0
      %795 = vmatmul.mubr.bf16.gmra.mrb[0].mxu0 %v522
      %v796 = vpop.f32.mrb[0].mxu0
      %v797 = vadd.f32 0.0, %v796
      %v798 = vpop.f32.mrb[0].mxu0
      %v799 = vpop.f32.mrb[0].mxu0
      %v800 = vadd.f32 0.0, %v799
      %v801 = vpop.f32.mrb[0].mxu0
      %802 = vmatprep.mubr.bf16.mxu0 0
      %803 = vmatmul.mubr.bf16.gmra.mrb[0].mxu0 %v525
      %v804 = vpop.f32.mrb[0].mxu0
      %v805 = vadd.f32 0.0, %v804
      %v806 = vpop.f32.mrb[0].mxu0
      %v807 = vpop.f32.mrb[0].mxu0
      %v808 = vadd.f32 0.0, %v807
      %v809 = vpop.f32.mrb[0].mxu0
      %810 = vmatprep.mubr.bf16.mxu0 0
      %811 = vmatmul.mubr.bf16.gmra.mrb[0].mxu0 %v528
      %v812 = vpop.f32.mrb[0].mxu0
      %v813 = vadd.f32 0.0, %v812
      %v814 = vpop.f32.mrb[0].mxu0
      %v815 = vpop.f32.mrb[0].mxu0
      %v816 = vadd.f32 0.0, %v815
      %v817 = vpop.f32.mrb[0].mxu0
      %818 = vdwg.mxu0
      %vm819 = vcmp.gt.f32.partialorder %v565, 0.0
      %vm820 = vcmp.gt.f32.partialorder %v568, 0.0
      %vm821 = vcmp.gt.f32.partialorder %v573, 0.0
      %vm822 = vcmp.gt.f32.partialorder %v576, 0.0
      %vm823 = vcmp.gt.f32.partialorder %v581, 0.0
      %vm824 = vcmp.gt.f32.partialorder %v584, 0.0
      %vm825 = vcmp.gt.f32.partialorder %v589, 0.0
      %vm826 = vcmp.gt.f32.partialorder %v592, 0.0
      %vm827 = vcmp.gt.f32.partialorder %v597, 0.0
      %vm828 = vcmp.gt.f32.partialorder %v600, 0.0
      %vm829 = vcmp.gt.f32.partialorder %v605, 0.0
      %vm830 = vcmp.gt.f32.partialorder %v608, 0.0
      %vm831 = vcmp.gt.f32.partialorder %v613, 0.0
      %vm832 = vcmp.gt.f32.partialorder %v616, 0.0
      %vm833 = vcmp.gt.f32.partialorder %v621, 0.0
      %vm834 = vcmp.gt.f32.partialorder %v624, 0.0
      %vm835 = vcmp.gt.f32.partialorder %v629, 0.0
      %vm836 = vcmp.gt.f32.partialorder %v632, 0.0
      %vm837 = vcmp.gt.f32.partialorder %v637, 0.0
      %vm838 = vcmp.gt.f32.partialorder %v640, 0.0
      %vm839 = vcmp.gt.f32.partialorder %v645, 0.0
      %vm840 = vcmp.gt.f32.partialorder %v648, 0.0
      %vm841 = vcmp.gt.f32.partialorder %v653, 0.0
      %vm842 = vcmp.gt.f32.partialorder %v656, 0.0
      %vm843 = vcmp.gt.f32.partialorder %v661, 0.0
      %vm844 = vcmp.gt.f32.partialorder %v664, 0.0
      %vm845 = vcmp.gt.f32.partialorder %v669, 0.0
      %vm846 = vcmp.gt.f32.partialorder %v672, 0.0
      %vm847 = vcmp.gt.f32.partialorder %v677, 0.0
      %vm848 = vcmp.gt.f32.partialorder %v680, 0.0
      %vm849 = vcmp.gt.f32.partialorder %v685, 0.0
      %vm850 = vcmp.gt.f32.partialorder %v688, 0.0
      %vm851 = vcmp.gt.f32.partialorder %v693, 0.0
      %vm852 = vcmp.gt.f32.partialorder %v696, 0.0
      %vm853 = vcmp.gt.f32.partialorder %v701, 0.0
      %vm854 = vcmp.gt.f32.partialorder %v704, 0.0
      %vm855 = vcmp.gt.f32.partialorder %v709, 0.0
      %vm856 = vcmp.gt.f32.partialorder %v712, 0.0
      %vm857 = vcmp.gt.f32.partialorder %v717, 0.0
      %vm858 = vcmp.gt.f32.partialorder %v720, 0.0
      %vm859 = vcmp.gt.f32.partialorder %v725, 0.0
      %vm860 = vcmp.gt.f32.partialorder %v728, 0.0
      %vm861 = vcmp.gt.f32.partialorder %v733, 0.0
      %vm862 = vcmp.gt.f32.partialorder %v736, 0.0
      %vm863 = vcmp.gt.f32.partialorder %v741, 0.0
      %vm864 = vcmp.gt.f32.partialorder %v744, 0.0
      %vm865 = vcmp.gt.f32.partialorder %v749, 0.0
      %vm866 = vcmp.gt.f32.partialorder %v752, 0.0
      %vm867 = vcmp.gt.f32.partialorder %v757, 0.0
      %vm868 = vcmp.gt.f32.partialorder %v760, 0.0
      %vm869 = vcmp.gt.f32.partialorder %v765, 0.0
      %vm870 = vcmp.gt.f32.partialorder %v768, 0.0
      %vm871 = vcmp.gt.f32.partialorder %v773, 0.0
      %vm872 = vcmp.gt.f32.partialorder %v776, 0.0
      %vm873 = vcmp.gt.f32.partialorder %v781, 0.0
      %vm874 = vcmp.gt.f32.partialorder %v784, 0.0
      %vm875 = vcmp.gt.f32.partialorder %v789, 0.0
      %vm876 = vcmp.gt.f32.partialorder %v792, 0.0
      %vm877 = vcmp.gt.f32.partialorder %v797, 0.0
      %vm878 = vcmp.gt.f32.partialorder %v800, 0.0
      %vm879 = vcmp.gt.f32.partialorder %v805, 0.0
      %vm880 = vcmp.gt.f32.partialorder %v808, 0.0
      %vm881 = vcmp.gt.f32.partialorder %v813, 0.0
      %vm882 = vcmp.gt.f32.partialorder %v816, 0.0
      %v883 = vmul.f32 %v565, 0.2
      %v884 = vmul.f32 %v568, 0.2
      %v885 = vmul.f32 %v573, 0.2
      %v886 = vmul.f32 %v576, 0.2
      %v887 = vmul.f32 %v581, 0.2
      %v888 = vmul.f32 %v584, 0.2
      %v889 = vmul.f32 %v589, 0.2
      %v890 = vmul.f32 %v592, 0.2
      %v891 = vmul.f32 %v597, 0.2
      %v892 = vmul.f32 %v600, 0.2
      %v893 = vmul.f32 %v605, 0.2
      %v894 = vmul.f32 %v608, 0.2
      %v895 = vmul.f32 %v613, 0.2
      %v896 = vmul.f32 %v616, 0.2
      %v897 = vmul.f32 %v621, 0.2
      %v898 = vmul.f32 %v624, 0.2
      %v899 = vmul.f32 %v629, 0.2
      %v900 = vmul.f32 %v632, 0.2
      %v901 = vmul.f32 %v637, 0.2
      %v902 = vmul.f32 %v640, 0.2
      %v903 = vmul.f32 %v645, 0.2
      %v904 = vmul.f32 %v648, 0.2
      %v905 = vmul.f32 %v653, 0.2
      %v906 = vmul.f32 %v656, 0.2
      %v907 = vmul.f32 %v661, 0.2
      %v908 = vmul.f32 %v664, 0.2
      %v909 = vmul.f32 %v669, 0.2
      %v910 = vmul.f32 %v672, 0.2
      %v911 = vmul.f32 %v677, 0.2
      %v912 = vmul.f32 %v680, 0.2
      %v913 = vmul.f32 %v685, 0.2
      %v914 = vmul.f32 %v688, 0.2
      %v915 = vmul.f32 %v693, 0.2
      %v916 = vmul.f32 %v696, 0.2
      %v917 = vmul.f32 %v701, 0.2
      %v918 = vmul.f32 %v704, 0.2
      %v919 = vmul.f32 %v709, 0.2
      %v920 = vmul.f32 %v712, 0.2
      %v921 = vmul.f32 %v717, 0.2
      %v922 = vmul.f32 %v720, 0.2
      %v923 = vmul.f32 %v725, 0.2
      %v924 = vmul.f32 %v728, 0.2
      %v925 = vmul.f32 %v733, 0.2
      %v926 = vmul.f32 %v736, 0.2
      %v927 = vmul.f32 %v741, 0.2
      %v928 = vmul.f32 %v744, 0.2
      %v929 = vmul.f32 %v749, 0.2
      %v930 = vmul.f32 %v752, 0.2
      %v931 = vmul.f32 %v757, 0.2
      %v932 = vmul.f32 %v760, 0.2
      %v933 = vmul.f32 %v765, 0.2
      %v934 = vmul.f32 %v768, 0.2
      %v935 = vmul.f32 %v773, 0.2
      %v936 = vmul.f32 %v776, 0.2
      %v937 = vmul.f32 %v781, 0.2
      %v938 = vmul.f32 %v784, 0.2
      %v939 = vmul.f32 %v789, 0.2
      %v940 = vmul.f32 %v792, 0.2
      %v941 = vmul.f32 %v797, 0.2
      %v942 = vmul.f32 %v800, 0.2
      %v943 = vmul.f32 %v805, 0.2
      %v944 = vmul.f32 %v808, 0.2
      %v945 = vmul.f32 %v813, 0.2
      %v946 = vmul.f32 %v816, 0.2
      %v947 = vsel %vm819, %v565, %v883
      %v948 = vsel %vm820, %v568, %v884
      %v949 = vsel %vm821, %v573, %v885
      %v950 = vsel %vm822, %v576, %v886
      %v951 = vsel %vm823, %v581, %v887
      %v952 = vsel %vm824, %v584, %v888
      %v953 = vsel %vm825, %v589, %v889
      %v954 = vsel %vm826, %v592, %v890
      %v955 = vsel %vm827, %v597, %v891
      %v956 = vsel %vm828, %v600, %v892
      %v957 = vsel %vm829, %v605, %v893
      %v958 = vsel %vm830, %v608, %v894
      %v959 = vsel %vm831, %v613, %v895
      %v960 = vsel %vm832, %v616, %v896
      %v961 = vsel %vm833, %v621, %v897
      %v962 = vsel %vm834, %v624, %v898
      %v963 = vsel %vm835, %v629, %v899
      %v964 = vsel %vm836, %v632, %v900
      %v965 = vsel %vm837, %v637, %v901
      %v966 = vsel %vm838, %v640, %v902
      %v967 = vsel %vm839, %v645, %v903
      %v968 = vsel %vm840, %v648, %v904
      %v969 = vsel %vm841, %v653, %v905
      %v970 = vsel %vm842, %v656, %v906
      %v971 = vsel %vm843, %v661, %v907
      %v972 = vsel %vm844, %v664, %v908
      %v973 = vsel %vm845, %v669, %v909
      %v974 = vsel %vm846, %v672, %v910
      %v975 = vsel %vm847, %v677, %v911
      %v976 = vsel %vm848, %v680, %v912
      %v977 = vsel %vm849, %v685, %v913
      %v978 = vsel %vm850, %v688, %v914
      %v979 = vsel %vm851, %v693, %v915
      %v980 = vsel %vm852, %v696, %v916
      %v981 = vsel %vm853, %v701, %v917
      %v982 = vsel %vm854, %v704, %v918
      %v983 = vsel %vm855, %v709, %v919
      %v984 = vsel %vm856, %v712, %v920
      %v985 = vsel %vm857, %v717, %v921
      %v986 = vsel %vm858, %v720, %v922
      %v987 = vsel %vm859, %v725, %v923
      %v988 = vsel %vm860, %v728, %v924
      %v989 = vsel %vm861, %v733, %v925
      %v990 = vsel %vm862, %v736, %v926
      %v991 = vsel %vm863, %v741, %v927
      %v992 = vsel %vm864, %v744, %v928
      %v993 = vsel %vm865, %v749, %v929
      %v994 = vsel %vm866, %v752, %v930
      %v995 = vsel %vm867, %v757, %v931
      %v996 = vsel %vm868, %v760, %v932
      %v997 = vsel %vm869, %v765, %v933
      %v998 = vsel %vm870, %v768, %v934
      %v999 = vsel %vm871, %v773, %v935
      %v1000 = vsel %vm872, %v776, %v936
      %v1001 = vsel %vm873, %v781, %v937
      %v1002 = vsel %vm874, %v784, %v938
      %v1003 = vsel %vm875, %v789, %v939
      %v1004 = vsel %vm876, %v792, %v940
      %v1005 = vsel %vm877, %v797, %v941
      %v1006 = vsel %vm878, %v800, %v942
      %v1007 = vsel %vm879, %v805, %v943
      %v1008 = vsel %vm880, %v808, %v944
      %v1009 = vsel %vm881, %v813, %v945
      %v1010 = vsel %vm882, %v816, %v946
      %v1011 = vpack.c.bf16 %v948, %v947
      %v1012 = vpack.c.bf16 %v950, %v949
      %v1013 = vpack.c.bf16 %v952, %v951
      %v1014 = vpack.c.bf16 %v954, %v953
      %v1015 = vpack.c.bf16 %v956, %v955
      %v1016 = vpack.c.bf16 %v958, %v957
      %v1017 = vpack.c.bf16 %v960, %v959
      %v1018 = vpack.c.bf16 %v962, %v961
      %v1019 = vpack.c.bf16 %v964, %v963
      %v1020 = vpack.c.bf16 %v966, %v965
      %v1021 = vpack.c.bf16 %v968, %v967
      %v1022 = vpack.c.bf16 %v970, %v969
      %v1023 = vpack.c.bf16 %v972, %v971
      %v1024 = vpack.c.bf16 %v974, %v973
      %v1025 = vpack.c.bf16 %v976, %v975
      %v1026 = vpack.c.bf16 %v978, %v977
      %v1027 = vpack.c.bf16 %v980, %v979
      %v1028 = vpack.c.bf16 %v982, %v981
      %v1029 = vpack.c.bf16 %v984, %v983
      %v1030 = vpack.c.bf16 %v986, %v985
      %v1031 = vpack.c.bf16 %v988, %v987
      %v1032 = vpack.c.bf16 %v990, %v989
      %v1033 = vpack.c.bf16 %v992, %v991
      %v1034 = vpack.c.bf16 %v994, %v993
      %v1035 = vpack.c.bf16 %v996, %v995
      %v1036 = vpack.c.bf16 %v998, %v997
      %v1037 = vpack.c.bf16 %v1000, %v999
      %v1038 = vpack.c.bf16 %v1002, %v1001
      %v1039 = vpack.c.bf16 %v1004, %v1003
      %v1040 = vpack.c.bf16 %v1006, %v1005
      %v1041 = vpack.c.bf16 %v1008, %v1007
      %v1042 = vpack.c.bf16 %v1010, %v1009
      %v1075 = vunpack.c.l.b16 %v1011
      %v1076 = vunpack.c.h.b16 %v1011
      %v1077 = vunpack.c.l.b16 %v1012
      %v1078 = vunpack.c.h.b16 %v1012
      %v1079 = vunpack.c.l.b16 %v1013
      %v1080 = vunpack.c.h.b16 %v1013
      %v1081 = vunpack.c.l.b16 %v1014
      %v1082 = vunpack.c.h.b16 %v1014
      %v1083 = vunpack.c.l.b16 %v1015
      %v1084 = vunpack.c.h.b16 %v1015
      %v1085 = vunpack.c.l.b16 %v1016
      %v1086 = vunpack.c.h.b16 %v1016
      %v1087 = vunpack.c.l.b16 %v1017
      %v1088 = vunpack.c.h.b16 %v1017
      %v1089 = vunpack.c.l.b16 %v1018
      %v1090 = vunpack.c.h.b16 %v1018
      %v1091 = vunpack.c.l.b16 %v1019
      %v1092 = vunpack.c.h.b16 %v1019
      %v1093 = vunpack.c.l.b16 %v1020
      %v1094 = vunpack.c.h.b16 %v1020
      %v1095 = vunpack.c.l.b16 %v1021
      %v1096 = vunpack.c.h.b16 %v1021
      %v1097 = vunpack.c.l.b16 %v1022
      %v1098 = vunpack.c.h.b16 %v1022
      %v1099 = vunpack.c.l.b16 %v1023
      %v1100 = vunpack.c.h.b16 %v1023
      %v1101 = vunpack.c.l.b16 %v1024
      %v1102 = vunpack.c.h.b16 %v1024
      %v1103 = vunpack.c.l.b16 %v1025
      %v1104 = vunpack.c.h.b16 %v1025
      %v1105 = vunpack.c.l.b16 %v1026
      %v1106 = vunpack.c.h.b16 %v1026
      %v1107 = vunpack.c.l.b16 %v1027
      %v1108 = vunpack.c.h.b16 %v1027
      %v1109 = vunpack.c.l.b16 %v1028
      %v1110 = vunpack.c.h.b16 %v1028
      %v1111 = vunpack.c.l.b16 %v1029
      %v1112 = vunpack.c.h.b16 %v1029
      %v1113 = vunpack.c.l.b16 %v1030
      %v1114 = vunpack.c.h.b16 %v1030
      %v1115 = vunpack.c.l.b16 %v1031
      %v1116 = vunpack.c.h.b16 %v1031
      %v1117 = vunpack.c.l.b16 %v1032
      %v1118 = vunpack.c.h.b16 %v1032
      %v1119 = vunpack.c.l.b16 %v1033
      %v1120 = vunpack.c.h.b16 %v1033
      %v1121 = vunpack.c.l.b16 %v1034
      %v1122 = vunpack.c.h.b16 %v1034
      %v1123 = vunpack.c.l.b16 %v1035
      %v1124 = vunpack.c.h.b16 %v1035
      %v1125 = vunpack.c.l.b16 %v1036
      %v1126 = vunpack.c.h.b16 %v1036
      %v1127 = vunpack.c.l.b16 %v1037
      %v1128 = vunpack.c.h.b16 %v1037
      %v1129 = vunpack.c.l.b16 %v1038
      %v1130 = vunpack.c.h.b16 %v1038
      %v1131 = vunpack.c.l.b16 %v1039
      %v1132 = vunpack.c.h.b16 %v1039
      %v1133 = vunpack.c.l.b16 %v1040
      %v1134 = vunpack.c.h.b16 %v1040
      %v1135 = vunpack.c.l.b16 %v1041
      %v1136 = vunpack.c.h.b16 %v1041
      %v1137 = vunpack.c.l.b16 %v1042
      %v1138 = vunpack.c.h.b16 %v1042
      %v1139 = vpack.c.b16 %v1075, %v1075
      %v1140 = vpack.c.b16 %v1076, %v1076
      %v1141 = vpack.c.b16 %v1077, %v1077
      %v1142 = vpack.c.b16 %v1078, %v1078
      %v1143 = vpack.c.b16 %v1079, %v1079
      %v1144 = vpack.c.b16 %v1080, %v1080
      %v1145 = vpack.c.b16 %v1081, %v1081
      %v1146 = vpack.c.b16 %v1082, %v1082
      %v1147 = vpack.c.b16 %v1083, %v1083
      %v1148 = vpack.c.b16 %v1084, %v1084
      %v1149 = vpack.c.b16 %v1085, %v1085
      %v1150 = vpack.c.b16 %v1086, %v1086
      %v1151 = vpack.c.b16 %v1087, %v1087
      %v1152 = vpack.c.b16 %v1088, %v1088
      %v1153 = vpack.c.b16 %v1089, %v1089
      %v1154 = vpack.c.b16 %v1090, %v1090
      %v1155 = vpack.c.b16 %v1091, %v1091
      %v1156 = vpack.c.b16 %v1092, %v1092
      %v1157 = vpack.c.b16 %v1093, %v1093
      %v1158 = vpack.c.b16 %v1094, %v1094
      %v1159 = vpack.c.b16 %v1095, %v1095
      %v1160 = vpack.c.b16 %v1096, %v1096
      %v1161 = vpack.c.b16 %v1097, %v1097
      %v1162 = vpack.c.b16 %v1098, %v1098
      %v1163 = vpack.c.b16 %v1099, %v1099
      %v1164 = vpack.c.b16 %v1100, %v1100
      %v1165 = vpack.c.b16 %v1101, %v1101
      %v1166 = vpack.c.b16 %v1102, %v1102
      %v1167 = vpack.c.b16 %v1103, %v1103
      %v1168 = vpack.c.b16 %v1104, %v1104
      %v1169 = vpack.c.b16 %v1105, %v1105
      %v1170 = vpack.c.b16 %v1106, %v1106
      %v1171 = vpack.c.b16 %v1107, %v1107
      %v1172 = vpack.c.b16 %v1108, %v1108
      %v1173 = vpack.c.b16 %v1109, %v1109
      %v1174 = vpack.c.b16 %v1110, %v1110
      %v1175 = vpack.c.b16 %v1111, %v1111
      %v1176 = vpack.c.b16 %v1112, %v1112
      %v1177 = vpack.c.b16 %v1113, %v1113
      %v1178 = vpack.c.b16 %v1114, %v1114
      %v1179 = vpack.c.b16 %v1115, %v1115
      %v1180 = vpack.c.b16 %v1116, %v1116
      %v1181 = vpack.c.b16 %v1117, %v1117
      %v1182 = vpack.c.b16 %v1118, %v1118
      %v1183 = vpack.c.b16 %v1119, %v1119
      %v1184 = vpack.c.b16 %v1120, %v1120
      %v1185 = vpack.c.b16 %v1121, %v1121
      %v1186 = vpack.c.b16 %v1122, %v1122
      %v1187 = vpack.c.b16 %v1123, %v1123
      %v1188 = vpack.c.b16 %v1124, %v1124
      %v1189 = vpack.c.b16 %v1125, %v1125
      %v1190 = vpack.c.b16 %v1126, %v1126
      %v1191 = vpack.c.b16 %v1127, %v1127
      %v1192 = vpack.c.b16 %v1128, %v1128
      %v1193 = vpack.c.b16 %v1129, %v1129
      %v1194 = vpack.c.b16 %v1130, %v1130
      %v1195 = vpack.c.b16 %v1131, %v1131
      %v1196 = vpack.c.b16 %v1132, %v1132
      %v1197 = vpack.c.b16 %v1133, %v1133
      %v1198 = vpack.c.b16 %v1134, %v1134
      %v1199 = vpack.c.b16 %v1135, %v1135
      %v1200 = vpack.c.b16 %v1136, %v1136
      %v1201 = vpack.c.b16 %v1137, %v1137
      %v1202 = vpack.c.b16 %v1138, %v1138
      %1267 = vst [vmem:[%s182] sm:$0xf] %v1139
      %1268 = vst [vmem:[%s182 + $0x4] sm:$0xf] %v1140
      %1269 = vst [vmem:[%s182 + $0x8] sm:$0xf] %v1141
      %1270 = vst [vmem:[%s182 + $0xc] sm:$0xf] %v1142
      %1271 = vst [vmem:[%s182 + $0x10] sm:$0xf] %v1143
      %1272 = vst [vmem:[%s182 + $0x14] sm:$0xf] %v1144
      %1273 = vst [vmem:[%s182 + $0x18] sm:$0xf] %v1145
      %1274 = vst [vmem:[%s182 + $0x1c] sm:$0xf] %v1146
      %1275 = vst [vmem:[%s182 + $0x20] sm:$0xf] %v1147
      %1276 = vst [vmem:[%s182 + $0x24] sm:$0xf] %v1148
      %1277 = vst [vmem:[%s182 + $0x28] sm:$0xf] %v1149
      %1278 = vst [vmem:[%s182 + $0x2c] sm:$0xf] %v1150
      %1279 = vst [vmem:[%s182 + $0x30] sm:$0xf] %v1151
      %1280 = vst [vmem:[%s182 + $0x34] sm:$0xf] %v1152
      %1281 = vst [vmem:[%s182 + $0x38] sm:$0xf] %v1153
      %1282 = vst [vmem:[%s182 + $0x3c] sm:$0xf] %v1154
      %1283 = vst [vmem:[%s182 + $0x40] sm:$0xf] %v1155
      %1284 = vst [vmem:[%s182 + $0x44] sm:$0xf] %v1156
      %1285 = vst [vmem:[%s182 + $0x48] sm:$0xf] %v1157
      %1286 = vst [vmem:[%s182 + $0x4c] sm:$0xf] %v1158
      %1287 = vst [vmem:[%s182 + $0x50] sm:$0xf] %v1159
      %1288 = vst [vmem:[%s182 + $0x54] sm:$0xf] %v1160
      %1289 = vst [vmem:[%s182 + $0x58] sm:$0xf] %v1161
      %1290 = vst [vmem:[%s182 + $0x5c] sm:$0xf] %v1162
      %1291 = vst [vmem:[%s182 + $0x60] sm:$0xf] %v1163
      %1292 = vst [vmem:[%s182 + $0x64] sm:$0xf] %v1164
      %1293 = vst [vmem:[%s182 + $0x68] sm:$0xf] %v1165
      %1294 = vst [vmem:[%s182 + $0x6c] sm:$0xf] %v1166
      %1295 = vst [vmem:[%s182 + $0x70] sm:$0xf] %v1167
      %1296 = vst [vmem:[%s182 + $0x74] sm:$0xf] %v1168
      %1297 = vst [vmem:[%s182 + $0x78] sm:$0xf] %v1169
      %1298 = vst [vmem:[%s182 + $0x7c] sm:$0xf] %v1170
      %1299 = vst [vmem:[%s182 + $0x80] sm:$0xf] %v1171
      %1300 = vst [vmem:[%s182 + $0x84] sm:$0xf] %v1172
      %1301 = vst [vmem:[%s182 + $0x88] sm:$0xf] %v1173
      %1302 = vst [vmem:[%s182 + $0x8c] sm:$0xf] %v1174
      %1303 = vst [vmem:[%s182 + $0x90] sm:$0xf] %v1175
      %1304 = vst [vmem:[%s182 + $0x94] sm:$0xf] %v1176
      %1305 = vst [vmem:[%s182 + $0x98] sm:$0xf] %v1177
      %1306 = vst [vmem:[%s182 + $0x9c] sm:$0xf] %v1178
      %1307 = vst [vmem:[%s182 + $0xa0] sm:$0xf] %v1179
      %1308 = vst [vmem:[%s182 + $0xa4] sm:$0xf] %v1180
      %1309 = vst [vmem:[%s182 + $0xa8] sm:$0xf] %v1181
      %1310 = vst [vmem:[%s182 + $0xac] sm:$0xf] %v1182
      %1311 = vst [vmem:[%s182 + $0xb0] sm:$0xf] %v1183
      %1312 = vst [vmem:[%s182 + $0xb4] sm:$0xf] %v1184
      %1313 = vst [vmem:[%s182 + $0xb8] sm:$0xf] %v1185
      %1314 = vst [vmem:[%s182 + $0xbc] sm:$0xf] %v1186
      %1315 = vst [vmem:[%s182 + $0xc0] sm:$0xf] %v1187
      %1316 = vst [vmem:[%s182 + $0xc4] sm:$0xf] %v1188
      %1317 = vst [vmem:[%s182 + $0xc8] sm:$0xf] %v1189
      %1318 = vst [vmem:[%s182 + $0xcc] sm:$0xf] %v1190
      %1319 = vst [vmem:[%s182 + $0xd0] sm:$0xf] %v1191
      %1320 = vst [vmem:[%s182 + $0xd4] sm:$0xf] %v1192
      %1321 = vst [vmem:[%s182 + $0xd8] sm:$0xf] %v1193
      %1322 = vst [vmem:[%s182 + $0xdc] sm:$0xf] %v1194
      %1323 = vst [vmem:[%s182 + $0xe0] sm:$0xf] %v1195
      %1324 = vst [vmem:[%s182 + $0xe4] sm:$0xf] %v1196
      %1325 = vst [vmem:[%s182 + $0xe8] sm:$0xf] %v1197
      %1326 = vst [vmem:[%s182 + $0xec] sm:$0xf] %v1198
      %1327 = vst [vmem:[%s182 + $0xf0] sm:$0xf] %v1199
      %1328 = vst [vmem:[%s182 + $0xf4] sm:$0xf] %v1200
      %1329 = vst [vmem:[%s182 + $0xf8] sm:$0xf] %v1201
      %1330 = vst [vmem:[%s182 + $0xfc] sm:$0xf] %v1202
      %s1331 = smul.u32 64, %s17
      %p1332 = scmp.lt.s32.totalorder %s1331, 255
      %s1333 = scalar_select %p1332, %s1331, 255
      %p1334 = scmp.lt.s32.totalorder %s18, 0
      %s1335 = scalar_select %p1334, %s18, 0
      %s1336 = sadd.s32 %s1335, %s1333
      %s1337 = smul.addr %s1336, 4
      %s1338 = scalar_lea.vmem %s2, %s1337
      // Predicated region
      $region29: #{dcgan_d_forward.8} parent=27 // pred_check
        %p1339 = pneg %p97
      $region30: #{dcgan_d_forward.8} parent=27 // pred_check_branch
        %1341 = sbr.rel (%p1339) target = $region32
      $region31: #{dcgan_d_forward.8} parent=27 // pred_region
        %s1342 = smul.u32 64, %s17
      $region32: #{dcgan_d_forward.8} parent=27 // pred_fallthru
        _
    $region28: #{dcgan_d_forward.8} parent=5 // pred_fallthru
      _
    %p1343 = scmp.le.s32.totalorder 2, %s8
    // Predicated region
    $region33: #{dcgan_d_forward.8} parent=5 // pred_check
      %p1344 = pneg %p1343
    $region34: #{dcgan_d_forward.8} parent=5 // pred_check_branch
      %1346 = sbr.rel (%p1344) target = $region36
    $region35: #{dcgan_d_forward.8} parent=5 // pred_region
      %s1347 = ssub.s32 %s8, 2
      // Predicated region
      $region37: #{dcgan_d_forward.8} parent=35 // pred_check
        %p1348 = pneg %p103
      $region38: #{dcgan_d_forward.8} parent=35 // pred_check_branch
        %1350 = sbr.rel (%p1348) target = $region40
      $region39: #{dcgan_d_forward.8} parent=35 // pred_region
        %s1351 = smul.u32 64, %s19
        %p1352 = scmp.lt.s32.totalorder %s1351, 255
        %s1353 = scalar_select %p1352, %s1351, 255
        %p1354 = scmp.lt.s32.totalorder %s20, 0
        %s1355 = scalar_select %p1354, %s20, 0
        %s1356 = sadd.s32 %s1355, %s1353
        %s1357 = smul.addr %s1356, 4
        %s1358 = scalar_lea.vmem %s2, %s1357
      $region40: #{dcgan_d_forward.8} parent=35 // pred_fallthru
        _
    $region36: #{dcgan_d_forward.8} parent=5 // pred_fallthru
      _
  $region6: #{dcgan_d_forward.8} parent=0 // loop_footer
    %s12 = sadd.s32 1, %s8
  $region7: #{dcgan_d_forward.8} parent=0 // loop_footer_branch
    %7 = sbr.rel target = $region3
  $region8: #{dcgan_d_forward.8} parent=0 // loop_exit
    _

// kernel: dcgan_d_forward.9
$region0: #{dcgan_d_forward.9}
  #allocation0 [shape = 'u32[]', space=smem, size = 0x4, offset = 0x4, fixed_abs, tag = 'smem constant byte address 0x4 - core index']
  #allocation1 [shape = 'u32[144,128]{1,0:T(1,128)}', space=vmem, size = 0x12000, scoped, tag = 'internal scratch']
  %s0 = inlined_call_operand.vmem [shape: bf16[512,128], index: 0, kind: input, shape index: {}]
  %s1 = inlined_call_operand.vmem [shape: bf16[128,128], index: 1, kind: input, shape index: {}]
  %s2 = inlined_call_operand.vmem [shape: bf16[512,128], index: 2, kind: output, shape index: {0}]
  %s3 = inlined_call_operand.vmem [shape: f32[16,128], index: 3, kind: output, shape index: {1}]
  %s4 = inlined_call_operand.vmem [shape: f32[16,128], index: 4, kind: output, shape index: {2}]
  %5 = xla_tuple %s2, %s3, %s4
  %s6 = sld [smem:[#allocation0]]
  $region57: #{dcgan_d_forward.9} parent=0
    _
  %s8 = ssub.s32 1, %s6
  %s9 = scalar_select 0, %s8, %s6
  loop: start=0, step=1, limit=4
  $region2: #{dcgan_d_forward.9} parent=0 // loop_pre_header
    _
  $region3: #{dcgan_d_forward.9} parent=0 // loop_header
    %s11 = sphi 0, %s15
    %p12 = scmp.ge.s32.totalorder %s11, 4
    %s18 = sphi 0, %s30
    %s19 = sphi 0, %s26
    %s20 = sphi 0, %s18
    %s21 = sphi 0, %s19
    %s22 = sphi 0, %s20
    %s23 = sphi 0, %s21
    %s33 = sphi 0, %s35
    %s36 = sphi 0, %s33
    %s37 = sphi 0, %s36
    %s53 = sphi 0, %s37
    %s59 = sphi 0, %s61
    %s62 = sphi 0, %s59
    %s63 = sphi 0, %s62
    %s79 = sphi 0, %s63
    %s87 = sphi 0, %s89
    %s90 = sphi 0, %s87
    %s91 = sphi 0, %s90
    %s107 = sphi 0, %s91
    %s115 = sphi 0, %s117
    %s118 = sphi 0, %s115
    %s119 = sphi 0, %s118
    %s135 = sphi 0, %s119
    %s143 = sphi 0, %s145
    %s146 = sphi 0, %s143
    %s147 = sphi 0, %s146
    %s163 = sphi 0, %s147
  $region4: #{dcgan_d_forward.9} parent=0 // loop_header_branch
    %14 = sbr.rel (%p12) target = $region8
  $region5: #{dcgan_d_forward.9} parent=0 // loop_body
    %s16 = ssub.s32 %s11, 1
    %s17 = ssub.s32 %s11, 2
    %s24 = sadd.s32 1, %s19
    %p25 = scmp.ge.s32.totalorder %s24, 1
    %s26 = scalar_select %p25, 0, %s24
    %s27 = sadd.s32 1, %s18
    %s28 = scalar_select %p25, %s27, %s18
    %p29 = scmp.ge.s32.totalorder %s28, 2
    %s30 = scalar_select %p29, 0, %s28
    %s31 = ssub.s32 %s18, %s30
    %p32 = scmp.eq.s32.totalorder %s31, 0
    %s34 = sadd.s32 %s33, 1
    %s35 = scalar_select %p32, %s33, %s34
    %p38 = pneg %p32
    %p39 = scmp.eq.s32.totalorder %s11, 1
    %p40 = por %p38, %p39
    %p41 = scmp.ne.s32.totalorder %s33, %s36
    %p42 = scmp.eq.s32.totalorder %s11, 0
    %p43 = por %p41, %p42
    %p44 = scmp.ne.s32.totalorder %s33, %s36
    %p45 = scmp.eq.s32.totalorder %s16, 1
    %p46 = por %p44, %p45
    %p47 = scmp.ne.s32.totalorder %s36, %s37
    %p48 = scmp.eq.s32.totalorder %s16, 0
    %p49 = por %p47, %p48
    %p50 = scmp.ne.s32.totalorder %s36, %s37
    %p51 = scmp.eq.s32.totalorder %s17, 1
    %p52 = por %p50, %p51
    %p54 = scmp.ne.s32.totalorder %s37, %s53
    %p55 = scmp.eq.s32.totalorder %s17, 0
    %p56 = por %p54, %p55
    %s57 = ssub.s32 %s19, %s26
    %p58 = scmp.eq.s32.totalorder %s57, 0
    %s60 = sadd.s32 %s59, 1
    %s61 = scalar_select %p58, %s59, %s60
    %p64 = pneg %p58
    %p65 = scmp.eq.s32.totalorder %s11, 1
    %p66 = por %p64, %p65
    %p67 = scmp.ne.s32.totalorder %s59, %s62
    %p68 = scmp.eq.s32.totalorder %s11, 0
    %p69 = por %p67, %p68
    %p70 = scmp.ne.s32.totalorder %s59, %s62
    %p71 = scmp.eq.s32.totalorder %s16, 1
    %p72 = por %p70, %p71
    %p73 = scmp.ne.s32.totalorder %s62, %s63
    %p74 = scmp.eq.s32.totalorder %s16, 0
    %p75 = por %p73, %p74
    %p76 = scmp.ne.s32.totalorder %s62, %s63
    %p77 = scmp.eq.s32.totalorder %s17, 1
    %p78 = por %p76, %p77
    %p80 = scmp.ne.s32.totalorder %s63, %s79
    %p81 = scmp.eq.s32.totalorder %s17, 0
    %p82 = por %p80, %p81
    %s83 = ssub.s32 %s18, %s30
    %s84 = ssub.s32 %s19, %s26
    %s85 = sor.u32 %s83, %s84
    %p86 = scmp.eq.s32.totalorder %s85, 0
    %s88 = sadd.s32 %s87, 1
    %s89 = scalar_select %p86, %s87, %s88
    %p92 = pneg %p86
    %p93 = scmp.eq.s32.totalorder %s11, 1
    %p94 = por %p92, %p93
    %p95 = scmp.ne.s32.totalorder %s87, %s90
    %p96 = scmp.eq.s32.totalorder %s11, 0
    %p97 = por %p95, %p96
    %p98 = scmp.ne.s32.totalorder %s87, %s90
    %p99 = scmp.eq.s32.totalorder %s16, 1
    %p100 = por %p98, %p99
    %p101 = scmp.ne.s32.totalorder %s90, %s91
    %p102 = scmp.eq.s32.totalorder %s16, 0
    %p103 = por %p101, %p102
    %p104 = scmp.ne.s32.totalorder %s90, %s91
    %p105 = scmp.eq.s32.totalorder %s17, 1
    %p106 = por %p104, %p105
    %p108 = scmp.ne.s32.totalorder %s91, %s107
    %p109 = scmp.eq.s32.totalorder %s17, 0
    %p110 = por %p108, %p109
    %s111 = ssub.s32 %s18, %s30
    %s112 = ssub.s32 %s19, %s26
    %s113 = sor.u32 %s111, %s112
    %p114 = scmp.eq.s32.totalorder %s113, 0
    %s116 = sadd.s32 %s115, 1
    %s117 = scalar_select %p114, %s115, %s116
    %p120 = pneg %p114
    %p121 = scmp.eq.s32.totalorder %s11, 1
    %p122 = por %p120, %p121
    %p123 = scmp.ne.s32.totalorder %s115, %s118
    %p124 = scmp.eq.s32.totalorder %s11, 0
    %p125 = por %p123, %p124
    %p126 = scmp.ne.s32.totalorder %s115, %s118
    %p127 = scmp.eq.s32.totalorder %s16, 1
    %p128 = por %p126, %p127
    %p129 = scmp.ne.s32.totalorder %s118, %s119
    %p130 = scmp.eq.s32.totalorder %s16, 0
    %p131 = por %p129, %p130
    %p132 = scmp.ne.s32.totalorder %s118, %s119
    %p133 = scmp.eq.s32.totalorder %s17, 1
    %p134 = por %p132, %p133
    %p136 = scmp.ne.s32.totalorder %s119, %s135
    %p137 = scmp.eq.s32.totalorder %s17, 0
    %p138 = por %p136, %p137
    %s139 = ssub.s32 %s18, %s30
    %s140 = ssub.s32 %s19, %s26
    %s141 = sor.u32 %s139, %s140
    %p142 = scmp.eq.s32.totalorder %s141, 0
    %s144 = sadd.s32 %s143, 1
    %s145 = scalar_select %p142, %s143, %s144
    %p148 = pneg %p142
    %p149 = scmp.eq.s32.totalorder %s11, 1
    %p150 = por %p148, %p149
    %p151 = scmp.ne.s32.totalorder %s143, %s146
    %p152 = scmp.eq.s32.totalorder %s11, 0
    %p153 = por %p151, %p152
    %p154 = scmp.ne.s32.totalorder %s143, %s146
    %p155 = scmp.eq.s32.totalorder %s16, 1
    %p156 = por %p154, %p155
    %p157 = scmp.ne.s32.totalorder %s146, %s147
    %p158 = scmp.eq.s32.totalorder %s16, 0
    %p159 = por %p157, %p158
    %p160 = scmp.ne.s32.totalorder %s146, %s147
    %p161 = scmp.eq.s32.totalorder %s17, 1
    %p162 = por %p160, %p161
    %p164 = scmp.ne.s32.totalorder %s147, %s163
    %p165 = scmp.eq.s32.totalorder %s17, 0
    %p166 = por %p164, %p165
    %p167 = scmp.le.s32.totalorder 1, %s11
    %p168 = scmp.lt.s32.totalorder %s11, 3
    %p169 = pnand %p167, %p168
    %p170 = pneg %p169
    // Predicated region
    $region9: #{dcgan_d_forward.9} parent=5 // pred_check
      _
    $region10: #{dcgan_d_forward.9} parent=5 // pred_check_branch
      %172 = sbr.rel (%p169) target = $region12
    $region11: #{dcgan_d_forward.9} parent=5 // pred_region
      %s173 = ssub.s32 %s11, 1
      // Predicated region
      $region13: #{dcgan_d_forward.9} parent=11 // pred_check
        %p174 = pneg %p75
      $region14: #{dcgan_d_forward.9} parent=11 // pred_check_branch
        %176 = sbr.rel (%p174) target = $region16
      $region15: #{dcgan_d_forward.9} parent=11 // pred_region
        %p177 = scmp.lt.s32.totalorder %s21, 0
        %s178 = scalar_select %p177, %s21, 0
        %s179 = smul.addr %s178, 4
        %s180 = scalar_lea.vmem %s1, %s179
      $region16: #{dcgan_d_forward.9} parent=11 // pred_fallthru
        _
    $region12: #{dcgan_d_forward.9} parent=5 // pred_fallthru
      _
    %p181 = scmp.lt.s32.totalorder %s11, 2
    // Predicated region
    $region17: #{dcgan_d_forward.9} parent=5 // pred_check
      %p182 = pneg %p181
    $region18: #{dcgan_d_forward.9} parent=5 // pred_check_branch
      %184 = sbr.rel (%p182) target = $region20
    $region19: #{dcgan_d_forward.9} parent=5 // pred_region
      // Predicated region
      $region21: #{dcgan_d_forward.9} parent=19 // pred_check
        %p185 = pneg %p43
      $region22: #{dcgan_d_forward.9} parent=19 // pred_check_branch
        %187 = sbr.rel (%p185) target = $region24
      $region23: #{dcgan_d_forward.9} parent=19 // pred_region
        %s188 = smul.u32 32, %s18
        %p189 = scmp.lt.s32.totalorder %s188, 63
        %s190 = scalar_select %p189, %s188, 63
        %s191 = smul.addr %s190, 4
        %s192 = scalar_lea.vmem %s0, %s191
        %s193 = smul.u32 32, %s18
      $region24: #{dcgan_d_forward.9} parent=19 // pred_fallthru
        _
    $region20: #{dcgan_d_forward.9} parent=5 // pred_fallthru
      _
    %p194 = scmp.le.s32.totalorder 1, %s11
    %p195 = scmp.lt.s32.totalorder %s11, 3
    %p196 = pnand %p194, %p195
    %p197 = pneg %p196
    // Predicated region
    $region25: #{dcgan_d_forward.9} parent=5 // pred_check
      _
    $region26: #{dcgan_d_forward.9} parent=5 // pred_check_branch
      %199 = sbr.rel (%p196) target = $region28
    $region27: #{dcgan_d_forward.9} parent=5 // pred_region
      %s200 = ssub.s32 %s11, 1
      %s201 = smul.u32 32, %s20
      %p202 = scmp.lt.s32.totalorder %s201, 63
      %s203 = scalar_select %p202, %s201, 63
      %s204 = smul.addr %s203, 4
      %s205 = scalar_lea.vmem %s0, %s204
      %p206 = pneg %p49
      %p207 = pneg %p46
      %p208 = scmp.lt.s32.totalorder %s21, 0
      %s209 = scalar_select %p208, %s21, 0
      %s210 = smul.addr %s209, 4
      %s211 = scalar_lea.vmem %s1, %s210
      %p212 = pneg %p75
      %p213 = pneg %p72
      %p214 = pneg %p103
      %p215 = pneg %p100
      %s216 = smul.u32 32, %s20
      %p217 = scmp.lt.s32.totalorder %s216, 63
      %s218 = scalar_select %p217, %s216, 63
      %p219 = scmp.lt.s32.totalorder %s21, 0
      %s220 = scalar_select %p219, %s21, 0
      %s221 = sadd.s32 %s220, %s218
      %s222 = smul.addr %s221, 4
      %s223 = scalar_lea.vmem %s2, %s222
      %p224 = pneg %p131
      %p225 = pneg %p128
      %p226 = scmp.lt.s32.totalorder %s20, 1
      %s227 = scalar_select %p226, %s20, 1
      %p228 = scmp.lt.s32.totalorder %s21, 0
      %s229 = scalar_select %p228, %s21, 0
      %s230 = sadd.s32 %s229, %s227
      %s231 = smul.addr %s230, 8
      %s232 = scalar_lea.vmem %s3, %s231
      %p233 = pneg %p159
      %p234 = pneg %p156
      %p235 = scmp.lt.s32.totalorder %s20, 1
      %s236 = scalar_select %p235, %s20, 1
      %p237 = scmp.lt.s32.totalorder %s21, 0
      %s238 = scalar_select %p237, %s21, 0
      %s239 = sadd.s32 %s238, %s236
      %s240 = smul.addr %s239, 8
      %s241 = scalar_lea.vmem %s4, %s240
      %s242 = smul.u32 32, %s20
      %p243 = scmp.lt.s32.totalorder %s242, 63
      %s244 = scalar_select %p243, %s242, 63
      %s245 = smul.addr %s244, 4
      %s246 = scalar_lea.vmem %s0, %s245
      %s247 = smul.u32 32, %s20
      %p248 = scmp.lt.s32.totalorder %s21, 0
      %s249 = scalar_select %p248, %s21, 0
      %s250 = smul.addr %s249, 4
      %s251 = scalar_lea.vmem %s1, %s250
      %s252 = smul.u32 32, %s20
      %p253 = scmp.lt.s32.totalorder %s252, 63
      %s254 = scalar_select %p253, %s252, 63
      %p255 = scmp.lt.s32.totalorder %s21, 0
      %s256 = scalar_select %p255, %s21, 0
      %s257 = sadd.s32 %s256, %s254
      %s258 = smul.addr %s257, 4
      %s259 = scalar_lea.vmem %s2, %s258
      %s260 = smul.u32 32, %s20
      %p261 = scmp.lt.s32.totalorder %s20, 1
      %s262 = scalar_select %p261, %s20, 1
      %p263 = scmp.lt.s32.totalorder %s21, 0
      %s264 = scalar_select %p263, %s21, 0
      %s265 = sadd.s32 %s264, %s262
      %s266 = smul.addr %s265, 8
      %s267 = scalar_lea.vmem %s3, %s266
      %p268 = scmp.lt.s32.totalorder %s20, 1
      %s269 = scalar_select %p268, %s20, 1
      %p270 = scmp.lt.s32.totalorder %s21, 0
      %s271 = scalar_select %p270, %s21, 0
      %s272 = sadd.s32 %s271, %s269
      %s273 = smul.addr %s272, 8
      %s274 = scalar_lea.vmem %s4, %s273
      %v276 = vld [vmem:[%s246] sm:$0xf]
      %v277 = vld [vmem:[%s246 + $0x4] sm:$0xf]
      %v278 = vld [vmem:[%s246 + $0x8] sm:$0xf]
      %v279 = vld [vmem:[%s246 + $0xc] sm:$0xf]
      %v280 = vld [vmem:[%s246 + $0x10] sm:$0xf]
      %v281 = vld [vmem:[%s246 + $0x14] sm:$0xf]
      %v282 = vld [vmem:[%s246 + $0x18] sm:$0xf]
      %v283 = vld [vmem:[%s246 + $0x1c] sm:$0xf]
      %v284 = vld [vmem:[%s246 + $0x20] sm:$0xf]
      %v285 = vld [vmem:[%s246 + $0x24] sm:$0xf]
      %v286 = vld [vmem:[%s246 + $0x28] sm:$0xf]
      %v287 = vld [vmem:[%s246 + $0x2c] sm:$0xf]
      %v288 = vld [vmem:[%s246 + $0x30] sm:$0xf]
      %v289 = vld [vmem:[%s246 + $0x34] sm:$0xf]
      %v290 = vld [vmem:[%s246 + $0x38] sm:$0xf]
      %v291 = vld [vmem:[%s246 + $0x3c] sm:$0xf]
      %v292 = vld [vmem:[%s246 + $0x40] sm:$0xf]
      %v293 = vld [vmem:[%s246 + $0x44] sm:$0xf]
      %v294 = vld [vmem:[%s246 + $0x48] sm:$0xf]
      %v295 = vld [vmem:[%s246 + $0x4c] sm:$0xf]
      %v296 = vld [vmem:[%s246 + $0x50] sm:$0xf]
      %v297 = vld [vmem:[%s246 + $0x54] sm:$0xf]
      %v298 = vld [vmem:[%s246 + $0x58] sm:$0xf]
      %v299 = vld [vmem:[%s246 + $0x5c] sm:$0xf]
      %v300 = vld [vmem:[%s246 + $0x60] sm:$0xf]
      %v301 = vld [vmem:[%s246 + $0x64] sm:$0xf]
      %v302 = vld [vmem:[%s246 + $0x68] sm:$0xf]
      %v303 = vld [vmem:[%s246 + $0x6c] sm:$0xf]
      %v304 = vld [vmem:[%s246 + $0x70] sm:$0xf]
      %v305 = vld [vmem:[%s246 + $0x74] sm:$0xf]
      %v306 = vld [vmem:[%s246 + $0x78] sm:$0xf]
      %v307 = vld [vmem:[%s246 + $0x7c] sm:$0xf]
      %v308 = vld [vmem:[%s251] sm:$0xf]
      %v309 = vld [vmem:[%s251 + $0x4] sm:$0xf]
      %v310 = vld [vmem:[%s251 + $0x8] sm:$0xf]
      %v311 = vld [vmem:[%s251 + $0xc] sm:$0xf]
      %v312 = vld [vmem:[%s251 + $0x10] sm:$0xf]
      %v313 = vld [vmem:[%s251 + $0x14] sm:$0xf]
      %v314 = vld [vmem:[%s251 + $0x18] sm:$0xf]
      %v315 = vld [vmem:[%s251 + $0x1c] sm:$0xf]
      %v316 = vld [vmem:[%s251 + $0x20] sm:$0xf]
      %v317 = vld [vmem:[%s251 + $0x24] sm:$0xf]
      %v318 = vld [vmem:[%s251 + $0x28] sm:$0xf]
      %v319 = vld [vmem:[%s251 + $0x2c] sm:$0xf]
      %v320 = vld [vmem:[%s251 + $0x30] sm:$0xf]
      %v321 = vld [vmem:[%s251 + $0x34] sm:$0xf]
      %v322 = vld [vmem:[%s251 + $0x38] sm:$0xf]
      %v323 = vld [vmem:[%s251 + $0x3c] sm:$0xf]
      %v356 = vunpack.c.l.b16 %v276
      %v357 = vunpack.c.l.b16 %v277
      %v358 = vunpack.c.l.b16 %v278
      %v359 = vunpack.c.l.b16 %v279
      %v360 = vunpack.c.l.b16 %v280
      %v361 = vunpack.c.l.b16 %v281
      %v362 = vunpack.c.l.b16 %v282
      %v363 = vunpack.c.l.b16 %v283
      %v364 = vunpack.c.l.b16 %v284
      %v365 = vunpack.c.l.b16 %v285
      %v366 = vunpack.c.l.b16 %v286
      %v367 = vunpack.c.l.b16 %v287
      %v368 = vunpack.c.l.b16 %v288
      %v369 = vunpack.c.l.b16 %v289
      %v370 = vunpack.c.l.b16 %v290
      %v371 = vunpack.c.l.b16 %v291
      %v372 = vunpack.c.l.b16 %v292
      %v373 = vunpack.c.l.b16 %v293
      %v374 = vunpack.c.l.b16 %v294
      %v375 = vunpack.c.l.b16 %v295
      %v376 = vunpack.c.l.b16 %v296
      %v377 = vunpack.c.l.b16 %v297
      %v378 = vunpack.c.l.b16 %v298
      %v379 = vunpack.c.l.b16 %v299
      %v380 = vunpack.c.l.b16 %v300
      %v381 = vunpack.c.l.b16 %v301
      %v382 = vunpack.c.l.b16 %v302
      %v383 = vunpack.c.l.b16 %v303
      %v384 = vunpack.c.l.b16 %v304
      %v385 = vunpack.c.l.b16 %v305
      %v386 = vunpack.c.l.b16 %v306
      %v387 = vunpack.c.l.b16 %v307
      %v388 = vpack.c.b16 %v357, %v356
      %v389 = vpack.c.b16 %v359, %v358
      %v390 = vpack.c.b16 %v361, %v360
      %v391 = vpack.c.b16 %v363, %v362
      %v392 = vpack.c.b16 %v365, %v364
      %v393 = vpack.c.b16 %v367, %v366
      %v394 = vpack.c.b16 %v369, %v368
      %v395 = vpack.c.b16 %v371, %v370
      %v396 = vpack.c.b16 %v373, %v372
      %v397 = vpack.c.b16 %v375, %v374
      %v398 = vpack.c.b16 %v377, %v376
      %v399 = vpack.c.b16 %v379, %v378
      %v400 = vpack.c.b16 %v381, %v380
      %v401 = vpack.c.b16 %v383, %v382
      %v402 = vpack.c.b16 %v385, %v384
      %v403 = vpack.c.b16 %v387, %v386
      %v436 = vunpack.c.l.b16 %v308
      %v437 = vunpack.c.l.b16 %v309
      %v438 = vunpack.c.l.b16 %v310
      %v439 = vunpack.c.l.b16 %v311
      %v440 = vunpack.c.l.b16 %v312
      %v441 = vunpack.c.l.b16 %v313
      %v442 = vunpack.c.l.b16 %v314
      %v443 = vunpack.c.l.b16 %v315
      %v444 = vunpack.c.l.b16 %v316
      %v445 = vunpack.c.l.b16 %v317
      %v446 = vunpack.c.l.b16 %v318
      %v447 = vunpack.c.l.b16 %v319
      %v448 = vunpack.c.l.b16 %v320
      %v449 = vunpack.c.l.b16 %v321
      %v450 = vunpack.c.l.b16 %v322
      %v451 = vunpack.c.l.b16 %v323
      %v452 = vpack.c.b16 %v437, %v436
      %v453 = vpack.c.b16 %v439, %v438
      %v454 = vpack.c.b16 %v441, %v440
      %v455 = vpack.c.b16 %v443, %v442
      %v456 = vpack.c.b16 %v445, %v444
      %v457 = vpack.c.b16 %v447, %v446
      %v458 = vpack.c.b16 %v449, %v448
      %v459 = vpack.c.b16 %v451, %v450
      %468 = vmatprep.subr.bf16.mxu0 0
      %469 = vmatpush1.bf16.msra.mxu0 %v452
      %470 = vmatprep.subr.bf16.mxu0 0
      %471 = vmatpush1.bf16.msra.mxu0 %v453
      %472 = vmatprep.subr.bf16.mxu0 0
      %473 = vmatpush1.bf16.msra.mxu0 %v454
      %474 = vmatprep.subr.bf16.mxu0 0
      %475 = vmatpush1.bf16.msra.mxu0 %v455
      %476 = vmatprep.subr.bf16.mxu0 0
      %477 = vmatpush1.bf16.msra.mxu0 %v456
      %478 = vmatprep.subr.bf16.mxu0 0
      %479 = vmatpush1.bf16.msra.mxu0 %v457
      %480 = vmatprep.subr.bf16.mxu0 0
      %481 = vmatpush1.bf16.msra.mxu0 %v458
      %482 = vmatprep.subr.bf16.mxu0 0
      %483 = vmatpush1.bf16.msra.mxu0 %v459
      %484 = vmatprep.subr.bf16.mxu0 0
      %485 = vmatpush1.bf16.msra.mxu0 0
      %486 = vmatprep.subr.bf16.mxu0 0
      %487 = vmatpush1.bf16.msra.mxu0 0
      %488 = vmatprep.subr.bf16.mxu0 0
      %489 = vmatpush1.bf16.msra.mxu0 0
      %490 = vmatprep.subr.bf16.mxu0 0
      %491 = vmatpush1.bf16.msra.mxu0 0
      %492 = vmatprep.subr.bf16.mxu0 0
      %493 = vmatpush1.bf16.msra.mxu0 0
      %494 = vmatprep.subr.bf16.mxu0 0
      %495 = vmatpush1.bf16.msra.mxu0 0
      %496 = vmatprep.subr.bf16.mxu0 0
      %497 = vmatpush1.bf16.msra.mxu0 0
      %498 = vmatprep.subr.bf16.mxu0 0
      %499 = vmatpush1.bf16.msra.mxu0 0
      %500 = vmatprep.mubr.bf16.mxu0 0
      %501 = vmatmul.mubr.bf16.gmra.mrb[0].mxu0 %v388
      %v502 = vpop.f32.mrb[0].mxu0
      %v503 = vadd.f32 0.0, %v502
      %v504 = vpop.f32.mrb[0].mxu0
      %v505 = vpop.f32.mrb[0].mxu0
      %v506 = vadd.f32 0.0, %v505
      %v507 = vpop.f32.mrb[0].mxu0
      %508 = vmatprep.mubr.bf16.mxu0 0
      %509 = vmatmul.mubr.bf16.gmra.mrb[0].mxu0 %v389
      %v510 = vpop.f32.mrb[0].mxu0
      %v511 = vadd.f32 0.0, %v510
      %v512 = vpop.f32.mrb[0].mxu0
      %v513 = vpop.f32.mrb[0].mxu0
      %v514 = vadd.f32 0.0, %v513
      %v515 = vpop.f32.mrb[0].mxu0
      %516 = vmatprep.mubr.bf16.mxu0 0
      %517 = vmatmul.mubr.bf16.gmra.mrb[0].mxu0 %v390
      %v518 = vpop.f32.mrb[0].mxu0
      %v519 = vadd.f32 0.0, %v518
      %v520 = vpop.f32.mrb[0].mxu0
      %v521 = vpop.f32.mrb[0].mxu0
      %v522 = vadd.f32 0.0, %v521
      %v523 = vpop.f32.mrb[0].mxu0
      %524 = vmatprep.mubr.bf16.mxu0 0
      %525 = vmatmul.mubr.bf16.gmra.mrb[0].mxu0 %v391
      %v526 = vpop.f32.mrb[0].mxu0
      %v527 = vadd.f32 0.0, %v526
      %v528 = vpop.f32.mrb[0].mxu0
      %v529 = vpop.f32.mrb[0].mxu0
      %v530 = vadd.f32 0.0, %v529
      %v531 = vpop.f32.mrb[0].mxu0
      %532 = vmatprep.mubr.bf16.mxu0 0
      %533 = vmatmul.mubr.bf16.gmra.mrb[0].mxu0 %v392
      %v534 = vpop.f32.mrb[0].mxu0
      %v535 = vadd.f32 0.0, %v534
      %v536 = vpop.f32.mrb[0].mxu0
      %v537 = vpop.f32.mrb[0].mxu0
      %v538 = vadd.f32 0.0, %v537
      %v539 = vpop.f32.mrb[0].mxu0
      %540 = vmatprep.mubr.bf16.mxu0 0
      %541 = vmatmul.mubr.bf16.gmra.mrb[0].mxu0 %v393
      %v542 = vpop.f32.mrb[0].mxu0
      %v543 = vadd.f32 0.0, %v542
      %v544 = vpop.f32.mrb[0].mxu0
      %v545 = vpop.f32.mrb[0].mxu0
      %v546 = vadd.f32 0.0, %v545
      %v547 = vpop.f32.mrb[0].mxu0
      %548 = vmatprep.mubr.bf16.mxu0 0
      %549 = vmatmul.mubr.bf16.gmra.mrb[0].mxu0 %v394
      %v550 = vpop.f32.mrb[0].mxu0
      %v551 = vadd.f32 0.0, %v550
      %v552 = vpop.f32.mrb[0].mxu0
      %v553 = vpop.f32.mrb[0].mxu0
      %v554 = vadd.f32 0.0, %v553
      %v555 = vpop.f32.mrb[0].mxu0
      %556 = vmatprep.mubr.bf16.mxu0 0
      %557 = vmatmul.mubr.bf16.gmra.mrb[0].mxu0 %v395
      %v558 = vpop.f32.mrb[0].mxu0
      %v559 = vadd.f32 0.0, %v558
      %v560 = vpop.f32.mrb[0].mxu0
      %v561 = vpop.f32.mrb[0].mxu0
      %v562 = vadd.f32 0.0, %v561
      %v563 = vpop.f32.mrb[0].mxu0
      %564 = vmatprep.mubr.bf16.mxu0 0
      %565 = vmatmul.mubr.bf16.gmra.mrb[0].mxu0 %v396
      %v566 = vpop.f32.mrb[0].mxu0
      %v567 = vadd.f32 0.0, %v566
      %v568 = vpop.f32.mrb[0].mxu0
      %v569 = vpop.f32.mrb[0].mxu0
      %v570 = vadd.f32 0.0, %v569
      %v571 = vpop.f32.mrb[0].mxu0
      %572 = vmatprep.mubr.bf16.mxu0 0
      %573 = vmatmul.mubr.bf16.gmra.mrb[0].mxu0 %v397
      %v574 = vpop.f32.mrb[0].mxu0
      %v575 = vadd.f32 0.0, %v574
      %v576 = vpop.f32.mrb[0].mxu0
      %v577 = vpop.f32.mrb[0].mxu0
      %v578 = vadd.f32 0.0, %v577
      %v579 = vpop.f32.mrb[0].mxu0
      %580 = vmatprep.mubr.bf16.mxu0 0
      %581 = vmatmul.mubr.bf16.gmra.mrb[0].mxu0 %v398
      %v582 = vpop.f32.mrb[0].mxu0
      %v583 = vadd.f32 0.0, %v582
      %v584 = vpop.f32.mrb[0].mxu0
      %v585 = vpop.f32.mrb[0].mxu0
      %v586 = vadd.f32 0.0, %v585
      %v587 = vpop.f32.mrb[0].mxu0
      %588 = vmatprep.mubr.bf16.mxu0 0
      %589 = vmatmul.mubr.bf16.gmra.mrb[0].mxu0 %v399
      %v590 = vpop.f32.mrb[0].mxu0
      %v591 = vadd.f32 0.0, %v590
      %v592 = vpop.f32.mrb[0].mxu0
      %v593 = vpop.f32.mrb[0].mxu0
      %v594 = vadd.f32 0.0, %v593
      %v595 = vpop.f32.mrb[0].mxu0
      %596 = vmatprep.mubr.bf16.mxu0 0
      %597 = vmatmul.mubr.bf16.gmra.mrb[0].mxu0 %v400
      %v598 = vpop.f32.mrb[0].mxu0
      %v599 = vadd.f32 0.0, %v598
      %v600 = vpop.f32.mrb[0].mxu0
      %v601 = vpop.f32.mrb[0].mxu0
      %v602 = vadd.f32 0.0, %v601
      %v603 = vpop.f32.mrb[0].mxu0
      %604 = vmatprep.mubr.bf16.mxu0 0
      %605 = vmatmul.mubr.bf16.gmra.mrb[0].mxu0 %v401
      %v606 = vpop.f32.mrb[0].mxu0
      %v607 = vadd.f32 0.0, %v606
      %v608 = vpop.f32.mrb[0].mxu0
      %v609 = vpop.f32.mrb[0].mxu0
      %v610 = vadd.f32 0.0, %v609
      %v611 = vpop.f32.mrb[0].mxu0
      %612 = vmatprep.mubr.bf16.mxu0 0
      %613 = vmatmul.mubr.bf16.gmra.mrb[0].mxu0 %v402
      %v614 = vpop.f32.mrb[0].mxu0
      %v615 = vadd.f32 0.0, %v614
      %v616 = vpop.f32.mrb[0].mxu0
      %v617 = vpop.f32.mrb[0].mxu0
      %v618 = vadd.f32 0.0, %v617
      %v619 = vpop.f32.mrb[0].mxu0
      %620 = vmatprep.mubr.bf16.mxu0 0
      %621 = vmatmul.mubr.bf16.gmra.mrb[0].mxu0 %v403
      %v622 = vpop.f32.mrb[0].mxu0
      %v623 = vadd.f32 0.0, %v622
      %v624 = vpop.f32.mrb[0].mxu0
      %v625 = vpop.f32.mrb[0].mxu0
      %v626 = vadd.f32 0.0, %v625
      %v627 = vpop.f32.mrb[0].mxu0
      %628 = vdwg.mxu0
      %v629 = vpack.c.bf16 %v506, %v503
      %v630 = vpack.c.bf16 %v514, %v511
      %v631 = vpack.c.bf16 %v522, %v519
      %v632 = vpack.c.bf16 %v530, %v527
      %v633 = vpack.c.bf16 %v538, %v535
      %v634 = vpack.c.bf16 %v546, %v543
      %v635 = vpack.c.bf16 %v554, %v551
      %v636 = vpack.c.bf16 %v562, %v559
      %v637 = vpack.c.bf16 %v570, %v567
      %v638 = vpack.c.bf16 %v578, %v575
      %v639 = vpack.c.bf16 %v586, %v583
      %v640 = vpack.c.bf16 %v594, %v591
      %v641 = vpack.c.bf16 %v602, %v599
      %v642 = vpack.c.bf16 %v610, %v607
      %v643 = vpack.c.bf16 %v618, %v615
      %v644 = vpack.c.bf16 %v626, %v623
      %v661 = vunpack.c.l.b16 %v629
      %v662 = vunpack.c.h.b16 %v629
      %v663 = vunpack.c.l.b16 %v630
      %v664 = vunpack.c.h.b16 %v630
      %v665 = vunpack.c.l.b16 %v631
      %v666 = vunpack.c.h.b16 %v631
      %v667 = vunpack.c.l.b16 %v632
      %v668 = vunpack.c.h.b16 %v632
      %v669 = vunpack.c.l.b16 %v633
      %v670 = vunpack.c.h.b16 %v633
      %v671 = vunpack.c.l.b16 %v634
      %v672 = vunpack.c.h.b16 %v634
      %v673 = vunpack.c.l.b16 %v635
      %v674 = vunpack.c.h.b16 %v635
      %v675 = vunpack.c.l.b16 %v636
      %v676 = vunpack.c.h.b16 %v636
      %v677 = vunpack.c.l.b16 %v637
      %v678 = vunpack.c.h.b16 %v637
      %v679 = vunpack.c.l.b16 %v638
      %v680 = vunpack.c.h.b16 %v638
      %v681 = vunpack.c.l.b16 %v639
      %v682 = vunpack.c.h.b16 %v639
      %v683 = vunpack.c.l.b16 %v640
      %v684 = vunpack.c.h.b16 %v640
      %v685 = vunpack.c.l.b16 %v641
      %v686 = vunpack.c.h.b16 %v641
      %v687 = vunpack.c.l.b16 %v642
      %v688 = vunpack.c.h.b16 %v642
      %v689 = vunpack.c.l.b16 %v643
      %v690 = vunpack.c.h.b16 %v643
      %v691 = vunpack.c.l.b16 %v644
      %v692 = vunpack.c.h.b16 %v644
      %v693 = vpack.c.b16 %v661, %v661
      %v694 = vpack.c.b16 %v662, %v662
      %v695 = vpack.c.b16 %v663, %v663
      %v696 = vpack.c.b16 %v664, %v664
      %v697 = vpack.c.b16 %v665, %v665
      %v698 = vpack.c.b16 %v666, %v666
      %v699 = vpack.c.b16 %v667, %v667
      %v700 = vpack.c.b16 %v668, %v668
      %v701 = vpack.c.b16 %v669, %v669
      %v702 = vpack.c.b16 %v670, %v670
      %v703 = vpack.c.b16 %v671, %v671
      %v704 = vpack.c.b16 %v672, %v672
      %v705 = vpack.c.b16 %v673, %v673
      %v706 = vpack.c.b16 %v674, %v674
      %v707 = vpack.c.b16 %v675, %v675
      %v708 = vpack.c.b16 %v676, %v676
      %v709 = vpack.c.b16 %v677, %v677
      %v710 = vpack.c.b16 %v678, %v678
      %v711 = vpack.c.b16 %v679, %v679
      %v712 = vpack.c.b16 %v680, %v680
      %v713 = vpack.c.b16 %v681, %v681
      %v714 = vpack.c.b16 %v682, %v682
      %v715 = vpack.c.b16 %v683, %v683
      %v716 = vpack.c.b16 %v684, %v684
      %v717 = vpack.c.b16 %v685, %v685
      %v718 = vpack.c.b16 %v686, %v686
      %v719 = vpack.c.b16 %v687, %v687
      %v720 = vpack.c.b16 %v688, %v688
      %v721 = vpack.c.b16 %v689, %v689
      %v722 = vpack.c.b16 %v690, %v690
      %v723 = vpack.c.b16 %v691, %v691
      %v724 = vpack.c.b16 %v692, %v692
      %757 = vst [vmem:[%s259] sm:$0xf] %v693
      %758 = vst [vmem:[%s259 + $0x4] sm:$0xf] %v694
      %759 = vst [vmem:[%s259 + $0x8] sm:$0xf] %v695
      %760 = vst [vmem:[%s259 + $0xc] sm:$0xf] %v696
      %761 = vst [vmem:[%s259 + $0x10] sm:$0xf] %v697
      %762 = vst [vmem:[%s259 + $0x14] sm:$0xf] %v698
      %763 = vst [vmem:[%s259 + $0x18] sm:$0xf] %v699
      %764 = vst [vmem:[%s259 + $0x1c] sm:$0xf] %v700
      %765 = vst [vmem:[%s259 + $0x20] sm:$0xf] %v701
      %766 = vst [vmem:[%s259 + $0x24] sm:$0xf] %v702
      %767 = vst [vmem:[%s259 + $0x28] sm:$0xf] %v703
      %768 = vst [vmem:[%s259 + $0x2c] sm:$0xf] %v704
      %769 = vst [vmem:[%s259 + $0x30] sm:$0xf] %v705
      %770 = vst [vmem:[%s259 + $0x34] sm:$0xf] %v706
      %771 = vst [vmem:[%s259 + $0x38] sm:$0xf] %v707
      %772 = vst [vmem:[%s259 + $0x3c] sm:$0xf] %v708
      %773 = vst [vmem:[%s259 + $0x40] sm:$0xf] %v709
      %774 = vst [vmem:[%s259 + $0x44] sm:$0xf] %v710
      %775 = vst [vmem:[%s259 + $0x48] sm:$0xf] %v711
      %776 = vst [vmem:[%s259 + $0x4c] sm:$0xf] %v712
      %777 = vst [vmem:[%s259 + $0x50] sm:$0xf] %v713
      %778 = vst [vmem:[%s259 + $0x54] sm:$0xf] %v714
      %779 = vst [vmem:[%s259 + $0x58] sm:$0xf] %v715
      %780 = vst [vmem:[%s259 + $0x5c] sm:$0xf] %v716
      %781 = vst [vmem:[%s259 + $0x60] sm:$0xf] %v717
      %782 = vst [vmem:[%s259 + $0x64] sm:$0xf] %v718
      %783 = vst [vmem:[%s259 + $0x68] sm:$0xf] %v719
      %784 = vst [vmem:[%s259 + $0x6c] sm:$0xf] %v720
      %785 = vst [vmem:[%s259 + $0x70] sm:$0xf] %v721
      %786 = vst [vmem:[%s259 + $0x74] sm:$0xf] %v722
      %787 = vst [vmem:[%s259 + $0x78] sm:$0xf] %v723
      %788 = vst [vmem:[%s259 + $0x7c] sm:$0xf] %v724
      %v789 = vadd.f32 %v503, %v506
      %v790 = vadd.f32 %v789, %v511
      %v791 = vadd.f32 %v790, %v514
      %v792 = vadd.f32 %v791, %v519
      %v793 = vadd.f32 %v792, %v522
      %v794 = vadd.f32 %v793, %v527
      %v795 = vadd.f32 %v794, %v530
      %v796 = vadd.f32 %v795, %v535
      %v797 = vadd.f32 %v796, %v538
      %v798 = vadd.f32 %v797, %v543
      %v799 = vadd.f32 %v798, %v546
      %v800 = vadd.f32 %v799, %v551
      %v801 = vadd.f32 %v800, %v554
      %v802 = vadd.f32 %v801, %v559
      %v803 = vadd.f32 %v802, %v562
      %v804 = vadd.f32 %v803, %v567
      %v805 = vadd.f32 %v804, %v570
      %v806 = vadd.f32 %v805, %v575
      %v807 = vadd.f32 %v806, %v578
      %v808 = vadd.f32 %v807, %v583
      %v809 = vadd.f32 %v808, %v586
      %v810 = vadd.f32 %v809, %v591
      %v811 = vadd.f32 %v810, %v594
      %v812 = vadd.f32 %v811, %v599
      %v813 = vadd.f32 %v812, %v602
      %v814 = vadd.f32 %v813, %v607
      %v815 = vadd.f32 %v814, %v610
      %v816 = vadd.f32 %v815, %v615
      %v817 = vadd.f32 %v816, %v618
      %v818 = vadd.f32 %v817, %v623
      %v819 = vadd.f32 %v818, %v626
      %v820 = vrot.slane %v819, 4
      %v821 = vadd.f32 %v819, %v820
      %v822 = vrot.slane %v821, 2
      %v823 = vadd.f32 %v821, %v822
      %v824 = vrot.slane %v823, 1
      %v825 = vadd.f32 %v823, %v824
      %v826 = vmul.f32 %v503, %v503
      %v827 = vmul.f32 %v506, %v506
      %v828 = vmul.f32 %v511, %v511
      %v829 = vmul.f32 %v514, %v514
      %v830 = vmul.f32 %v519, %v519
      %v831 = vmul.f32 %v522, %v522
      %v832 = vmul.f32 %v527, %v527
      %v833 = vmul.f32 %v530, %v530
      %v834 = vmul.f32 %v535, %v535
      %v835 = vmul.f32 %v538, %v538
      %v836 = vmul.f32 %v543, %v543
      %v837 = vmul.f32 %v546, %v546
      %v838 = vmul.f32 %v551, %v551
      %v839 = vmul.f32 %v554, %v554
      %v840 = vmul.f32 %v559, %v559
      %v841 = vmul.f32 %v562, %v562
      %v842 = vmul.f32 %v567, %v567
      %v843 = vmul.f32 %v570, %v570
      %v844 = vmul.f32 %v575, %v575
      %v845 = vmul.f32 %v578, %v578
      %v846 = vmul.f32 %v583, %v583
      %v847 = vmul.f32 %v586, %v586
      %v848 = vmul.f32 %v591, %v591
      %v849 = vmul.f32 %v594, %v594
      %v850 = vmul.f32 %v599, %v599
      %v851 = vmul.f32 %v602, %v602
      %v852 = vmul.f32 %v607, %v607
      %v853 = vmul.f32 %v610, %v610
      %v854 = vmul.f32 %v615, %v615
      %v855 = vmul.f32 %v618, %v618
      %v856 = vmul.f32 %v623, %v623
      %v857 = vmul.f32 %v626, %v626
      %v858 = vadd.f32 %v826, %v827
      %v859 = vadd.f32 %v858, %v828
      %v860 = vadd.f32 %v859, %v829
      %v861 = vadd.f32 %v860, %v830
      %v862 = vadd.f32 %v861, %v831
      %v863 = vadd.f32 %v862, %v832
      %v864 = vadd.f32 %v863, %v833
      %v865 = vadd.f32 %v864, %v834
      %v866 = vadd.f32 %v865, %v835
      %v867 = vadd.f32 %v866, %v836
      %v868 = vadd.f32 %v867, %v837
      %v869 = vadd.f32 %v868, %v838
      %v870 = vadd.f32 %v869, %v839
      %v871 = vadd.f32 %v870, %v840
      %v872 = vadd.f32 %v871, %v841
      %v873 = vadd.f32 %v872, %v842
      %v874 = vadd.f32 %v873, %v843
      %v875 = vadd.f32 %v874, %v844
      %v876 = vadd.f32 %v875, %v845
      %v877 = vadd.f32 %v876, %v846
      %v878 = vadd.f32 %v877, %v847
      %v879 = vadd.f32 %v878, %v848
      %v880 = vadd.f32 %v879, %v849
      %v881 = vadd.f32 %v880, %v850
      %v882 = vadd.f32 %v881, %v851
      %v883 = vadd.f32 %v882, %v852
      %v884 = vadd.f32 %v883, %v853
      %v885 = vadd.f32 %v884, %v854
      %v886 = vadd.f32 %v885, %v855
      %v887 = vadd.f32 %v886, %v856
      %v888 = vadd.f32 %v887, %v857
      %v889 = vrot.slane %v888, 4
      %v890 = vadd.f32 %v888, %v889
      %v891 = vrot.slane %v890, 2
      %v892 = vadd.f32 %v890, %v891
      %v893 = vrot.slane %v892, 1
      %v894 = vadd.f32 %v892, %v893
      %895 = vst [vmem:[%s267] sm:$0xff] %v825
      %896 = vst [vmem:[%s274] sm:$0xff] %v894
      %s897 = smul.u32 32, %s20
      %p898 = scmp.lt.s32.totalorder %s897, 63
      %s899 = scalar_select %p898, %s897, 63
      %p900 = scmp.lt.s32.totalorder %s21, 0
      %s901 = scalar_select %p900, %s21, 0
      %s902 = sadd.s32 %s901, %s899
      %s903 = smul.addr %s902, 4
      %s904 = scalar_lea.vmem %s2, %s903
      %p905 = scmp.lt.s32.totalorder %s20, 1
      %s906 = scalar_select %p905, %s20, 1
      %p907 = scmp.lt.s32.totalorder %s21, 0
      %s908 = scalar_select %p907, %s21, 0
      %s909 = sadd.s32 %s908, %s906
      %s910 = smul.addr %s909, 8
      %s911 = scalar_lea.vmem %s3, %s910
      %p912 = scmp.lt.s32.totalorder %s20, 1
      %s913 = scalar_select %p912, %s20, 1
      %p914 = scmp.lt.s32.totalorder %s21, 0
      %s915 = scalar_select %p914, %s21, 0
      %s916 = sadd.s32 %s915, %s913
      %s917 = smul.addr %s916, 8
      %s918 = scalar_lea.vmem %s4, %s917
      // Predicated region
      $region29: #{dcgan_d_forward.9} parent=27 // pred_check
        %p919 = pneg %p100
      $region30: #{dcgan_d_forward.9} parent=27 // pred_check_branch
        %921 = sbr.rel (%p919) target = $region32
      $region31: #{dcgan_d_forward.9} parent=27 // pred_region
        %s922 = smul.u32 32, %s20
      $region32: #{dcgan_d_forward.9} parent=27 // pred_fallthru
        _
      // Predicated region
      $region33: #{dcgan_d_forward.9} parent=27 // pred_check
        %p923 = pneg %p128
      $region34: #{dcgan_d_forward.9} parent=27 // pred_check_branch
        %925 = sbr.rel (%p923) target = $region36
      $region35: #{dcgan_d_forward.9} parent=27 // pred_region
        _
      $region36: #{dcgan_d_forward.9} parent=27 // pred_fallthru
        _
      // Predicated region
      $region37: #{dcgan_d_forward.9} parent=27 // pred_check
        %p926 = pneg %p156
      $region38: #{dcgan_d_forward.9} parent=27 // pred_check_branch
        %928 = sbr.rel (%p926) target = $region40
      $region39: #{dcgan_d_forward.9} parent=27 // pred_region
        _
      $region40: #{dcgan_d_forward.9} parent=27 // pred_fallthru
        _
    $region28: #{dcgan_d_forward.9} parent=5 // pred_fallthru
      _
    %p929 = scmp.le.s32.totalorder 2, %s11
    // Predicated region
    $region41: #{dcgan_d_forward.9} parent=5 // pred_check
      %p930 = pneg %p929
    $region42: #{dcgan_d_forward.9} parent=5 // pred_check_branch
      %932 = sbr.rel (%p930) target = $region44
    $region43: #{dcgan_d_forward.9} parent=5 // pred_region
      %s933 = ssub.s32 %s11, 2
      // Predicated region
      $region45: #{dcgan_d_forward.9} parent=43 // pred_check
        %p934 = pneg %p106
      $region46: #{dcgan_d_forward.9} parent=43 // pred_check_branch
        %936 = sbr.rel (%p934) target = $region48
      $region47: #{dcgan_d_forward.9} parent=43 // pred_region
        %s937 = smul.u32 32, %s22
        %p938 = scmp.lt.s32.totalorder %s937, 63
        %s939 = scalar_select %p938, %s937, 63
        %p940 = scmp.lt.s32.totalorder %s23, 0
        %s941 = scalar_select %p940, %s23, 0
        %s942 = sadd.s32 %s941, %s939
        %s943 = smul.addr %s942, 4
        %s944 = scalar_lea.vmem %s2, %s943
      $region48: #{dcgan_d_forward.9} parent=43 // pred_fallthru
        _
      // Predicated region
      $region49: #{dcgan_d_forward.9} parent=43 // pred_check
        %p945 = pneg %p134
      $region50: #{dcgan_d_forward.9} parent=43 // pred_check_branch
        %947 = sbr.rel (%p945) target = $region52
      $region51: #{dcgan_d_forward.9} parent=43 // pred_region
        %p948 = scmp.lt.s32.totalorder %s22, 1
        %s949 = scalar_select %p948, %s22, 1
        %p950 = scmp.lt.s32.totalorder %s23, 0
        %s951 = scalar_select %p950, %s23, 0
        %s952 = sadd.s32 %s951, %s949
        %s953 = smul.addr %s952, 8
        %s954 = scalar_lea.vmem %s3, %s953
      $region52: #{dcgan_d_forward.9} parent=43 // pred_fallthru
        _
      // Predicated region
      $region53: #{dcgan_d_forward.9} parent=43 // pred_check
        %p955 = pneg %p162
      $region54: #{dcgan_d_forward.9} parent=43 // pred_check_branch
        %957 = sbr.rel (%p955) target = $region56
      $region55: #{dcgan_d_forward.9} parent=43 // pred_region
        %p958 = scmp.lt.s32.totalorder %s22, 1
        %s959 = scalar_select %p958, %s22, 1
        %p960 = scmp.lt.s32.totalorder %s23, 0
        %s961 = scalar_select %p960, %s23, 0
        %s962 = sadd.s32 %s961, %s959
        %s963 = smul.addr %s962, 8
        %s964 = scalar_lea.vmem %s4, %s963
      $region56: #{dcgan_d_forward.9} parent=43 // pred_fallthru
        _
    $region44: #{dcgan_d_forward.9} parent=5 // pred_fallthru
      _
  $region6: #{dcgan_d_forward.9} parent=0 // loop_footer
    %s15 = sadd.s32 1, %s11
  $region7: #{dcgan_d_forward.9} parent=0 // loop_footer_branch
    %10 = sbr.rel target = $region3
  $region8: #{dcgan_d_forward.9} parent=0 // loop_exit
    _

// kernel: dcgan_d_forward.10
$region0: #{dcgan_d_forward.10}
  #allocation0 [shape = 'u32[]', space=smem, size = 0x4, offset = 0x4, fixed_abs, tag = 'smem constant byte address 0x4 - core index']
  #allocation1 [shape = 'u32[144,128]{1,0:T(1,128)}', space=vmem, size = 0x12000, scoped, tag = 'internal scratch']
  %s0 = inlined_call_operand.vmem [shape: bf16[512,128], index: 0, kind: input, shape index: {}]
  %s1 = inlined_call_operand.vmem [shape: f32[1,128], index: 1, kind: input, shape index: {}]
  %s2 = inlined_call_operand.vmem [shape: f32[1,128], index: 2, kind: input, shape index: {}]
  %s3 = inlined_call_operand.vmem [shape: bf16[512,128], index: 3, kind: output, shape index: {}]
  %s4 = sld [smem:[#allocation0]]
  $region45: #{dcgan_d_forward.10} parent=0
    _
  %s6 = ssub.s32 1, %s4
  %s7 = scalar_select 0, %s6, %s4
  loop: start=0, step=1, limit=4
  $region2: #{dcgan_d_forward.10} parent=0 // loop_pre_header
    _
  $region3: #{dcgan_d_forward.10} parent=0 // loop_header
    %s9 = sphi 0, %s13
    %p10 = scmp.ge.s32.totalorder %s9, 4
    %s19 = sphi 0, %s21
    %s22 = sphi 0, %s19
    %s23 = sphi 0, %s22
    %s39 = sphi 0, %s23
    %s43 = sphi 0, %s43
    %s45 = sphi 0, %s43
    %s46 = sphi 0, %s45
    %s60 = sphi 0, %s46
    %s64 = sphi 0, %s64
    %s66 = sphi 0, %s64
    %s67 = sphi 0, %s66
    %s81 = sphi 0, %s67
    %s87 = sphi 0, %s89
    %s90 = sphi 0, %s87
    %s91 = sphi 0, %s90
    %s107 = sphi 0, %s91
  $region4: #{dcgan_d_forward.10} parent=0 // loop_header_branch
    %12 = sbr.rel (%p10) target = $region8
  $region5: #{dcgan_d_forward.10} parent=0 // loop_body
    %s14 = ssub.s32 %s9, 1
    %s15 = ssub.s32 %s9, 2
    %s16 = sadd.s32 %s9, 1
    %s17 = ssub.s32 %s9, %s16
    %p18 = scmp.eq.s32.totalorder %s17, 0
    %s20 = sadd.s32 %s19, 1
    %s21 = scalar_select %p18, %s19, %s20
    %p24 = pneg %p18
    %p25 = scmp.eq.s32.totalorder %s9, 1
    %p26 = por %p24, %p25
    %p27 = scmp.ne.s32.totalorder %s19, %s22
    %p28 = scmp.eq.s32.totalorder %s9, 0
    %p29 = por %p27, %p28
    %p30 = scmp.ne.s32.totalorder %s19, %s22
    %p31 = scmp.eq.s32.totalorder %s14, 1
    %p32 = por %p30, %p31
    %p33 = scmp.ne.s32.totalorder %s22, %s23
    %p34 = scmp.eq.s32.totalorder %s14, 0
    %p35 = por %p33, %p34
    %p36 = scmp.ne.s32.totalorder %s22, %s23
    %p37 = scmp.eq.s32.totalorder %s15, 1
    %p38 = por %p36, %p37
    %p40 = scmp.ne.s32.totalorder %s23, %s39
    %p41 = scmp.eq.s32.totalorder %s15, 0
    %p42 = por %p40, %p41
    %s44 = sadd.s32 %s43, 1
    %p47 = scmp.eq.s32.totalorder %s9, 1
    %p48 = scmp.ne.s32.totalorder %s43, %s45
    %p49 = scmp.eq.s32.totalorder %s9, 0
    %p50 = por %p48, %p49
    %p51 = scmp.ne.s32.totalorder %s43, %s45
    %p52 = scmp.eq.s32.totalorder %s14, 1
    %p53 = por %p51, %p52
    %p54 = scmp.ne.s32.totalorder %s45, %s46
    %p55 = scmp.eq.s32.totalorder %s14, 0
    %p56 = por %p54, %p55
    %p57 = scmp.ne.s32.totalorder %s45, %s46
    %p58 = scmp.eq.s32.totalorder %s15, 1
    %p59 = por %p57, %p58
    %p61 = scmp.ne.s32.totalorder %s46, %s60
    %p62 = scmp.eq.s32.totalorder %s15, 0
    %p63 = por %p61, %p62
    %s65 = sadd.s32 %s64, 1
    %p68 = scmp.eq.s32.totalorder %s9, 1
    %p69 = scmp.ne.s32.totalorder %s64, %s66
    %p70 = scmp.eq.s32.totalorder %s9, 0
    %p71 = por %p69, %p70
    %p72 = scmp.ne.s32.totalorder %s64, %s66
    %p73 = scmp.eq.s32.totalorder %s14, 1
    %p74 = por %p72, %p73
    %p75 = scmp.ne.s32.totalorder %s66, %s67
    %p76 = scmp.eq.s32.totalorder %s14, 0
    %p77 = por %p75, %p76
    %p78 = scmp.ne.s32.totalorder %s66, %s67
    %p79 = scmp.eq.s32.totalorder %s15, 1
    %p80 = por %p78, %p79
    %p82 = scmp.ne.s32.totalorder %s67, %s81
    %p83 = scmp.eq.s32.totalorder %s15, 0
    %p84 = por %p82, %p83
    %s85 = ssub.s32 %s9, %s16
    %p86 = scmp.eq.s32.totalorder %s85, 0
    %s88 = sadd.s32 %s87, 1
    %s89 = scalar_select %p86, %s87, %s88
    %p92 = pneg %p86
    %p93 = scmp.eq.s32.totalorder %s9, 1
    %p94 = por %p92, %p93
    %p95 = scmp.ne.s32.totalorder %s87, %s90
    %p96 = scmp.eq.s32.totalorder %s9, 0
    %p97 = por %p95, %p96
    %p98 = scmp.ne.s32.totalorder %s87, %s90
    %p99 = scmp.eq.s32.totalorder %s14, 1
    %p100 = por %p98, %p99
    %p101 = scmp.ne.s32.totalorder %s90, %s91
    %p102 = scmp.eq.s32.totalorder %s14, 0
    %p103 = por %p101, %p102
    %p104 = scmp.ne.s32.totalorder %s90, %s91
    %p105 = scmp.eq.s32.totalorder %s15, 1
    %p106 = por %p104, %p105
    %p108 = scmp.ne.s32.totalorder %s91, %s107
    %p109 = scmp.eq.s32.totalorder %s15, 0
    %p110 = por %p108, %p109
    %p111 = scmp.le.s32.totalorder 1, %s9
    %p112 = scmp.lt.s32.totalorder %s9, 3
    %p113 = pnand %p111, %p112
    %p114 = pneg %p113
    // Predicated region
    $region9: #{dcgan_d_forward.10} parent=5 // pred_check
      _
    $region10: #{dcgan_d_forward.10} parent=5 // pred_check_branch
      %116 = sbr.rel (%p113) target = $region12
    $region11: #{dcgan_d_forward.10} parent=5 // pred_region
      %s117 = ssub.s32 %s9, 1
      // Predicated region
      $region13: #{dcgan_d_forward.10} parent=11 // pred_check
        %p118 = pneg %p56
      $region14: #{dcgan_d_forward.10} parent=11 // pred_check_branch
        %120 = sbr.rel (%p118) target = $region16
      $region15: #{dcgan_d_forward.10} parent=11 // pred_region
        _
      $region16: #{dcgan_d_forward.10} parent=11 // pred_fallthru
        _
      // Predicated region
      $region17: #{dcgan_d_forward.10} parent=11 // pred_check
        %p121 = pneg %p77
      $region18: #{dcgan_d_forward.10} parent=11 // pred_check_branch
        %123 = sbr.rel (%p121) target = $region20
      $region19: #{dcgan_d_forward.10} parent=11 // pred_region
        _
      $region20: #{dcgan_d_forward.10} parent=11 // pred_fallthru
        _
    $region12: #{dcgan_d_forward.10} parent=5 // pred_fallthru
      _
    %p124 = scmp.lt.s32.totalorder %s9, 2
    // Predicated region
    $region21: #{dcgan_d_forward.10} parent=5 // pred_check
      %p125 = pneg %p124
    $region22: #{dcgan_d_forward.10} parent=5 // pred_check_branch
      %127 = sbr.rel (%p125) target = $region24
    $region23: #{dcgan_d_forward.10} parent=5 // pred_region
      // Predicated region
      $region25: #{dcgan_d_forward.10} parent=23 // pred_check
        %p128 = pneg %p29
      $region26: #{dcgan_d_forward.10} parent=23 // pred_check_branch
        %130 = sbr.rel (%p128) target = $region28
      $region27: #{dcgan_d_forward.10} parent=23 // pred_region
        %s131 = smul.u32 32, %s9
        %p132 = scmp.lt.s32.totalorder %s131, 63
        %s133 = scalar_select %p132, %s131, 63
        %s134 = smul.addr %s133, 4
        %s135 = scalar_lea.vmem %s0, %s134
        %s136 = smul.u32 32, %s9
      $region28: #{dcgan_d_forward.10} parent=23 // pred_fallthru
        _
    $region24: #{dcgan_d_forward.10} parent=5 // pred_fallthru
      _
    %p137 = scmp.le.s32.totalorder 1, %s9
    %p138 = scmp.lt.s32.totalorder %s9, 3
    %p139 = pnand %p137, %p138
    %p140 = pneg %p139
    // Predicated region
    $region29: #{dcgan_d_forward.10} parent=5 // pred_check
      _
    $region30: #{dcgan_d_forward.10} parent=5 // pred_check_branch
      %142 = sbr.rel (%p139) target = $region32
    $region31: #{dcgan_d_forward.10} parent=5 // pred_region
      %s143 = ssub.s32 %s9, 1
      %s144 = smul.u32 32, %s14
      %p145 = scmp.lt.s32.totalorder %s144, 63
      %s146 = scalar_select %p145, %s144, 63
      %s147 = smul.addr %s146, 4
      %s148 = scalar_lea.vmem %s0, %s147
      %p149 = pneg %p35
      %p150 = pneg %p32
      %p151 = pneg %p56
      %p152 = pneg %p53
      %p153 = pneg %p77
      %p154 = pneg %p74
      %p155 = pneg %p103
      %p156 = pneg %p100
      %s157 = smul.u32 32, %s14
      %p158 = scmp.lt.s32.totalorder %s157, 63
      %s159 = scalar_select %p158, %s157, 63
      %s160 = smul.addr %s159, 4
      %s161 = scalar_lea.vmem %s3, %s160
      %s162 = smul.u32 32, %s14
      %p163 = scmp.lt.s32.totalorder %s162, 63
      %s164 = scalar_select %p163, %s162, 63
      %s165 = smul.addr %s164, 4
      %s166 = scalar_lea.vmem %s0, %s165
      %s167 = smul.u32 32, %s14
      %s168 = smul.u32 32, %s14
      %p169 = scmp.lt.s32.totalorder %s168, 63
      %s170 = scalar_select %p169, %s168, 63
      %s171 = smul.addr %s170, 4
      %s172 = scalar_lea.vmem %s3, %s171
      %s173 = smul.u32 32, %s14
      %v174 = vld [vmem:[%s166] sm:$0xf]
      %v175 = vld [vmem:[%s166 + $0x4] sm:$0xf]
      %v176 = vld [vmem:[%s166 + $0x8] sm:$0xf]
      %v177 = vld [vmem:[%s166 + $0xc] sm:$0xf]
      %v178 = vld [vmem:[%s166 + $0x10] sm:$0xf]
      %v179 = vld [vmem:[%s166 + $0x14] sm:$0xf]
      %v180 = vld [vmem:[%s166 + $0x18] sm:$0xf]
      %v181 = vld [vmem:[%s166 + $0x1c] sm:$0xf]
      %v182 = vld [vmem:[%s166 + $0x20] sm:$0xf]
      %v183 = vld [vmem:[%s166 + $0x24] sm:$0xf]
      %v184 = vld [vmem:[%s166 + $0x28] sm:$0xf]
      %v185 = vld [vmem:[%s166 + $0x2c] sm:$0xf]
      %v186 = vld [vmem:[%s166 + $0x30] sm:$0xf]
      %v187 = vld [vmem:[%s166 + $0x34] sm:$0xf]
      %v188 = vld [vmem:[%s166 + $0x38] sm:$0xf]
      %v189 = vld [vmem:[%s166 + $0x3c] sm:$0xf]
      %v190 = vld [vmem:[%s166 + $0x40] sm:$0xf]
      %v191 = vld [vmem:[%s166 + $0x44] sm:$0xf]
      %v192 = vld [vmem:[%s166 + $0x48] sm:$0xf]
      %v193 = vld [vmem:[%s166 + $0x4c] sm:$0xf]
      %v194 = vld [vmem:[%s166 + $0x50] sm:$0xf]
      %v195 = vld [vmem:[%s166 + $0x54] sm:$0xf]
      %v196 = vld [vmem:[%s166 + $0x58] sm:$0xf]
      %v197 = vld [vmem:[%s166 + $0x5c] sm:$0xf]
      %v198 = vld [vmem:[%s166 + $0x60] sm:$0xf]
      %v199 = vld [vmem:[%s166 + $0x64] sm:$0xf]
      %v200 = vld [vmem:[%s166 + $0x68] sm:$0xf]
      %v201 = vld [vmem:[%s166 + $0x6c] sm:$0xf]
      %v202 = vld [vmem:[%s166 + $0x70] sm:$0xf]
      %v203 = vld [vmem:[%s166 + $0x74] sm:$0xf]
      %v204 = vld [vmem:[%s166 + $0x78] sm:$0xf]
      %v205 = vld [vmem:[%s166 + $0x7c] sm:$0xf]
      %v206 = vunpack.c.l.bf16 %v174
      %v207 = vunpack.c.l.bf16 %v175
      %v208 = vunpack.c.l.bf16 %v176
      %v209 = vunpack.c.l.bf16 %v177
      %v210 = vunpack.c.l.bf16 %v178
      %v211 = vunpack.c.l.bf16 %v179
      %v212 = vunpack.c.l.bf16 %v180
      %v213 = vunpack.c.l.bf16 %v181
      %v214 = vunpack.c.l.bf16 %v182
      %v215 = vunpack.c.l.bf16 %v183
      %v216 = vunpack.c.l.bf16 %v184
      %v217 = vunpack.c.l.bf16 %v185
      %v218 = vunpack.c.l.bf16 %v186
      %v219 = vunpack.c.l.bf16 %v187
      %v220 = vunpack.c.l.bf16 %v188
      %v221 = vunpack.c.l.bf16 %v189
      %v222 = vunpack.c.l.bf16 %v190
      %v223 = vunpack.c.l.bf16 %v191
      %v224 = vunpack.c.l.bf16 %v192
      %v225 = vunpack.c.l.bf16 %v193
      %v226 = vunpack.c.l.bf16 %v194
      %v227 = vunpack.c.l.bf16 %v195
      %v228 = vunpack.c.l.bf16 %v196
      %v229 = vunpack.c.l.bf16 %v197
      %v230 = vunpack.c.l.bf16 %v198
      %v231 = vunpack.c.l.bf16 %v199
      %v232 = vunpack.c.l.bf16 %v200
      %v233 = vunpack.c.l.bf16 %v201
      %v234 = vunpack.c.l.bf16 %v202
      %v235 = vunpack.c.l.bf16 %v203
      %v236 = vunpack.c.l.bf16 %v204
      %v237 = vunpack.c.l.bf16 %v205
      %v238 = vld [vmem:[%s1] sm:$0x1]
      %v240 = vlaneseq
      %v241 = vshrl.u32 %v240, 7
      %v242 = vsub.s32 0, %v241
      %v243 = vrot.slane %v238, %v242
      %v245 = vmul.f32 %v206, %v243
      %v246 = vmul.f32 %v207, %v243
      %v247 = vmul.f32 %v208, %v243
      %v248 = vmul.f32 %v209, %v243
      %v249 = vmul.f32 %v210, %v243
      %v250 = vmul.f32 %v211, %v243
      %v251 = vmul.f32 %v212, %v243
      %v252 = vmul.f32 %v213, %v243
      %v253 = vmul.f32 %v214, %v243
      %v254 = vmul.f32 %v215, %v243
      %v255 = vmul.f32 %v216, %v243
      %v256 = vmul.f32 %v217, %v243
      %v257 = vmul.f32 %v218, %v243
      %v258 = vmul.f32 %v219, %v243
      %v259 = vmul.f32 %v220, %v243
      %v260 = vmul.f32 %v221, %v243
      %v261 = vmul.f32 %v222, %v243
      %v262 = vmul.f32 %v223, %v243
      %v263 = vmul.f32 %v224, %v243
      %v264 = vmul.f32 %v225, %v243
      %v265 = vmul.f32 %v226, %v243
      %v266 = vmul.f32 %v227, %v243
      %v267 = vmul.f32 %v228, %v243
      %v268 = vmul.f32 %v229, %v243
      %v269 = vmul.f32 %v230, %v243
      %v270 = vmul.f32 %v231, %v243
      %v271 = vmul.f32 %v232, %v243
      %v272 = vmul.f32 %v233, %v243
      %v273 = vmul.f32 %v234, %v243
      %v274 = vmul.f32 %v235, %v243
      %v275 = vmul.f32 %v236, %v243
      %v276 = vmul.f32 %v237, %v243
      %v277 = vld [vmem:[%s2] sm:$0x1]
      %v279 = vlaneseq
      %v280 = vshrl.u32 %v279, 7
      %v281 = vsub.s32 0, %v280
      %v282 = vrot.slane %v277, %v281
      %v284 = vadd.f32 %v245, %v282
      %v285 = vadd.f32 %v246, %v282
      %v286 = vadd.f32 %v247, %v282
      %v287 = vadd.f32 %v248, %v282
      %v288 = vadd.f32 %v249, %v282
      %v289 = vadd.f32 %v250, %v282
      %v290 = vadd.f32 %v251, %v282
      %v291 = vadd.f32 %v252, %v282
      %v292 = vadd.f32 %v253, %v282
      %v293 = vadd.f32 %v254, %v282
      %v294 = vadd.f32 %v255, %v282
      %v295 = vadd.f32 %v256, %v282
      %v296 = vadd.f32 %v257, %v282
      %v297 = vadd.f32 %v258, %v282
      %v298 = vadd.f32 %v259, %v282
      %v299 = vadd.f32 %v260, %v282
      %v300 = vadd.f32 %v261, %v282
      %v301 = vadd.f32 %v262, %v282
      %v302 = vadd.f32 %v263, %v282
      %v303 = vadd.f32 %v264, %v282
      %v304 = vadd.f32 %v265, %v282
      %v305 = vadd.f32 %v266, %v282
      %v306 = vadd.f32 %v267, %v282
      %v307 = vadd.f32 %v268, %v282
      %v308 = vadd.f32 %v269, %v282
      %v309 = vadd.f32 %v270, %v282
      %v310 = vadd.f32 %v271, %v282
      %v311 = vadd.f32 %v272, %v282
      %v312 = vadd.f32 %v273, %v282
      %v313 = vadd.f32 %v274, %v282
      %v314 = vadd.f32 %v275, %v282
      %v315 = vadd.f32 %v276, %v282
      %vm316 = vcmp.gt.f32.partialorder %v284, 0.0
      %vm317 = vcmp.gt.f32.partialorder %v285, 0.0
      %vm318 = vcmp.gt.f32.partialorder %v286, 0.0
      %vm319 = vcmp.gt.f32.partialorder %v287, 0.0
      %vm320 = vcmp.gt.f32.partialorder %v288, 0.0
      %vm321 = vcmp.gt.f32.partialorder %v289, 0.0
      %vm322 = vcmp.gt.f32.partialorder %v290, 0.0
      %vm323 = vcmp.gt.f32.partialorder %v291, 0.0
      %vm324 = vcmp.gt.f32.partialorder %v292, 0.0
      %vm325 = vcmp.gt.f32.partialorder %v293, 0.0
      %vm326 = vcmp.gt.f32.partialorder %v294, 0.0
      %vm327 = vcmp.gt.f32.partialorder %v295, 0.0
      %vm328 = vcmp.gt.f32.partialorder %v296, 0.0
      %vm329 = vcmp.gt.f32.partialorder %v297, 0.0
      %vm330 = vcmp.gt.f32.partialorder %v298, 0.0
      %vm331 = vcmp.gt.f32.partialorder %v299, 0.0
      %vm332 = vcmp.gt.f32.partialorder %v300, 0.0
      %vm333 = vcmp.gt.f32.partialorder %v301, 0.0
      %vm334 = vcmp.gt.f32.partialorder %v302, 0.0
      %vm335 = vcmp.gt.f32.partialorder %v303, 0.0
      %vm336 = vcmp.gt.f32.partialorder %v304, 0.0
      %vm337 = vcmp.gt.f32.partialorder %v305, 0.0
      %vm338 = vcmp.gt.f32.partialorder %v306, 0.0
      %vm339 = vcmp.gt.f32.partialorder %v307, 0.0
      %vm340 = vcmp.gt.f32.partialorder %v308, 0.0
      %vm341 = vcmp.gt.f32.partialorder %v309, 0.0
      %vm342 = vcmp.gt.f32.partialorder %v310, 0.0
      %vm343 = vcmp.gt.f32.partialorder %v311, 0.0
      %vm344 = vcmp.gt.f32.partialorder %v312, 0.0
      %vm345 = vcmp.gt.f32.partialorder %v313, 0.0
      %vm346 = vcmp.gt.f32.partialorder %v314, 0.0
      %vm347 = vcmp.gt.f32.partialorder %v315, 0.0
      %v348 = vmul.f32 %v284, 0.2
      %v349 = vmul.f32 %v285, 0.2
      %v350 = vmul.f32 %v286, 0.2
      %v351 = vmul.f32 %v287, 0.2
      %v352 = vmul.f32 %v288, 0.2
      %v353 = vmul.f32 %v289, 0.2
      %v354 = vmul.f32 %v290, 0.2
      %v355 = vmul.f32 %v291, 0.2
      %v356 = vmul.f32 %v292, 0.2
      %v357 = vmul.f32 %v293, 0.2
      %v358 = vmul.f32 %v294, 0.2
      %v359 = vmul.f32 %v295, 0.2
      %v360 = vmul.f32 %v296, 0.2
      %v361 = vmul.f32 %v297, 0.2
      %v362 = vmul.f32 %v298, 0.2
      %v363 = vmul.f32 %v299, 0.2
      %v364 = vmul.f32 %v300, 0.2
      %v365 = vmul.f32 %v301, 0.2
      %v366 = vmul.f32 %v302, 0.2
      %v367 = vmul.f32 %v303, 0.2
      %v368 = vmul.f32 %v304, 0.2
      %v369 = vmul.f32 %v305, 0.2
      %v370 = vmul.f32 %v306, 0.2
      %v371 = vmul.f32 %v307, 0.2
      %v372 = vmul.f32 %v308, 0.2
      %v373 = vmul.f32 %v309, 0.2
      %v374 = vmul.f32 %v310, 0.2
      %v375 = vmul.f32 %v311, 0.2
      %v376 = vmul.f32 %v312, 0.2
      %v377 = vmul.f32 %v313, 0.2
      %v378 = vmul.f32 %v314, 0.2
      %v379 = vmul.f32 %v315, 0.2
      %v380 = vsel %vm316, %v284, %v348
      %v381 = vsel %vm317, %v285, %v349
      %v382 = vsel %vm318, %v286, %v350
      %v383 = vsel %vm319, %v287, %v351
      %v384 = vsel %vm320, %v288, %v352
      %v385 = vsel %vm321, %v289, %v353
      %v386 = vsel %vm322, %v290, %v354
      %v387 = vsel %vm323, %v291, %v355
      %v388 = vsel %vm324, %v292, %v356
      %v389 = vsel %vm325, %v293, %v357
      %v390 = vsel %vm326, %v294, %v358
      %v391 = vsel %vm327, %v295, %v359
      %v392 = vsel %vm328, %v296, %v360
      %v393 = vsel %vm329, %v297, %v361
      %v394 = vsel %vm330, %v298, %v362
      %v395 = vsel %vm331, %v299, %v363
      %v396 = vsel %vm332, %v300, %v364
      %v397 = vsel %vm333, %v301, %v365
      %v398 = vsel %vm334, %v302, %v366
      %v399 = vsel %vm335, %v303, %v367
      %v400 = vsel %vm336, %v304, %v368
      %v401 = vsel %vm337, %v305, %v369
      %v402 = vsel %vm338, %v306, %v370
      %v403 = vsel %vm339, %v307, %v371
      %v404 = vsel %vm340, %v308, %v372
      %v405 = vsel %vm341, %v309, %v373
      %v406 = vsel %vm342, %v310, %v374
      %v407 = vsel %vm343, %v311, %v375
      %v408 = vsel %vm344, %v312, %v376
      %v409 = vsel %vm345, %v313, %v377
      %v410 = vsel %vm346, %v314, %v378
      %v411 = vsel %vm347, %v315, %v379
      %v412 = vpack.c.bf16 %v381, %v380
      %v413 = vpack.c.bf16 %v383, %v382
      %v414 = vpack.c.bf16 %v385, %v384
      %v415 = vpack.c.bf16 %v387, %v386
      %v416 = vpack.c.bf16 %v389, %v388
      %v417 = vpack.c.bf16 %v391, %v390
      %v418 = vpack.c.bf16 %v393, %v392
      %v419 = vpack.c.bf16 %v395, %v394
      %v420 = vpack.c.bf16 %v397, %v396
      %v421 = vpack.c.bf16 %v399, %v398
      %v422 = vpack.c.bf16 %v401, %v400
      %v423 = vpack.c.bf16 %v403, %v402
      %v424 = vpack.c.bf16 %v405, %v404
      %v425 = vpack.c.bf16 %v407, %v406
      %v426 = vpack.c.bf16 %v409, %v408
      %v427 = vpack.c.bf16 %v411, %v410
      %v444 = vunpack.c.l.b16 %v412
      %v445 = vunpack.c.h.b16 %v412
      %v446 = vunpack.c.l.b16 %v413
      %v447 = vunpack.c.h.b16 %v413
      %v448 = vunpack.c.l.b16 %v414
      %v449 = vunpack.c.h.b16 %v414
      %v450 = vunpack.c.l.b16 %v415
      %v451 = vunpack.c.h.b16 %v415
      %v452 = vunpack.c.l.b16 %v416
      %v453 = vunpack.c.h.b16 %v416
      %v454 = vunpack.c.l.b16 %v417
      %v455 = vunpack.c.h.b16 %v417
      %v456 = vunpack.c.l.b16 %v418
      %v457 = vunpack.c.h.b16 %v418
      %v458 = vunpack.c.l.b16 %v419
      %v459 = vunpack.c.h.b16 %v419
      %v460 = vunpack.c.l.b16 %v420
      %v461 = vunpack.c.h.b16 %v420
      %v462 = vunpack.c.l.b16 %v421
      %v463 = vunpack.c.h.b16 %v421
      %v464 = vunpack.c.l.b16 %v422
      %v465 = vunpack.c.h.b16 %v422
      %v466 = vunpack.c.l.b16 %v423
      %v467 = vunpack.c.h.b16 %v423
      %v468 = vunpack.c.l.b16 %v424
      %v469 = vunpack.c.h.b16 %v424
      %v470 = vunpack.c.l.b16 %v425
      %v471 = vunpack.c.h.b16 %v425
      %v472 = vunpack.c.l.b16 %v426
      %v473 = vunpack.c.h.b16 %v426
      %v474 = vunpack.c.l.b16 %v427
      %v475 = vunpack.c.h.b16 %v427
      %v476 = vpack.c.b16 %v444, %v444
      %v477 = vpack.c.b16 %v445, %v445
      %v478 = vpack.c.b16 %v446, %v446
      %v479 = vpack.c.b16 %v447, %v447
      %v480 = vpack.c.b16 %v448, %v448
      %v481 = vpack.c.b16 %v449, %v449
      %v482 = vpack.c.b16 %v450, %v450
      %v483 = vpack.c.b16 %v451, %v451
      %v484 = vpack.c.b16 %v452, %v452
      %v485 = vpack.c.b16 %v453, %v453
      %v486 = vpack.c.b16 %v454, %v454
      %v487 = vpack.c.b16 %v455, %v455
      %v488 = vpack.c.b16 %v456, %v456
      %v489 = vpack.c.b16 %v457, %v457
      %v490 = vpack.c.b16 %v458, %v458
      %v491 = vpack.c.b16 %v459, %v459
      %v492 = vpack.c.b16 %v460, %v460
      %v493 = vpack.c.b16 %v461, %v461
      %v494 = vpack.c.b16 %v462, %v462
      %v495 = vpack.c.b16 %v463, %v463
      %v496 = vpack.c.b16 %v464, %v464
      %v497 = vpack.c.b16 %v465, %v465
      %v498 = vpack.c.b16 %v466, %v466
      %v499 = vpack.c.b16 %v467, %v467
      %v500 = vpack.c.b16 %v468, %v468
      %v501 = vpack.c.b16 %v469, %v469
      %v502 = vpack.c.b16 %v470, %v470
      %v503 = vpack.c.b16 %v471, %v471
      %v504 = vpack.c.b16 %v472, %v472
      %v505 = vpack.c.b16 %v473, %v473
      %v506 = vpack.c.b16 %v474, %v474
      %v507 = vpack.c.b16 %v475, %v475
      %540 = vst [vmem:[%s172] sm:$0xf] %v476
      %541 = vst [vmem:[%s172 + $0x4] sm:$0xf] %v477
      %542 = vst [vmem:[%s172 + $0x8] sm:$0xf] %v478
      %543 = vst [vmem:[%s172 + $0xc] sm:$0xf] %v479
      %544 = vst [vmem:[%s172 + $0x10] sm:$0xf] %v480
      %545 = vst [vmem:[%s172 + $0x14] sm:$0xf] %v481
      %546 = vst [vmem:[%s172 + $0x18] sm:$0xf] %v482
      %547 = vst [vmem:[%s172 + $0x1c] sm:$0xf] %v483
      %548 = vst [vmem:[%s172 + $0x20] sm:$0xf] %v484
      %549 = vst [vmem:[%s172 + $0x24] sm:$0xf] %v485
      %550 = vst [vmem:[%s172 + $0x28] sm:$0xf] %v486
      %551 = vst [vmem:[%s172 + $0x2c] sm:$0xf] %v487
      %552 = vst [vmem:[%s172 + $0x30] sm:$0xf] %v488
      %553 = vst [vmem:[%s172 + $0x34] sm:$0xf] %v489
      %554 = vst [vmem:[%s172 + $0x38] sm:$0xf] %v490
      %555 = vst [vmem:[%s172 + $0x3c] sm:$0xf] %v491
      %556 = vst [vmem:[%s172 + $0x40] sm:$0xf] %v492
      %557 = vst [vmem:[%s172 + $0x44] sm:$0xf] %v493
      %558 = vst [vmem:[%s172 + $0x48] sm:$0xf] %v494
      %559 = vst [vmem:[%s172 + $0x4c] sm:$0xf] %v495
      %560 = vst [vmem:[%s172 + $0x50] sm:$0xf] %v496
      %561 = vst [vmem:[%s172 + $0x54] sm:$0xf] %v497
      %562 = vst [vmem:[%s172 + $0x58] sm:$0xf] %v498
      %563 = vst [vmem:[%s172 + $0x5c] sm:$0xf] %v499
      %564 = vst [vmem:[%s172 + $0x60] sm:$0xf] %v500
      %565 = vst [vmem:[%s172 + $0x64] sm:$0xf] %v501
      %566 = vst [vmem:[%s172 + $0x68] sm:$0xf] %v502
      %567 = vst [vmem:[%s172 + $0x6c] sm:$0xf] %v503
      %568 = vst [vmem:[%s172 + $0x70] sm:$0xf] %v504
      %569 = vst [vmem:[%s172 + $0x74] sm:$0xf] %v505
      %570 = vst [vmem:[%s172 + $0x78] sm:$0xf] %v506
      %571 = vst [vmem:[%s172 + $0x7c] sm:$0xf] %v507
      %s572 = smul.u32 32, %s14
      %p573 = scmp.lt.s32.totalorder %s572, 63
      %s574 = scalar_select %p573, %s572, 63
      %s575 = smul.addr %s574, 4
      %s576 = scalar_lea.vmem %s3, %s575
      // Predicated region
      $region33: #{dcgan_d_forward.10} parent=31 // pred_check
        %p577 = pneg %p100
      $region34: #{dcgan_d_forward.10} parent=31 // pred_check_branch
        %579 = sbr.rel (%p577) target = $region36
      $region35: #{dcgan_d_forward.10} parent=31 // pred_region
        %s580 = smul.u32 32, %s14
      $region36: #{dcgan_d_forward.10} parent=31 // pred_fallthru
        _
    $region32: #{dcgan_d_forward.10} parent=5 // pred_fallthru
      _
    %p581 = scmp.le.s32.totalorder 2, %s9
    // Predicated region
    $region37: #{dcgan_d_forward.10} parent=5 // pred_check
      %p582 = pneg %p581
    $region38: #{dcgan_d_forward.10} parent=5 // pred_check_branch
      %584 = sbr.rel (%p582) target = $region40
    $region39: #{dcgan_d_forward.10} parent=5 // pred_region
      %s585 = ssub.s32 %s9, 2
      // Predicated region
      $region41: #{dcgan_d_forward.10} parent=39 // pred_check
        %p586 = pneg %p106
      $region42: #{dcgan_d_forward.10} parent=39 // pred_check_branch
        %588 = sbr.rel (%p586) target = $region44
      $region43: #{dcgan_d_forward.10} parent=39 // pred_region
        %s589 = smul.u32 32, %s15
        %p590 = scmp.lt.s32.totalorder %s589, 63
        %s591 = scalar_select %p590, %s589, 63
        %s592 = smul.addr %s591, 4
        %s593 = scalar_lea.vmem %s3, %s592
      $region44: #{dcgan_d_forward.10} parent=39 // pred_fallthru
        _
    $region40: #{dcgan_d_forward.10} parent=5 // pred_fallthru
      _
  $region6: #{dcgan_d_forward.10} parent=0 // loop_footer
    %s13 = sadd.s32 1, %s9
  $region7: #{dcgan_d_forward.10} parent=0 // loop_footer_branch
    %8 = sbr.rel target = $region3
  $region8: #{dcgan_d_forward.10} parent=0 // loop_exit
    _

// kernel: dcgan_d_forward.11
$region0: #{dcgan_d_forward.11}
  #allocation0 [shape = 'u32[]', space=smem, size = 0x4, offset = 0x4, fixed_abs, tag = 'smem constant byte address 0x4 - core index']
  #allocation1 [shape = 'u32[144,128]{1,0:T(1,128)}', space=vmem, size = 0x12000, scoped, tag = 'internal scratch']
  %s0 = inlined_call_operand.vmem [shape: bf16[128,256], index: 0, kind: input, shape index: {}]
  %s1 = inlined_call_operand.vmem [shape: bf16[256,128], index: 1, kind: input, shape index: {}]
  %s2 = inlined_call_operand.vmem [shape: bf16[128,128], index: 2, kind: output, shape index: {0}]
  %s3 = inlined_call_operand.vmem [shape: f32[8,128], index: 3, kind: output, shape index: {1}]
  %s4 = inlined_call_operand.vmem [shape: f32[8,128], index: 4, kind: output, shape index: {2}]
  %5 = xla_tuple %s2, %s3, %s4
  %s6 = sld [smem:[#allocation0]]
  $region34: #{dcgan_d_forward.11} parent=0
    _
  %s8 = ssub.s32 1, %s6
  %s9 = scalar_select 0, %s8, %s6
  // Predicated region
  $region2: #{dcgan_d_forward.11} parent=0 // pred_check
    _
  $region3: #{dcgan_d_forward.11} parent=0 // pred_check_branch
    %11 = sbr.rel (0) target = $region5
  $region4: #{dcgan_d_forward.11} parent=0 // pred_region
    _
  $region5: #{dcgan_d_forward.11} parent=0 // pred_fallthru
    _
  // Predicated region
  $region6: #{dcgan_d_forward.11} parent=0 // pred_check
    _
  $region7: #{dcgan_d_forward.11} parent=0 // pred_check_branch
    %13 = sbr.rel (0) target = $region9
  $region8: #{dcgan_d_forward.11} parent=0 // pred_region
    _
  $region9: #{dcgan_d_forward.11} parent=0 // pred_fallthru
    _
  %v15 = vld [vmem:[%s0] sm:$0xff]
  %v16 = vld [vmem:[%s0 + $0x8] sm:$0xff]
  %v17 = vld [vmem:[%s0 + $0x10] sm:$0xff]
  %v18 = vld [vmem:[%s0 + $0x18] sm:$0xff]
  %v19 = vld [vmem:[%s0 + $0x20] sm:$0xff]
  %v20 = vld [vmem:[%s0 + $0x28] sm:$0xff]
  %v21 = vld [vmem:[%s0 + $0x30] sm:$0xff]
  %v22 = vld [vmem:[%s0 + $0x38] sm:$0xff]
  %v23 = vld [vmem:[%s0 + $0x40] sm:$0xff]
  %v24 = vld [vmem:[%s0 + $0x48] sm:$0xff]
  %v25 = vld [vmem:[%s0 + $0x50] sm:$0xff]
  %v26 = vld [vmem:[%s0 + $0x58] sm:$0xff]
  %v27 = vld [vmem:[%s0 + $0x60] sm:$0xff]
  %v28 = vld [vmem:[%s0 + $0x68] sm:$0xff]
  %v29 = vld [vmem:[%s0 + $0x70] sm:$0xff]
  %v30 = vld [vmem:[%s0 + $0x78] sm:$0xff]
  %v31 = vld [vmem:[%s1] sm:$0xf]
  %v32 = vld [vmem:[%s1 + $0x4] sm:$0xf]
  %v33 = vld [vmem:[%s1 + $0x8] sm:$0xf]
  %v34 = vld [vmem:[%s1 + $0xc] sm:$0xf]
  %v35 = vld [vmem:[%s1 + $0x10] sm:$0xf]
  %v36 = vld [vmem:[%s1 + $0x14] sm:$0xf]
  %v37 = vld [vmem:[%s1 + $0x18] sm:$0xf]
  %v38 = vld [vmem:[%s1 + $0x1c] sm:$0xf]
  %v39 = vld [vmem:[%s1 + $0x20] sm:$0xf]
  %v40 = vld [vmem:[%s1 + $0x24] sm:$0xf]
  %v41 = vld [vmem:[%s1 + $0x28] sm:$0xf]
  %v42 = vld [vmem:[%s1 + $0x2c] sm:$0xf]
  %v43 = vld [vmem:[%s1 + $0x30] sm:$0xf]
  %v44 = vld [vmem:[%s1 + $0x34] sm:$0xf]
  %v45 = vld [vmem:[%s1 + $0x38] sm:$0xf]
  %v46 = vld [vmem:[%s1 + $0x3c] sm:$0xf]
  %v47 = vld [vmem:[%s1 + $0x40] sm:$0xf]
  %v48 = vld [vmem:[%s1 + $0x44] sm:$0xf]
  %v49 = vld [vmem:[%s1 + $0x48] sm:$0xf]
  %v50 = vld [vmem:[%s1 + $0x4c] sm:$0xf]
  %v51 = vld [vmem:[%s1 + $0x50] sm:$0xf]
  %v52 = vld [vmem:[%s1 + $0x54] sm:$0xf]
  %v53 = vld [vmem:[%s1 + $0x58] sm:$0xf]
  %v54 = vld [vmem:[%s1 + $0x5c] sm:$0xf]
  %v55 = vld [vmem:[%s1 + $0x60] sm:$0xf]
  %v56 = vld [vmem:[%s1 + $0x64] sm:$0xf]
  %v57 = vld [vmem:[%s1 + $0x68] sm:$0xf]
  %v58 = vld [vmem:[%s1 + $0x6c] sm:$0xf]
  %v59 = vld [vmem:[%s1 + $0x70] sm:$0xf]
  %v60 = vld [vmem:[%s1 + $0x74] sm:$0xf]
  %v61 = vld [vmem:[%s1 + $0x78] sm:$0xf]
  %v62 = vld [vmem:[%s1 + $0x7c] sm:$0xf]
  %v79 = vunpack.c.l.b16 %v15
  %v80 = vunpack.c.h.b16 %v15
  %v81 = vunpack.c.l.b16 %v16
  %v82 = vunpack.c.h.b16 %v16
  %v83 = vunpack.c.l.b16 %v17
  %v84 = vunpack.c.h.b16 %v17
  %v85 = vunpack.c.l.b16 %v18
  %v86 = vunpack.c.h.b16 %v18
  %v87 = vunpack.c.l.b16 %v19
  %v88 = vunpack.c.h.b16 %v19
  %v89 = vunpack.c.l.b16 %v20
  %v90 = vunpack.c.h.b16 %v20
  %v91 = vunpack.c.l.b16 %v21
  %v92 = vunpack.c.h.b16 %v21
  %v93 = vunpack.c.l.b16 %v22
  %v94 = vunpack.c.h.b16 %v22
  %v95 = vunpack.c.l.b16 %v23
  %v96 = vunpack.c.h.b16 %v23
  %v97 = vunpack.c.l.b16 %v24
  %v98 = vunpack.c.h.b16 %v24
  %v99 = vunpack.c.l.b16 %v25
  %v100 = vunpack.c.h.b16 %v25
  %v101 = vunpack.c.l.b16 %v26
  %v102 = vunpack.c.h.b16 %v26
  %v103 = vunpack.c.l.b16 %v27
  %v104 = vunpack.c.h.b16 %v27
  %v105 = vunpack.c.l.b16 %v28
  %v106 = vunpack.c.h.b16 %v28
  %v107 = vunpack.c.l.b16 %v29
  %v108 = vunpack.c.h.b16 %v29
  %v109 = vunpack.c.l.b16 %v30
  %v110 = vunpack.c.h.b16 %v30
  %v111 = vpack.c.b16 %v81, %v79
  %v112 = vpack.c.b16 %v82, %v80
  %v113 = vpack.c.b16 %v85, %v83
  %v114 = vpack.c.b16 %v86, %v84
  %v115 = vpack.c.b16 %v89, %v87
  %v116 = vpack.c.b16 %v90, %v88
  %v117 = vpack.c.b16 %v93, %v91
  %v118 = vpack.c.b16 %v94, %v92
  %v119 = vpack.c.b16 %v97, %v95
  %v120 = vpack.c.b16 %v98, %v96
  %v121 = vpack.c.b16 %v101, %v99
  %v122 = vpack.c.b16 %v102, %v100
  %v123 = vpack.c.b16 %v105, %v103
  %v124 = vpack.c.b16 %v106, %v104
  %v125 = vpack.c.b16 %v109, %v107
  %v126 = vpack.c.b16 %v110, %v108
  %v175 = vunpack.c.l.b16 %v31
  %v176 = vunpack.c.l.b16 %v32
  %v177 = vunpack.c.l.b16 %v33
  %v178 = vunpack.c.l.b16 %v34
  %v179 = vunpack.c.l.b16 %v35
  %v180 = vunpack.c.l.b16 %v36
  %v181 = vunpack.c.l.b16 %v37
  %v182 = vunpack.c.l.b16 %v38
  %v183 = vunpack.c.l.b16 %v39
  %v184 = vunpack.c.l.b16 %v40
  %v185 = vunpack.c.l.b16 %v41
  %v186 = vunpack.c.l.b16 %v42
  %v187 = vunpack.c.l.b16 %v43
  %v188 = vunpack.c.l.b16 %v44
  %v189 = vunpack.c.l.b16 %v45
  %v190 = vunpack.c.l.b16 %v46
  %v191 = vunpack.c.l.b16 %v47
  %v192 = vunpack.c.l.b16 %v48
  %v193 = vunpack.c.l.b16 %v49
  %v194 = vunpack.c.l.b16 %v50
  %v195 = vunpack.c.l.b16 %v51
  %v196 = vunpack.c.l.b16 %v52
  %v197 = vunpack.c.l.b16 %v53
  %v198 = vunpack.c.l.b16 %v54
  %v199 = vunpack.c.l.b16 %v55
  %v200 = vunpack.c.l.b16 %v56
  %v201 = vunpack.c.l.b16 %v57
  %v202 = vunpack.c.l.b16 %v58
  %v203 = vunpack.c.l.b16 %v59
  %v204 = vunpack.c.l.b16 %v60
  %v205 = vunpack.c.l.b16 %v61
  %v206 = vunpack.c.l.b16 %v62
  %v207 = vpack.c.b16 %v176, %v175
  %v208 = vpack.c.b16 %v178, %v177
  %v209 = vpack.c.b16 %v180, %v179
  %v210 = vpack.c.b16 %v182, %v181
  %v211 = vpack.c.b16 %v184, %v183
  %v212 = vpack.c.b16 %v186, %v185
  %v213 = vpack.c.b16 %v188, %v187
  %v214 = vpack.c.b16 %v190, %v189
  %v215 = vpack.c.b16 %v192, %v191
  %v216 = vpack.c.b16 %v194, %v193
  %v217 = vpack.c.b16 %v196, %v195
  %v218 = vpack.c.b16 %v198, %v197
  %v219 = vpack.c.b16 %v200, %v199
  %v220 = vpack.c.b16 %v202, %v201
  %v221 = vpack.c.b16 %v204, %v203
  %v222 = vpack.c.b16 %v206, %v205
  %239 = vmatprep.subr.bf16.mxu0 0
  %240 = vmatpush1.bf16.msra.mxu0 %v207
  %241 = vmatprep.subr.bf16.mxu0 0
  %242 = vmatpush1.bf16.msra.mxu0 %v208
  %243 = vmatprep.subr.bf16.mxu0 0
  %244 = vmatpush1.bf16.msra.mxu0 %v209
  %245 = vmatprep.subr.bf16.mxu0 0
  %246 = vmatpush1.bf16.msra.mxu0 %v210
  %247 = vmatprep.subr.bf16.mxu0 0
  %248 = vmatpush1.bf16.msra.mxu0 %v211
  %249 = vmatprep.subr.bf16.mxu0 0
  %250 = vmatpush1.bf16.msra.mxu0 %v212
  %251 = vmatprep.subr.bf16.mxu0 0
  %252 = vmatpush1.bf16.msra.mxu0 %v213
  %253 = vmatprep.subr.bf16.mxu0 0
  %254 = vmatpush1.bf16.msra.mxu0 %v214
  %255 = vmatprep.subr.bf16.mxu0 0
  %256 = vmatpush1.bf16.msra.mxu0 %v215
  %257 = vmatprep.subr.bf16.mxu0 0
  %258 = vmatpush1.bf16.msra.mxu0 %v216
  %259 = vmatprep.subr.bf16.mxu0 0
  %260 = vmatpush1.bf16.msra.mxu0 %v217
  %261 = vmatprep.subr.bf16.mxu0 0
  %262 = vmatpush1.bf16.msra.mxu0 %v218
  %263 = vmatprep.subr.bf16.mxu0 0
  %264 = vmatpush1.bf16.msra.mxu0 %v219
  %265 = vmatprep.subr.bf16.mxu0 0
  %266 = vmatpush1.bf16.msra.mxu0 %v220
  %267 = vmatprep.subr.bf16.mxu0 0
  %268 = vmatpush1.bf16.msra.mxu0 %v221
  %269 = vmatprep.subr.bf16.mxu0 0
  %270 = vmatpush1.bf16.msra.mxu0 %v222
  %271 = vmatprep.mubr.bf16.mxu0 %v112
  %272 = vmatmul.mubr.bf16.gmra.mrb[0].mxu0 %v111
  %v273 = vpop.f32.mrb[0].mxu0
  %v274 = vadd.f32 0.0, %v273
  %v275 = vpop.f32.mrb[0].mxu0
  %v276 = vpop.f32.mrb[0].mxu0
  %v277 = vadd.f32 0.0, %v276
  %v278 = vpop.f32.mrb[0].mxu0
  %279 = vmatprep.mubr.bf16.mxu0 %v114
  %280 = vmatmul.mubr.bf16.gmra.mrb[0].mxu0 %v113
  %v281 = vpop.f32.mrb[0].mxu0
  %v282 = vadd.f32 0.0, %v281
  %v283 = vpop.f32.mrb[0].mxu0
  %v284 = vpop.f32.mrb[0].mxu0
  %v285 = vadd.f32 0.0, %v284
  %v286 = vpop.f32.mrb[0].mxu0
  %287 = vmatprep.mubr.bf16.mxu0 %v116
  %288 = vmatmul.mubr.bf16.gmra.mrb[0].mxu0 %v115
  %v289 = vpop.f32.mrb[0].mxu0
  %v290 = vadd.f32 0.0, %v289
  %v291 = vpop.f32.mrb[0].mxu0
  %v292 = vpop.f32.mrb[0].mxu0
  %v293 = vadd.f32 0.0, %v292
  %v294 = vpop.f32.mrb[0].mxu0
  %295 = vmatprep.mubr.bf16.mxu0 %v118
  %296 = vmatmul.mubr.bf16.gmra.mrb[0].mxu0 %v117
  %v297 = vpop.f32.mrb[0].mxu0
  %v298 = vadd.f32 0.0, %v297
  %v299 = vpop.f32.mrb[0].mxu0
  %v300 = vpop.f32.mrb[0].mxu0
  %v301 = vadd.f32 0.0, %v300
  %v302 = vpop.f32.mrb[0].mxu0
  %303 = vmatprep.mubr.bf16.mxu0 %v120
  %304 = vmatmul.mubr.bf16.gmra.mrb[0].mxu0 %v119
  %v305 = vpop.f32.mrb[0].mxu0
  %v306 = vadd.f32 0.0, %v305
  %v307 = vpop.f32.mrb[0].mxu0
  %v308 = vpop.f32.mrb[0].mxu0
  %v309 = vadd.f32 0.0, %v308
  %v310 = vpop.f32.mrb[0].mxu0
  %311 = vmatprep.mubr.bf16.mxu0 %v122
  %312 = vmatmul.mubr.bf16.gmra.mrb[0].mxu0 %v121
  %v313 = vpop.f32.mrb[0].mxu0
  %v314 = vadd.f32 0.0, %v313
  %v315 = vpop.f32.mrb[0].mxu0
  %v316 = vpop.f32.mrb[0].mxu0
  %v317 = vadd.f32 0.0, %v316
  %v318 = vpop.f32.mrb[0].mxu0
  %319 = vmatprep.mubr.bf16.mxu0 %v124
  %320 = vmatmul.mubr.bf16.gmra.mrb[0].mxu0 %v123
  %v321 = vpop.f32.mrb[0].mxu0
  %v322 = vadd.f32 0.0, %v321
  %v323 = vpop.f32.mrb[0].mxu0
  %v324 = vpop.f32.mrb[0].mxu0
  %v325 = vadd.f32 0.0, %v324
  %v326 = vpop.f32.mrb[0].mxu0
  %327 = vmatprep.mubr.bf16.mxu0 %v126
  %328 = vmatmul.mubr.bf16.gmra.mrb[0].mxu0 %v125
  %v329 = vpop.f32.mrb[0].mxu0
  %v330 = vadd.f32 0.0, %v329
  %v331 = vpop.f32.mrb[0].mxu0
  %v332 = vpop.f32.mrb[0].mxu0
  %v333 = vadd.f32 0.0, %v332
  %v334 = vpop.f32.mrb[0].mxu0
  %335 = vdwg.mxu0
  %v336 = vpack.c.bf16 %v277, %v274
  %v337 = vpack.c.bf16 %v285, %v282
  %v338 = vpack.c.bf16 %v293, %v290
  %v339 = vpack.c.bf16 %v301, %v298
  %v340 = vpack.c.bf16 %v309, %v306
  %v341 = vpack.c.bf16 %v317, %v314
  %v342 = vpack.c.bf16 %v325, %v322
  %v343 = vpack.c.bf16 %v333, %v330
  %v352 = vunpack.c.l.b16 %v336
  %v353 = vunpack.c.h.b16 %v336
  %v354 = vunpack.c.l.b16 %v337
  %v355 = vunpack.c.h.b16 %v337
  %v356 = vunpack.c.l.b16 %v338
  %v357 = vunpack.c.h.b16 %v338
  %v358 = vunpack.c.l.b16 %v339
  %v359 = vunpack.c.h.b16 %v339
  %v360 = vunpack.c.l.b16 %v340
  %v361 = vunpack.c.h.b16 %v340
  %v362 = vunpack.c.l.b16 %v341
  %v363 = vunpack.c.h.b16 %v341
  %v364 = vunpack.c.l.b16 %v342
  %v365 = vunpack.c.h.b16 %v342
  %v366 = vunpack.c.l.b16 %v343
  %v367 = vunpack.c.h.b16 %v343
  %v368 = vpack.c.b16 %v352, %v352
  %v369 = vpack.c.b16 %v353, %v353
  %v370 = vpack.c.b16 %v354, %v354
  %v371 = vpack.c.b16 %v355, %v355
  %v372 = vpack.c.b16 %v356, %v356
  %v373 = vpack.c.b16 %v357, %v357
  %v374 = vpack.c.b16 %v358, %v358
  %v375 = vpack.c.b16 %v359, %v359
  %v376 = vpack.c.b16 %v360, %v360
  %v377 = vpack.c.b16 %v361, %v361
  %v378 = vpack.c.b16 %v362, %v362
  %v379 = vpack.c.b16 %v363, %v363
  %v380 = vpack.c.b16 %v364, %v364
  %v381 = vpack.c.b16 %v365, %v365
  %v382 = vpack.c.b16 %v366, %v366
  %v383 = vpack.c.b16 %v367, %v367
  %400 = vst [vmem:[%s2] sm:$0xf] %v368
  %401 = vst [vmem:[%s2 + $0x4] sm:$0xf] %v369
  %402 = vst [vmem:[%s2 + $0x8] sm:$0xf] %v370
  %403 = vst [vmem:[%s2 + $0xc] sm:$0xf] %v371
  %404 = vst [vmem:[%s2 + $0x10] sm:$0xf] %v372
  %405 = vst [vmem:[%s2 + $0x14] sm:$0xf] %v373
  %406 = vst [vmem:[%s2 + $0x18] sm:$0xf] %v374
  %407 = vst [vmem:[%s2 + $0x1c] sm:$0xf] %v375
  %408 = vst [vmem:[%s2 + $0x20] sm:$0xf] %v376
  %409 = vst [vmem:[%s2 + $0x24] sm:$0xf] %v377
  %410 = vst [vmem:[%s2 + $0x28] sm:$0xf] %v378
  %411 = vst [vmem:[%s2 + $0x2c] sm:$0xf] %v379
  %412 = vst [vmem:[%s2 + $0x30] sm:$0xf] %v380
  %413 = vst [vmem:[%s2 + $0x34] sm:$0xf] %v381
  %414 = vst [vmem:[%s2 + $0x38] sm:$0xf] %v382
  %415 = vst [vmem:[%s2 + $0x3c] sm:$0xf] %v383
  %v416 = vadd.f32 %v274, %v277
  %v417 = vadd.f32 %v416, %v282
  %v418 = vadd.f32 %v417, %v285
  %v419 = vadd.f32 %v418, %v290
  %v420 = vadd.f32 %v419, %v293
  %v421 = vadd.f32 %v420, %v298
  %v422 = vadd.f32 %v421, %v301
  %v423 = vadd.f32 %v422, %v306
  %v424 = vadd.f32 %v423, %v309
  %v425 = vadd.f32 %v424, %v314
  %v426 = vadd.f32 %v425, %v317
  %v427 = vadd.f32 %v426, %v322
  %v428 = vadd.f32 %v427, %v325
  %v429 = vadd.f32 %v428, %v330
  %v430 = vadd.f32 %v429, %v333
  %v431 = vrot.slane %v430, 4
  %v432 = vadd.f32 %v430, %v431
  %v433 = vrot.slane %v432, 2
  %v434 = vadd.f32 %v432, %v433
  %v435 = vrot.slane %v434, 1
  %v436 = vadd.f32 %v434, %v435
  %v437 = vmul.f32 %v274, %v274
  %v438 = vmul.f32 %v277, %v277
  %v439 = vmul.f32 %v282, %v282
  %v440 = vmul.f32 %v285, %v285
  %v441 = vmul.f32 %v290, %v290
  %v442 = vmul.f32 %v293, %v293
  %v443 = vmul.f32 %v298, %v298
  %v444 = vmul.f32 %v301, %v301
  %v445 = vmul.f32 %v306, %v306
  %v446 = vmul.f32 %v309, %v309
  %v447 = vmul.f32 %v314, %v314
  %v448 = vmul.f32 %v317, %v317
  %v449 = vmul.f32 %v322, %v322
  %v450 = vmul.f32 %v325, %v325
  %v451 = vmul.f32 %v330, %v330
  %v452 = vmul.f32 %v333, %v333
  %v453 = vadd.f32 %v437, %v438
  %v454 = vadd.f32 %v453, %v439
  %v455 = vadd.f32 %v454, %v440
  %v456 = vadd.f32 %v455, %v441
  %v457 = vadd.f32 %v456, %v442
  %v458 = vadd.f32 %v457, %v443
  %v459 = vadd.f32 %v458, %v444
  %v460 = vadd.f32 %v459, %v445
  %v461 = vadd.f32 %v460, %v446
  %v462 = vadd.f32 %v461, %v447
  %v463 = vadd.f32 %v462, %v448
  %v464 = vadd.f32 %v463, %v449
  %v465 = vadd.f32 %v464, %v450
  %v466 = vadd.f32 %v465, %v451
  %v467 = vadd.f32 %v466, %v452
  %v468 = vrot.slane %v467, 4
  %v469 = vadd.f32 %v467, %v468
  %v470 = vrot.slane %v469, 2
  %v471 = vadd.f32 %v469, %v470
  %v472 = vrot.slane %v471, 1
  %v473 = vadd.f32 %v471, %v472
  %474 = vst [vmem:[%s3] sm:$0xff] %v436
  %475 = vst [vmem:[%s4] sm:$0xff] %v473
  // Predicated region
  $region10: #{dcgan_d_forward.11} parent=0 // pred_check
    _
  $region11: #{dcgan_d_forward.11} parent=0 // pred_check_branch
    %477 = sbr.rel (0) target = $region13
  $region12: #{dcgan_d_forward.11} parent=0 // pred_region
    _
  $region13: #{dcgan_d_forward.11} parent=0 // pred_fallthru
    _
  // Predicated region
  $region14: #{dcgan_d_forward.11} parent=0 // pred_check
    _
  $region15: #{dcgan_d_forward.11} parent=0 // pred_check_branch
    %479 = sbr.rel (0) target = $region17
  $region16: #{dcgan_d_forward.11} parent=0 // pred_region
    _
  $region17: #{dcgan_d_forward.11} parent=0 // pred_fallthru
    _
  // Predicated region
  $region18: #{dcgan_d_forward.11} parent=0 // pred_check
    _
  $region19: #{dcgan_d_forward.11} parent=0 // pred_check_branch
    %481 = sbr.rel (0) target = $region21
  $region20: #{dcgan_d_forward.11} parent=0 // pred_region
    _
  $region21: #{dcgan_d_forward.11} parent=0 // pred_fallthru
    _
  // Predicated region
  $region22: #{dcgan_d_forward.11} parent=0 // pred_check
    _
  $region23: #{dcgan_d_forward.11} parent=0 // pred_check_branch
    %483 = sbr.rel (0) target = $region25
  $region24: #{dcgan_d_forward.11} parent=0 // pred_region
    _
  $region25: #{dcgan_d_forward.11} parent=0 // pred_fallthru
    _
  // Predicated region
  $region26: #{dcgan_d_forward.11} parent=0 // pred_check
    _
  $region27: #{dcgan_d_forward.11} parent=0 // pred_check_branch
    %485 = sbr.rel (0) target = $region29
  $region28: #{dcgan_d_forward.11} parent=0 // pred_region
    _
  $region29: #{dcgan_d_forward.11} parent=0 // pred_fallthru
    _
  // Predicated region
  $region30: #{dcgan_d_forward.11} parent=0 // pred_check
    _
  $region31: #{dcgan_d_forward.11} parent=0 // pred_check_branch
    %487 = sbr.rel (0) target = $region33
  $region32: #{dcgan_d_forward.11} parent=0 // pred_region
    _
  $region33: #{dcgan_d_forward.11} parent=0 // pred_fallthru
    _

// kernel: dcgan_d_forward.12
$region0: #{dcgan_d_forward.12}
  #allocation0 [shape = 'u32[]', space=smem, size = 0x4, offset = 0x4, fixed_abs, tag = 'smem constant byte address 0x4 - core index']
  #allocation1 [shape = 'u32[144,128]{1,0:T(1,128)}', space=vmem, size = 0x12000, scoped, tag = 'internal scratch']
  %s0 = inlined_call_operand.vmem [shape: bf16[128,128], index: 0, kind: input, shape index: {}]
  %s1 = inlined_call_operand.vmem [shape: f32[1,128], index: 1, kind: input, shape index: {}]
  %s2 = inlined_call_operand.vmem [shape: f32[1,128], index: 2, kind: input, shape index: {}]
  %s3 = inlined_call_operand.vmem [shape: bf16[128,128], index: 3, kind: output, shape index: {}]
  %s4 = sld [smem:[#allocation0]]
  $region22: #{dcgan_d_forward.12} parent=0
    _
  %s6 = ssub.s32 1, %s4
  %s7 = scalar_select 0, %s6, %s4
  // Predicated region
  $region2: #{dcgan_d_forward.12} parent=0 // pred_check
    _
  $region3: #{dcgan_d_forward.12} parent=0 // pred_check_branch
    %9 = sbr.rel (0) target = $region5
  $region4: #{dcgan_d_forward.12} parent=0 // pred_region
    _
  $region5: #{dcgan_d_forward.12} parent=0 // pred_fallthru
    _
  // Predicated region
  $region6: #{dcgan_d_forward.12} parent=0 // pred_check
    _
  $region7: #{dcgan_d_forward.12} parent=0 // pred_check_branch
    %11 = sbr.rel (0) target = $region9
  $region8: #{dcgan_d_forward.12} parent=0 // pred_region
    _
  $region9: #{dcgan_d_forward.12} parent=0 // pred_fallthru
    _
  // Predicated region
  $region10: #{dcgan_d_forward.12} parent=0 // pred_check
    _
  $region11: #{dcgan_d_forward.12} parent=0 // pred_check_branch
    %13 = sbr.rel (0) target = $region13
  $region12: #{dcgan_d_forward.12} parent=0 // pred_region
    _
  $region13: #{dcgan_d_forward.12} parent=0 // pred_fallthru
    _
  %v14 = vld [vmem:[%s0] sm:$0xf]
  %v15 = vld [vmem:[%s0 + $0x4] sm:$0xf]
  %v16 = vld [vmem:[%s0 + $0x8] sm:$0xf]
  %v17 = vld [vmem:[%s0 + $0xc] sm:$0xf]
  %v18 = vld [vmem:[%s0 + $0x10] sm:$0xf]
  %v19 = vld [vmem:[%s0 + $0x14] sm:$0xf]
  %v20 = vld [vmem:[%s0 + $0x18] sm:$0xf]
  %v21 = vld [vmem:[%s0 + $0x1c] sm:$0xf]
  %v22 = vld [vmem:[%s0 + $0x20] sm:$0xf]
  %v23 = vld [vmem:[%s0 + $0x24] sm:$0xf]
  %v24 = vld [vmem:[%s0 + $0x28] sm:$0xf]
  %v25 = vld [vmem:[%s0 + $0x2c] sm:$0xf]
  %v26 = vld [vmem:[%s0 + $0x30] sm:$0xf]
  %v27 = vld [vmem:[%s0 + $0x34] sm:$0xf]
  %v28 = vld [vmem:[%s0 + $0x38] sm:$0xf]
  %v29 = vld [vmem:[%s0 + $0x3c] sm:$0xf]
  %v30 = vunpack.c.l.bf16 %v14
  %v31 = vunpack.c.l.bf16 %v15
  %v32 = vunpack.c.l.bf16 %v16
  %v33 = vunpack.c.l.bf16 %v17
  %v34 = vunpack.c.l.bf16 %v18
  %v35 = vunpack.c.l.bf16 %v19
  %v36 = vunpack.c.l.bf16 %v20
  %v37 = vunpack.c.l.bf16 %v21
  %v38 = vunpack.c.l.bf16 %v22
  %v39 = vunpack.c.l.bf16 %v23
  %v40 = vunpack.c.l.bf16 %v24
  %v41 = vunpack.c.l.bf16 %v25
  %v42 = vunpack.c.l.bf16 %v26
  %v43 = vunpack.c.l.bf16 %v27
  %v44 = vunpack.c.l.bf16 %v28
  %v45 = vunpack.c.l.bf16 %v29
  %v46 = vld [vmem:[%s1] sm:$0x1]
  %v48 = vlaneseq
  %v49 = vshrl.u32 %v48, 7
  %v50 = vsub.s32 0, %v49
  %v51 = vrot.slane %v46, %v50
  %v53 = vmul.f32 %v30, %v51
  %v54 = vmul.f32 %v31, %v51
  %v55 = vmul.f32 %v32, %v51
  %v56 = vmul.f32 %v33, %v51
  %v57 = vmul.f32 %v34, %v51
  %v58 = vmul.f32 %v35, %v51
  %v59 = vmul.f32 %v36, %v51
  %v60 = vmul.f32 %v37, %v51
  %v61 = vmul.f32 %v38, %v51
  %v62 = vmul.f32 %v39, %v51
  %v63 = vmul.f32 %v40, %v51
  %v64 = vmul.f32 %v41, %v51
  %v65 = vmul.f32 %v42, %v51
  %v66 = vmul.f32 %v43, %v51
  %v67 = vmul.f32 %v44, %v51
  %v68 = vmul.f32 %v45, %v51
  %v69 = vld [vmem:[%s2] sm:$0x1]
  %v71 = vlaneseq
  %v72 = vshrl.u32 %v71, 7
  %v73 = vsub.s32 0, %v72
  %v74 = vrot.slane %v69, %v73
  %v76 = vadd.f32 %v53, %v74
  %v77 = vadd.f32 %v54, %v74
  %v78 = vadd.f32 %v55, %v74
  %v79 = vadd.f32 %v56, %v74
  %v80 = vadd.f32 %v57, %v74
  %v81 = vadd.f32 %v58, %v74
  %v82 = vadd.f32 %v59, %v74
  %v83 = vadd.f32 %v60, %v74
  %v84 = vadd.f32 %v61, %v74
  %v85 = vadd.f32 %v62, %v74
  %v86 = vadd.f32 %v63, %v74
  %v87 = vadd.f32 %v64, %v74
  %v88 = vadd.f32 %v65, %v74
  %v89 = vadd.f32 %v66, %v74
  %v90 = vadd.f32 %v67, %v74
  %v91 = vadd.f32 %v68, %v74
  %vm92 = vcmp.gt.f32.partialorder %v76, 0.0
  %vm93 = vcmp.gt.f32.partialorder %v77, 0.0
  %vm94 = vcmp.gt.f32.partialorder %v78, 0.0
  %vm95 = vcmp.gt.f32.partialorder %v79, 0.0
  %vm96 = vcmp.gt.f32.partialorder %v80, 0.0
  %vm97 = vcmp.gt.f32.partialorder %v81, 0.0
  %vm98 = vcmp.gt.f32.partialorder %v82, 0.0
  %vm99 = vcmp.gt.f32.partialorder %v83, 0.0
  %vm100 = vcmp.gt.f32.partialorder %v84, 0.0
  %vm101 = vcmp.gt.f32.partialorder %v85, 0.0
  %vm102 = vcmp.gt.f32.partialorder %v86, 0.0
  %vm103 = vcmp.gt.f32.partialorder %v87, 0.0
  %vm104 = vcmp.gt.f32.partialorder %v88, 0.0
  %vm105 = vcmp.gt.f32.partialorder %v89, 0.0
  %vm106 = vcmp.gt.f32.partialorder %v90, 0.0
  %vm107 = vcmp.gt.f32.partialorder %v91, 0.0
  %v108 = vmul.f32 %v76, 0.2
  %v109 = vmul.f32 %v77, 0.2
  %v110 = vmul.f32 %v78, 0.2
  %v111 = vmul.f32 %v79, 0.2
  %v112 = vmul.f32 %v80, 0.2
  %v113 = vmul.f32 %v81, 0.2
  %v114 = vmul.f32 %v82, 0.2
  %v115 = vmul.f32 %v83, 0.2
  %v116 = vmul.f32 %v84, 0.2
  %v117 = vmul.f32 %v85, 0.2
  %v118 = vmul.f32 %v86, 0.2
  %v119 = vmul.f32 %v87, 0.2
  %v120 = vmul.f32 %v88, 0.2
  %v121 = vmul.f32 %v89, 0.2
  %v122 = vmul.f32 %v90, 0.2
  %v123 = vmul.f32 %v91, 0.2
  %v124 = vsel %vm92, %v76, %v108
  %v125 = vsel %vm93, %v77, %v109
  %v126 = vsel %vm94, %v78, %v110
  %v127 = vsel %vm95, %v79, %v111
  %v128 = vsel %vm96, %v80, %v112
  %v129 = vsel %vm97, %v81, %v113
  %v130 = vsel %vm98, %v82, %v114
  %v131 = vsel %vm99, %v83, %v115
  %v132 = vsel %vm100, %v84, %v116
  %v133 = vsel %vm101, %v85, %v117
  %v134 = vsel %vm102, %v86, %v118
  %v135 = vsel %vm103, %v87, %v119
  %v136 = vsel %vm104, %v88, %v120
  %v137 = vsel %vm105, %v89, %v121
  %v138 = vsel %vm106, %v90, %v122
  %v139 = vsel %vm107, %v91, %v123
  %v140 = vpack.c.bf16 %v125, %v124
  %v141 = vpack.c.bf16 %v127, %v126
  %v142 = vpack.c.bf16 %v129, %v128
  %v143 = vpack.c.bf16 %v131, %v130
  %v144 = vpack.c.bf16 %v133, %v132
  %v145 = vpack.c.bf16 %v135, %v134
  %v146 = vpack.c.bf16 %v137, %v136
  %v147 = vpack.c.bf16 %v139, %v138
  %v156 = vunpack.c.l.b16 %v140
  %v157 = vunpack.c.h.b16 %v140
  %v158 = vunpack.c.l.b16 %v141
  %v159 = vunpack.c.h.b16 %v141
  %v160 = vunpack.c.l.b16 %v142
  %v161 = vunpack.c.h.b16 %v142
  %v162 = vunpack.c.l.b16 %v143
  %v163 = vunpack.c.h.b16 %v143
  %v164 = vunpack.c.l.b16 %v144
  %v165 = vunpack.c.h.b16 %v144
  %v166 = vunpack.c.l.b16 %v145
  %v167 = vunpack.c.h.b16 %v145
  %v168 = vunpack.c.l.b16 %v146
  %v169 = vunpack.c.h.b16 %v146
  %v170 = vunpack.c.l.b16 %v147
  %v171 = vunpack.c.h.b16 %v147
  %v172 = vpack.c.b16 %v156, %v156
  %v173 = vpack.c.b16 %v157, %v157
  %v174 = vpack.c.b16 %v158, %v158
  %v175 = vpack.c.b16 %v159, %v159
  %v176 = vpack.c.b16 %v160, %v160
  %v177 = vpack.c.b16 %v161, %v161
  %v178 = vpack.c.b16 %v162, %v162
  %v179 = vpack.c.b16 %v163, %v163
  %v180 = vpack.c.b16 %v164, %v164
  %v181 = vpack.c.b16 %v165, %v165
  %v182 = vpack.c.b16 %v166, %v166
  %v183 = vpack.c.b16 %v167, %v167
  %v184 = vpack.c.b16 %v168, %v168
  %v185 = vpack.c.b16 %v169, %v169
  %v186 = vpack.c.b16 %v170, %v170
  %v187 = vpack.c.b16 %v171, %v171
  %204 = vst [vmem:[%s3] sm:$0xf] %v172
  %205 = vst [vmem:[%s3 + $0x4] sm:$0xf] %v173
  %206 = vst [vmem:[%s3 + $0x8] sm:$0xf] %v174
  %207 = vst [vmem:[%s3 + $0xc] sm:$0xf] %v175
  %208 = vst [vmem:[%s3 + $0x10] sm:$0xf] %v176
  %209 = vst [vmem:[%s3 + $0x14] sm:$0xf] %v177
  %210 = vst [vmem:[%s3 + $0x18] sm:$0xf] %v178
  %211 = vst [vmem:[%s3 + $0x1c] sm:$0xf] %v179
  %212 = vst [vmem:[%s3 + $0x20] sm:$0xf] %v180
  %213 = vst [vmem:[%s3 + $0x24] sm:$0xf] %v181
  %214 = vst [vmem:[%s3 + $0x28] sm:$0xf] %v182
  %215 = vst [vmem:[%s3 + $0x2c] sm:$0xf] %v183
  %216 = vst [vmem:[%s3 + $0x30] sm:$0xf] %v184
  %217 = vst [vmem:[%s3 + $0x34] sm:$0xf] %v185
  %218 = vst [vmem:[%s3 + $0x38] sm:$0xf] %v186
  %219 = vst [vmem:[%s3 + $0x3c] sm:$0xf] %v187
  // Predicated region
  $region14: #{dcgan_d_forward.12} parent=0 // pred_check
    _
  $region15: #{dcgan_d_forward.12} parent=0 // pred_check_branch
    %221 = sbr.rel (0) target = $region17
  $region16: #{dcgan_d_forward.12} parent=0 // pred_region
    _
  $region17: #{dcgan_d_forward.12} parent=0 // pred_fallthru
    _
  // Predicated region
  $region18: #{dcgan_d_forward.12} parent=0 // pred_check
    _
  $region19: #{dcgan_d_forward.12} parent=0 // pred_check_branch
    %223 = sbr.rel (0) target = $region21
  $region20: #{dcgan_d_forward.12} parent=0 // pred_region
    _
  $region21: #{dcgan_d_forward.12} parent=0 // pred_fallthru
    _

// kernel: dcgan_d_forward.13
$region0: #{dcgan_d_forward.13}
  #allocation0 [shape = 'u32[]', space=smem, size = 0x4, offset = 0x4, fixed_abs, tag = 'smem constant byte address 0x4 - core index']
  #allocation1 [shape = 'u32[144,128]{1,0:T(1,128)}', space=vmem, size = 0x12000, scoped, tag = 'internal scratch']
  %s0 = inlined_call_operand.vmem [shape: bf16[32,512], index: 0, kind: input, shape index: {}]
  %s1 = inlined_call_operand.vmem [shape: bf16[512,128], index: 1, kind: input, shape index: {}]
  %s2 = inlined_call_operand.vmem [shape: bf16[32,128], index: 2, kind: output, shape index: {0}]
  %s3 = inlined_call_operand.vmem [shape: f32[8,128], index: 3, kind: output, shape index: {1}]
  %s4 = inlined_call_operand.vmem [shape: f32[8,128], index: 4, kind: output, shape index: {2}]
  %5 = xla_tuple %s2, %s3, %s4
  %s6 = sld [smem:[#allocation0]]
  $region34: #{dcgan_d_forward.13} parent=0
    _
  %s8 = ssub.s32 1, %s6
  %s9 = scalar_select 0, %s8, %s6
  // Predicated region
  $region2: #{dcgan_d_forward.13} parent=0 // pred_check
    _
  $region3: #{dcgan_d_forward.13} parent=0 // pred_check_branch
    %11 = sbr.rel (0) target = $region5
  $region4: #{dcgan_d_forward.13} parent=0 // pred_region
    _
  $region5: #{dcgan_d_forward.13} parent=0 // pred_fallthru
    _
  // Predicated region
  $region6: #{dcgan_d_forward.13} parent=0 // pred_check
    _
  $region7: #{dcgan_d_forward.13} parent=0 // pred_check_branch
    %13 = sbr.rel (0) target = $region9
  $region8: #{dcgan_d_forward.13} parent=0 // pred_region
    _
  $region9: #{dcgan_d_forward.13} parent=0 // pred_fallthru
    _
  %v15 = vld [vmem:[%s0] sm:$0xff]
  %v16 = vld [vmem:[%s0 + $0x8] sm:$0xff]
  %v17 = vld [vmem:[%s0 + $0x10] sm:$0xff]
  %v18 = vld [vmem:[%s0 + $0x18] sm:$0xff]
  %v19 = vld [vmem:[%s0 + $0x20] sm:$0xff]
  %v20 = vld [vmem:[%s0 + $0x28] sm:$0xff]
  %v21 = vld [vmem:[%s0 + $0x30] sm:$0xff]
  %v22 = vld [vmem:[%s0 + $0x38] sm:$0xff]
  %v23 = vld [vmem:[%s1] sm:$0xf]
  %v24 = vld [vmem:[%s1 + $0x4] sm:$0xf]
  %v25 = vld [vmem:[%s1 + $0x8] sm:$0xf]
  %v26 = vld [vmem:[%s1 + $0xc] sm:$0xf]
  %v27 = vld [vmem:[%s1 + $0x10] sm:$0xf]
  %v28 = vld [vmem:[%s1 + $0x14] sm:$0xf]
  %v29 = vld [vmem:[%s1 + $0x18] sm:$0xf]
  %v30 = vld [vmem:[%s1 + $0x1c] sm:$0xf]
  %v31 = vld [vmem:[%s1 + $0x20] sm:$0xf]
  %v32 = vld [vmem:[%s1 + $0x24] sm:$0xf]
  %v33 = vld [vmem:[%s1 + $0x28] sm:$0xf]
  %v34 = vld [vmem:[%s1 + $0x2c] sm:$0xf]
  %v35 = vld [vmem:[%s1 + $0x30] sm:$0xf]
  %v36 = vld [vmem:[%s1 + $0x34] sm:$0xf]
  %v37 = vld [vmem:[%s1 + $0x38] sm:$0xf]
  %v38 = vld [vmem:[%s1 + $0x3c] sm:$0xf]
  %v39 = vld [vmem:[%s1 + $0x40] sm:$0xf]
  %v40 = vld [vmem:[%s1 + $0x44] sm:$0xf]
  %v41 = vld [vmem:[%s1 + $0x48] sm:$0xf]
  %v42 = vld [vmem:[%s1 + $0x4c] sm:$0xf]
  %v43 = vld [vmem:[%s1 + $0x50] sm:$0xf]
  %v44 = vld [vmem:[%s1 + $0x54] sm:$0xf]
  %v45 = vld [vmem:[%s1 + $0x58] sm:$0xf]
  %v46 = vld [vmem:[%s1 + $0x5c] sm:$0xf]
  %v47 = vld [vmem:[%s1 + $0x60] sm:$0xf]
  %v48 = vld [vmem:[%s1 + $0x64] sm:$0xf]
  %v49 = vld [vmem:[%s1 + $0x68] sm:$0xf]
  %v50 = vld [vmem:[%s1 + $0x6c] sm:$0xf]
  %v51 = vld [vmem:[%s1 + $0x70] sm:$0xf]
  %v52 = vld [vmem:[%s1 + $0x74] sm:$0xf]
  %v53 = vld [vmem:[%s1 + $0x78] sm:$0xf]
  %v54 = vld [vmem:[%s1 + $0x7c] sm:$0xf]
  %v55 = vld [vmem:[%s1 + $0x80] sm:$0xf]
  %v56 = vld [vmem:[%s1 + $0x84] sm:$0xf]
  %v57 = vld [vmem:[%s1 + $0x88] sm:$0xf]
  %v58 = vld [vmem:[%s1 + $0x8c] sm:$0xf]
  %v59 = vld [vmem:[%s1 + $0x90] sm:$0xf]
  %v60 = vld [vmem:[%s1 + $0x94] sm:$0xf]
  %v61 = vld [vmem:[%s1 + $0x98] sm:$0xf]
  %v62 = vld [vmem:[%s1 + $0x9c] sm:$0xf]
  %v63 = vld [vmem:[%s1 + $0xa0] sm:$0xf]
  %v64 = vld [vmem:[%s1 + $0xa4] sm:$0xf]
  %v65 = vld [vmem:[%s1 + $0xa8] sm:$0xf]
  %v66 = vld [vmem:[%s1 + $0xac] sm:$0xf]
  %v67 = vld [vmem:[%s1 + $0xb0] sm:$0xf]
  %v68 = vld [vmem:[%s1 + $0xb4] sm:$0xf]
  %v69 = vld [vmem:[%s1 + $0xb8] sm:$0xf]
  %v70 = vld [vmem:[%s1 + $0xbc] sm:$0xf]
  %v71 = vld [vmem:[%s1 + $0xc0] sm:$0xf]
  %v72 = vld [vmem:[%s1 + $0xc4] sm:$0xf]
  %v73 = vld [vmem:[%s1 + $0xc8] sm:$0xf]
  %v74 = vld [vmem:[%s1 + $0xcc] sm:$0xf]
  %v75 = vld [vmem:[%s1 + $0xd0] sm:$0xf]
  %v76 = vld [vmem:[%s1 + $0xd4] sm:$0xf]
  %v77 = vld [vmem:[%s1 + $0xd8] sm:$0xf]
  %v78 = vld [vmem:[%s1 + $0xdc] sm:$0xf]
  %v79 = vld [vmem:[%s1 + $0xe0] sm:$0xf]
  %v80 = vld [vmem:[%s1 + $0xe4] sm:$0xf]
  %v81 = vld [vmem:[%s1 + $0xe8] sm:$0xf]
  %v82 = vld [vmem:[%s1 + $0xec] sm:$0xf]
  %v83 = vld [vmem:[%s1 + $0xf0] sm:$0xf]
  %v84 = vld [vmem:[%s1 + $0xf4] sm:$0xf]
  %v85 = vld [vmem:[%s1 + $0xf8] sm:$0xf]
  %v86 = vld [vmem:[%s1 + $0xfc] sm:$0xf]
  %v95 = vunpack.c.l.b16 %v15
  %v96 = vunpack.c.h.b16 %v15
  %v97 = vunpack.c.l.b16 %v16
  %v98 = vunpack.c.h.b16 %v16
  %v99 = vunpack.c.l.b16 %v17
  %v100 = vunpack.c.h.b16 %v17
  %v101 = vunpack.c.l.b16 %v18
  %v102 = vunpack.c.h.b16 %v18
  %v103 = vunpack.c.l.b16 %v19
  %v104 = vunpack.c.h.b16 %v19
  %v105 = vunpack.c.l.b16 %v20
  %v106 = vunpack.c.h.b16 %v20
  %v107 = vunpack.c.l.b16 %v21
  %v108 = vunpack.c.h.b16 %v21
  %v109 = vunpack.c.l.b16 %v22
  %v110 = vunpack.c.h.b16 %v22
  %v111 = vpack.c.b16 %v99, %v95
  %v112 = vpack.c.b16 %v100, %v96
  %v113 = vpack.c.b16 %v101, %v97
  %v114 = vpack.c.b16 %v102, %v98
  %v115 = vpack.c.b16 %v107, %v103
  %v116 = vpack.c.b16 %v108, %v104
  %v117 = vpack.c.b16 %v109, %v105
  %v118 = vpack.c.b16 %v110, %v106
  %v191 = vunpack.c.l.b16 %v23
  %v192 = vunpack.c.l.b16 %v24
  %v193 = vunpack.c.l.b16 %v25
  %v194 = vunpack.c.l.b16 %v26
  %v195 = vunpack.c.l.b16 %v27
  %v196 = vunpack.c.l.b16 %v28
  %v197 = vunpack.c.l.b16 %v29
  %v198 = vunpack.c.l.b16 %v30
  %v199 = vunpack.c.l.b16 %v31
  %v200 = vunpack.c.l.b16 %v32
  %v201 = vunpack.c.l.b16 %v33
  %v202 = vunpack.c.l.b16 %v34
  %v203 = vunpack.c.l.b16 %v35
  %v204 = vunpack.c.l.b16 %v36
  %v205 = vunpack.c.l.b16 %v37
  %v206 = vunpack.c.l.b16 %v38
  %v207 = vunpack.c.l.b16 %v39
  %v208 = vunpack.c.l.b16 %v40
  %v209 = vunpack.c.l.b16 %v41
  %v210 = vunpack.c.l.b16 %v42
  %v211 = vunpack.c.l.b16 %v43
  %v212 = vunpack.c.l.b16 %v44
  %v213 = vunpack.c.l.b16 %v45
  %v214 = vunpack.c.l.b16 %v46
  %v215 = vunpack.c.l.b16 %v47
  %v216 = vunpack.c.l.b16 %v48
  %v217 = vunpack.c.l.b16 %v49
  %v218 = vunpack.c.l.b16 %v50
  %v219 = vunpack.c.l.b16 %v51
  %v220 = vunpack.c.l.b16 %v52
  %v221 = vunpack.c.l.b16 %v53
  %v222 = vunpack.c.l.b16 %v54
  %v223 = vunpack.c.l.b16 %v55
  %v224 = vunpack.c.l.b16 %v56
  %v225 = vunpack.c.l.b16 %v57
  %v226 = vunpack.c.l.b16 %v58
  %v227 = vunpack.c.l.b16 %v59
  %v228 = vunpack.c.l.b16 %v60
  %v229 = vunpack.c.l.b16 %v61
  %v230 = vunpack.c.l.b16 %v62
  %v231 = vunpack.c.l.b16 %v63
  %v232 = vunpack.c.l.b16 %v64
  %v233 = vunpack.c.l.b16 %v65
  %v234 = vunpack.c.l.b16 %v66
  %v235 = vunpack.c.l.b16 %v67
  %v236 = vunpack.c.l.b16 %v68
  %v237 = vunpack.c.l.b16 %v69
  %v238 = vunpack.c.l.b16 %v70
  %v239 = vunpack.c.l.b16 %v71
  %v240 = vunpack.c.l.b16 %v72
  %v241 = vunpack.c.l.b16 %v73
  %v242 = vunpack.c.l.b16 %v74
  %v243 = vunpack.c.l.b16 %v75
  %v244 = vunpack.c.l.b16 %v76
  %v245 = vunpack.c.l.b16 %v77
  %v246 = vunpack.c.l.b16 %v78
  %v247 = vunpack.c.l.b16 %v79
  %v248 = vunpack.c.l.b16 %v80
  %v249 = vunpack.c.l.b16 %v81
  %v250 = vunpack.c.l.b16 %v82
  %v251 = vunpack.c.l.b16 %v83
  %v252 = vunpack.c.l.b16 %v84
  %v253 = vunpack.c.l.b16 %v85
  %v254 = vunpack.c.l.b16 %v86
  %v255 = vpack.c.b16 %v192, %v191
  %v256 = vpack.c.b16 %v194, %v193
  %v257 = vpack.c.b16 %v196, %v195
  %v258 = vpack.c.b16 %v198, %v197
  %v259 = vpack.c.b16 %v200, %v199
  %v260 = vpack.c.b16 %v202, %v201
  %v261 = vpack.c.b16 %v204, %v203
  %v262 = vpack.c.b16 %v206, %v205
  %v263 = vpack.c.b16 %v208, %v207
  %v264 = vpack.c.b16 %v210, %v209
  %v265 = vpack.c.b16 %v212, %v211
  %v266 = vpack.c.b16 %v214, %v213
  %v267 = vpack.c.b16 %v216, %v215
  %v268 = vpack.c.b16 %v218, %v217
  %v269 = vpack.c.b16 %v220, %v219
  %v270 = vpack.c.b16 %v222, %v221
  %v271 = vpack.c.b16 %v224, %v223
  %v272 = vpack.c.b16 %v226, %v225
  %v273 = vpack.c.b16 %v228, %v227
  %v274 = vpack.c.b16 %v230, %v229
  %v275 = vpack.c.b16 %v232, %v231
  %v276 = vpack.c.b16 %v234, %v233
  %v277 = vpack.c.b16 %v236, %v235
  %v278 = vpack.c.b16 %v238, %v237
  %v279 = vpack.c.b16 %v240, %v239
  %v280 = vpack.c.b16 %v242, %v241
  %v281 = vpack.c.b16 %v244, %v243
  %v282 = vpack.c.b16 %v246, %v245
  %v283 = vpack.c.b16 %v248, %v247
  %v284 = vpack.c.b16 %v250, %v249
  %v285 = vpack.c.b16 %v252, %v251
  %v286 = vpack.c.b16 %v254, %v253
  %319 = vmatprep.subr.bf16.mxu0 0
  %320 = vmatpush1.bf16.msra.mxu0 %v255
  %321 = vmatprep.subr.bf16.mxu0 0
  %322 = vmatpush1.bf16.msra.mxu0 %v256
  %323 = vmatprep.subr.bf16.mxu0 0
  %324 = vmatpush1.bf16.msra.mxu0 %v257
  %325 = vmatprep.subr.bf16.mxu0 0
  %326 = vmatpush1.bf16.msra.mxu0 %v258
  %327 = vmatprep.subr.bf16.mxu0 0
  %328 = vmatpush1.bf16.msra.mxu0 %v259
  %329 = vmatprep.subr.bf16.mxu0 0
  %330 = vmatpush1.bf16.msra.mxu0 %v260
  %331 = vmatprep.subr.bf16.mxu0 0
  %332 = vmatpush1.bf16.msra.mxu0 %v261
  %333 = vmatprep.subr.bf16.mxu0 0
  %334 = vmatpush1.bf16.msra.mxu0 %v262
  %335 = vmatprep.subr.bf16.mxu0 0
  %336 = vmatpush1.bf16.msra.mxu0 %v263
  %337 = vmatprep.subr.bf16.mxu0 0
  %338 = vmatpush1.bf16.msra.mxu0 %v264
  %339 = vmatprep.subr.bf16.mxu0 0
  %340 = vmatpush1.bf16.msra.mxu0 %v265
  %341 = vmatprep.subr.bf16.mxu0 0
  %342 = vmatpush1.bf16.msra.mxu0 %v266
  %343 = vmatprep.subr.bf16.mxu0 0
  %344 = vmatpush1.bf16.msra.mxu0 %v267
  %345 = vmatprep.subr.bf16.mxu0 0
  %346 = vmatpush1.bf16.msra.mxu0 %v268
  %347 = vmatprep.subr.bf16.mxu0 0
  %348 = vmatpush1.bf16.msra.mxu0 %v269
  %349 = vmatprep.subr.bf16.mxu0 0
  %350 = vmatpush1.bf16.msra.mxu0 %v270
  %351 = vmatprep.mubr.bf16.mxu0 %v112
  %352 = vmatmul.mubr.bf16.gmra.mrb[0].mxu0 %v111
  %v353 = vpop.f32.mrb[0].mxu0
  %v354 = vadd.f32 0.0, %v353
  %v355 = vpop.f32.mrb[0].mxu0
  %v356 = vpop.f32.mrb[0].mxu0
  %v357 = vadd.f32 0.0, %v356
  %v358 = vpop.f32.mrb[0].mxu0
  %359 = vmatprep.mubr.bf16.mxu0 %v116
  %360 = vmatmul.mubr.bf16.gmra.mrb[0].mxu0 %v115
  %v361 = vpop.f32.mrb[0].mxu0
  %v362 = vadd.f32 0.0, %v361
  %v363 = vpop.f32.mrb[0].mxu0
  %v364 = vpop.f32.mrb[0].mxu0
  %v365 = vadd.f32 0.0, %v364
  %v366 = vpop.f32.mrb[0].mxu0
  %367 = vdwg.mxu0
  %368 = vmatprep.subr.bf16.mxu0 0
  %369 = vmatpush1.bf16.msra.mxu0 %v271
  %370 = vmatprep.subr.bf16.mxu0 0
  %371 = vmatpush1.bf16.msra.mxu0 %v272
  %372 = vmatprep.subr.bf16.mxu0 0
  %373 = vmatpush1.bf16.msra.mxu0 %v273
  %374 = vmatprep.subr.bf16.mxu0 0
  %375 = vmatpush1.bf16.msra.mxu0 %v274
  %376 = vmatprep.subr.bf16.mxu0 0
  %377 = vmatpush1.bf16.msra.mxu0 %v275
  %378 = vmatprep.subr.bf16.mxu0 0
  %379 = vmatpush1.bf16.msra.mxu0 %v276
  %380 = vmatprep.subr.bf16.mxu0 0
  %381 = vmatpush1.bf16.msra.mxu0 %v277
  %382 = vmatprep.subr.bf16.mxu0 0
  %383 = vmatpush1.bf16.msra.mxu0 %v278
  %384 = vmatprep.subr.bf16.mxu0 0
  %385 = vmatpush1.bf16.msra.mxu0 %v279
  %386 = vmatprep.subr.bf16.mxu0 0
  %387 = vmatpush1.bf16.msra.mxu0 %v280
  %388 = vmatprep.subr.bf16.mxu0 0
  %389 = vmatpush1.bf16.msra.mxu0 %v281
  %390 = vmatprep.subr.bf16.mxu0 0
  %391 = vmatpush1.bf16.msra.mxu0 %v282
  %392 = vmatprep.subr.bf16.mxu0 0
  %393 = vmatpush1.bf16.msra.mxu0 %v283
  %394 = vmatprep.subr.bf16.mxu0 0
  %395 = vmatpush1.bf16.msra.mxu0 %v284
  %396 = vmatprep.subr.bf16.mxu0 0
  %397 = vmatpush1.bf16.msra.mxu0 %v285
  %398 = vmatprep.subr.bf16.mxu0 0
  %399 = vmatpush1.bf16.msra.mxu0 %v286
  %400 = vmatprep.mubr.bf16.mxu0 %v114
  %401 = vmatmul.mubr.bf16.gmra.mrb[0].mxu0 %v113
  %v402 = vpop.f32.mrb[0].mxu0
  %v403 = vadd.f32 %v354, %v402
  %v404 = vpop.f32.mrb[0].mxu0
  %v405 = vpop.f32.mrb[0].mxu0
  %v406 = vadd.f32 %v357, %v405
  %v407 = vpop.f32.mrb[0].mxu0
  %408 = vmatprep.mubr.bf16.mxu0 %v118
  %409 = vmatmul.mubr.bf16.gmra.mrb[0].mxu0 %v117
  %v410 = vpop.f32.mrb[0].mxu0
  %v411 = vadd.f32 %v362, %v410
  %v412 = vpop.f32.mrb[0].mxu0
  %v413 = vpop.f32.mrb[0].mxu0
  %v414 = vadd.f32 %v365, %v413
  %v415 = vpop.f32.mrb[0].mxu0
  %416 = vdwg.mxu0
  %v417 = vpack.c.bf16 %v406, %v403
  %v418 = vpack.c.bf16 %v414, %v411
  %v421 = vunpack.c.l.b16 %v417
  %v422 = vunpack.c.h.b16 %v417
  %v423 = vunpack.c.l.b16 %v418
  %v424 = vunpack.c.h.b16 %v418
  %v425 = vpack.c.b16 %v421, %v421
  %v426 = vpack.c.b16 %v422, %v422
  %v427 = vpack.c.b16 %v423, %v423
  %v428 = vpack.c.b16 %v424, %v424
  %433 = vst [vmem:[%s2] sm:$0xf] %v425
  %434 = vst [vmem:[%s2 + $0x4] sm:$0xf] %v426
  %435 = vst [vmem:[%s2 + $0x8] sm:$0xf] %v427
  %436 = vst [vmem:[%s2 + $0xc] sm:$0xf] %v428
  %v437 = vadd.f32 %v403, %v406
  %v438 = vadd.f32 %v437, %v411
  %v439 = vadd.f32 %v438, %v414
  %v440 = vrot.slane %v439, 4
  %v441 = vadd.f32 %v439, %v440
  %v442 = vrot.slane %v441, 2
  %v443 = vadd.f32 %v441, %v442
  %v444 = vrot.slane %v443, 1
  %v445 = vadd.f32 %v443, %v444
  %v446 = vmul.f32 %v403, %v403
  %v447 = vmul.f32 %v406, %v406
  %v448 = vmul.f32 %v411, %v411
  %v449 = vmul.f32 %v414, %v414
  %v450 = vadd.f32 %v446, %v447
  %v451 = vadd.f32 %v450, %v448
  %v452 = vadd.f32 %v451, %v449
  %v453 = vrot.slane %v452, 4
  %v454 = vadd.f32 %v452, %v453
  %v455 = vrot.slane %v454, 2
  %v456 = vadd.f32 %v454, %v455
  %v457 = vrot.slane %v456, 1
  %v458 = vadd.f32 %v456, %v457
  %459 = vst [vmem:[%s3] sm:$0xff] %v445
  %460 = vst [vmem:[%s4] sm:$0xff] %v458
  // Predicated region
  $region10: #{dcgan_d_forward.13} parent=0 // pred_check
    _
  $region11: #{dcgan_d_forward.13} parent=0 // pred_check_branch
    %462 = sbr.rel (0) target = $region13
  $region12: #{dcgan_d_forward.13} parent=0 // pred_region
    _
  $region13: #{dcgan_d_forward.13} parent=0 // pred_fallthru
    _
  // Predicated region
  $region14: #{dcgan_d_forward.13} parent=0 // pred_check
    _
  $region15: #{dcgan_d_forward.13} parent=0 // pred_check_branch
    %464 = sbr.rel (0) target = $region17
  $region16: #{dcgan_d_forward.13} parent=0 // pred_region
    _
  $region17: #{dcgan_d_forward.13} parent=0 // pred_fallthru
    _
  // Predicated region
  $region18: #{dcgan_d_forward.13} parent=0 // pred_check
    _
  $region19: #{dcgan_d_forward.13} parent=0 // pred_check_branch
    %466 = sbr.rel (0) target = $region21
  $region20: #{dcgan_d_forward.13} parent=0 // pred_region
    _
  $region21: #{dcgan_d_forward.13} parent=0 // pred_fallthru
    _
  // Predicated region
  $region22: #{dcgan_d_forward.13} parent=0 // pred_check
    _
  $region23: #{dcgan_d_forward.13} parent=0 // pred_check_branch
    %468 = sbr.rel (0) target = $region25
  $region24: #{dcgan_d_forward.13} parent=0 // pred_region
    _
  $region25: #{dcgan_d_forward.13} parent=0 // pred_fallthru
    _
  // Predicated region
  $region26: #{dcgan_d_forward.13} parent=0 // pred_check
    _
  $region27: #{dcgan_d_forward.13} parent=0 // pred_check_branch
    %470 = sbr.rel (0) target = $region29
  $region28: #{dcgan_d_forward.13} parent=0 // pred_region
    _
  $region29: #{dcgan_d_forward.13} parent=0 // pred_fallthru
    _
  // Predicated region
  $region30: #{dcgan_d_forward.13} parent=0 // pred_check
    _
  $region31: #{dcgan_d_forward.13} parent=0 // pred_check_branch
    %472 = sbr.rel (0) target = $region33
  $region32: #{dcgan_d_forward.13} parent=0 // pred_region
    _
  $region33: #{dcgan_d_forward.13} parent=0 // pred_fallthru
    _

// kernel: dcgan_d_forward.14
$region0: #{dcgan_d_forward.14}
  #allocation0 [shape = 'u32[]', space=smem, size = 0x4, offset = 0x4, fixed_abs, tag = 'smem constant byte address 0x4 - core index']
  #allocation1 [shape = 'u32[144,128]{1,0:T(1,128)}', space=vmem, size = 0x12000, scoped, tag = 'internal scratch']
  %s0 = inlined_call_operand.vmem [shape: bf16[32,128], index: 0, kind: input, shape index: {}]
  %s1 = inlined_call_operand.vmem [shape: f32[1,128], index: 1, kind: input, shape index: {}]
  %s2 = inlined_call_operand.vmem [shape: f32[1,128], index: 2, kind: input, shape index: {}]
  %s3 = inlined_call_operand.vmem [shape: bf16[32,128], index: 3, kind: output, shape index: {}]
  %s4 = sld [smem:[#allocation0]]
  $region22: #{dcgan_d_forward.14} parent=0
    _
  %s6 = ssub.s32 1, %s4
  %s7 = scalar_select 0, %s6, %s4
  // Predicated region
  $region2: #{dcgan_d_forward.14} parent=0 // pred_check
    _
  $region3: #{dcgan_d_forward.14} parent=0 // pred_check_branch
    %9 = sbr.rel (0) target = $region5
  $region4: #{dcgan_d_forward.14} parent=0 // pred_region
    _
  $region5: #{dcgan_d_forward.14} parent=0 // pred_fallthru
    _
  // Predicated region
  $region6: #{dcgan_d_forward.14} parent=0 // pred_check
    _
  $region7: #{dcgan_d_forward.14} parent=0 // pred_check_branch
    %11 = sbr.rel (0) target = $region9
  $region8: #{dcgan_d_forward.14} parent=0 // pred_region
    _
  $region9: #{dcgan_d_forward.14} parent=0 // pred_fallthru
    _
  // Predicated region
  $region10: #{dcgan_d_forward.14} parent=0 // pred_check
    _
  $region11: #{dcgan_d_forward.14} parent=0 // pred_check_branch
    %13 = sbr.rel (0) target = $region13
  $region12: #{dcgan_d_forward.14} parent=0 // pred_region
    _
  $region13: #{dcgan_d_forward.14} parent=0 // pred_fallthru
    _
  %v14 = vld [vmem:[%s0] sm:$0xf]
  %v15 = vld [vmem:[%s0 + $0x4] sm:$0xf]
  %v16 = vld [vmem:[%s0 + $0x8] sm:$0xf]
  %v17 = vld [vmem:[%s0 + $0xc] sm:$0xf]
  %v18 = vunpack.c.l.bf16 %v14
  %v19 = vunpack.c.l.bf16 %v15
  %v20 = vunpack.c.l.bf16 %v16
  %v21 = vunpack.c.l.bf16 %v17
  %v22 = vld [vmem:[%s1] sm:$0x1]
  %v24 = vlaneseq
  %v25 = vshrl.u32 %v24, 7
  %v26 = vsub.s32 0, %v25
  %v27 = vrot.slane %v22, %v26
  %v29 = vmul.f32 %v18, %v27
  %v30 = vmul.f32 %v19, %v27
  %v31 = vmul.f32 %v20, %v27
  %v32 = vmul.f32 %v21, %v27
  %v33 = vld [vmem:[%s2] sm:$0x1]
  %v35 = vlaneseq
  %v36 = vshrl.u32 %v35, 7
  %v37 = vsub.s32 0, %v36
  %v38 = vrot.slane %v33, %v37
  %v40 = vadd.f32 %v29, %v38
  %v41 = vadd.f32 %v30, %v38
  %v42 = vadd.f32 %v31, %v38
  %v43 = vadd.f32 %v32, %v38
  %vm44 = vcmp.gt.f32.partialorder %v40, 0.0
  %vm45 = vcmp.gt.f32.partialorder %v41, 0.0
  %vm46 = vcmp.gt.f32.partialorder %v42, 0.0
  %vm47 = vcmp.gt.f32.partialorder %v43, 0.0
  %v48 = vmul.f32 %v40, 0.2
  %v49 = vmul.f32 %v41, 0.2
  %v50 = vmul.f32 %v42, 0.2
  %v51 = vmul.f32 %v43, 0.2
  %v52 = vsel %vm44, %v40, %v48
  %v53 = vsel %vm45, %v41, %v49
  %v54 = vsel %vm46, %v42, %v50
  %v55 = vsel %vm47, %v43, %v51
  %v56 = vpack.c.bf16 %v53, %v52
  %v57 = vpack.c.bf16 %v55, %v54
  %v60 = vunpack.c.l.b16 %v56
  %v61 = vunpack.c.h.b16 %v56
  %v62 = vunpack.c.l.b16 %v57
  %v63 = vunpack.c.h.b16 %v57
  %v64 = vpack.c.b16 %v60, %v60
  %v65 = vpack.c.b16 %v61, %v61
  %v66 = vpack.c.b16 %v62, %v62
  %v67 = vpack.c.b16 %v63, %v63
  %72 = vst [vmem:[%s3] sm:$0xf] %v64
  %73 = vst [vmem:[%s3 + $0x4] sm:$0xf] %v65
  %74 = vst [vmem:[%s3 + $0x8] sm:$0xf] %v66
  %75 = vst [vmem:[%s3 + $0xc] sm:$0xf] %v67
  // Predicated region
  $region14: #{dcgan_d_forward.14} parent=0 // pred_check
    _
  $region15: #{dcgan_d_forward.14} parent=0 // pred_check_branch
    %77 = sbr.rel (0) target = $region17
  $region16: #{dcgan_d_forward.14} parent=0 // pred_region
    _
  $region17: #{dcgan_d_forward.14} parent=0 // pred_fallthru
    _
  // Predicated region
  $region18: #{dcgan_d_forward.14} parent=0 // pred_check
    _
  $region19: #{dcgan_d_forward.14} parent=0 // pred_check_branch
    %79 = sbr.rel (0) target = $region21
  $region20: #{dcgan_d_forward.14} parent=0 // pred_region
    _
  $region21: #{dcgan_d_forward.14} parent=0 // pred_fallthru
    _

// kernel: dcgan_d_forward.15
$region0: #{dcgan_d_forward.15}
  #allocation0 [shape = 'u32[]', space=smem, size = 0x4, offset = 0x4, fixed_abs, tag = 'smem constant byte address 0x4 - core index']
  #allocation1 [shape = 'u32[144,128]{1,0:T(1,128)}', space=vmem, size = 0x12000, scoped, tag = 'internal scratch']
  %s0 = inlined_call_operand.vmem [shape: bf16[16,1024], index: 0, kind: input, shape index: {}]
  %s1 = inlined_call_operand.vmem [shape: bf16[1024,128], index: 1, kind: input, shape index: {}]
  %s2 = inlined_call_operand.vmem [shape: f32[16,128], index: 2, kind: output, shape index: {}]
  %s3 = sld [smem:[#allocation0]]
  $region18: #{dcgan_d_forward.15} parent=0
    _
  %s5 = ssub.s32 1, %s3
  %s6 = scalar_select 0, %s5, %s3
  // Predicated region
  $region2: #{dcgan_d_forward.15} parent=0 // pred_check
    _
  $region3: #{dcgan_d_forward.15} parent=0 // pred_check_branch
    %8 = sbr.rel (0) target = $region5
  $region4: #{dcgan_d_forward.15} parent=0 // pred_region
    _
  $region5: #{dcgan_d_forward.15} parent=0 // pred_fallthru
    _
  // Predicated region
  $region6: #{dcgan_d_forward.15} parent=0 // pred_check
    _
  $region7: #{dcgan_d_forward.15} parent=0 // pred_check_branch
    %10 = sbr.rel (0) target = $region9
  $region8: #{dcgan_d_forward.15} parent=0 // pred_region
    _
  $region9: #{dcgan_d_forward.15} parent=0 // pred_fallthru
    _
  %v12 = vld [vmem:[%s0] sm:$0xff]
  %v13 = vld [vmem:[%s0 + $0x8] sm:$0xff]
  %v14 = vld [vmem:[%s0 + $0x10] sm:$0xff]
  %v15 = vld [vmem:[%s0 + $0x18] sm:$0xff]
  %v16 = vld [vmem:[%s0 + $0x20] sm:$0xff]
  %v17 = vld [vmem:[%s0 + $0x28] sm:$0xff]
  %v18 = vld [vmem:[%s0 + $0x30] sm:$0xff]
  %v19 = vld [vmem:[%s0 + $0x38] sm:$0xff]
  %v20 = vld [vmem:[%s1] sm:$0xf]
  %v21 = vld [vmem:[%s1 + $0x4] sm:$0xf]
  %v22 = vld [vmem:[%s1 + $0x8] sm:$0xf]
  %v23 = vld [vmem:[%s1 + $0xc] sm:$0xf]
  %v24 = vld [vmem:[%s1 + $0x10] sm:$0xf]
  %v25 = vld [vmem:[%s1 + $0x14] sm:$0xf]
  %v26 = vld [vmem:[%s1 + $0x18] sm:$0xf]
  %v27 = vld [vmem:[%s1 + $0x1c] sm:$0xf]
  %v28 = vld [vmem:[%s1 + $0x20] sm:$0xf]
  %v29 = vld [vmem:[%s1 + $0x24] sm:$0xf]
  %v30 = vld [vmem:[%s1 + $0x28] sm:$0xf]
  %v31 = vld [vmem:[%s1 + $0x2c] sm:$0xf]
  %v32 = vld [vmem:[%s1 + $0x30] sm:$0xf]
  %v33 = vld [vmem:[%s1 + $0x34] sm:$0xf]
  %v34 = vld [vmem:[%s1 + $0x38] sm:$0xf]
  %v35 = vld [vmem:[%s1 + $0x3c] sm:$0xf]
  %v36 = vld [vmem:[%s1 + $0x40] sm:$0xf]
  %v37 = vld [vmem:[%s1 + $0x44] sm:$0xf]
  %v38 = vld [vmem:[%s1 + $0x48] sm:$0xf]
  %v39 = vld [vmem:[%s1 + $0x4c] sm:$0xf]
  %v40 = vld [vmem:[%s1 + $0x50] sm:$0xf]
  %v41 = vld [vmem:[%s1 + $0x54] sm:$0xf]
  %v42 = vld [vmem:[%s1 + $0x58] sm:$0xf]
  %v43 = vld [vmem:[%s1 + $0x5c] sm:$0xf]
  %v44 = vld [vmem:[%s1 + $0x60] sm:$0xf]
  %v45 = vld [vmem:[%s1 + $0x64] sm:$0xf]
  %v46 = vld [vmem:[%s1 + $0x68] sm:$0xf]
  %v47 = vld [vmem:[%s1 + $0x6c] sm:$0xf]
  %v48 = vld [vmem:[%s1 + $0x70] sm:$0xf]
  %v49 = vld [vmem:[%s1 + $0x74] sm:$0xf]
  %v50 = vld [vmem:[%s1 + $0x78] sm:$0xf]
  %v51 = vld [vmem:[%s1 + $0x7c] sm:$0xf]
  %v52 = vld [vmem:[%s1 + $0x80] sm:$0xf]
  %v53 = vld [vmem:[%s1 + $0x84] sm:$0xf]
  %v54 = vld [vmem:[%s1 + $0x88] sm:$0xf]
  %v55 = vld [vmem:[%s1 + $0x8c] sm:$0xf]
  %v56 = vld [vmem:[%s1 + $0x90] sm:$0xf]
  %v57 = vld [vmem:[%s1 + $0x94] sm:$0xf]
  %v58 = vld [vmem:[%s1 + $0x98] sm:$0xf]
  %v59 = vld [vmem:[%s1 + $0x9c] sm:$0xf]
  %v60 = vld [vmem:[%s1 + $0xa0] sm:$0xf]
  %v61 = vld [vmem:[%s1 + $0xa4] sm:$0xf]
  %v62 = vld [vmem:[%s1 + $0xa8] sm:$0xf]
  %v63 = vld [vmem:[%s1 + $0xac] sm:$0xf]
  %v64 = vld [vmem:[%s1 + $0xb0] sm:$0xf]
  %v65 = vld [vmem:[%s1 + $0xb4] sm:$0xf]
  %v66 = vld [vmem:[%s1 + $0xb8] sm:$0xf]
  %v67 = vld [vmem:[%s1 + $0xbc] sm:$0xf]
  %v68 = vld [vmem:[%s1 + $0xc0] sm:$0xf]
  %v69 = vld [vmem:[%s1 + $0xc4] sm:$0xf]
  %v70 = vld [vmem:[%s1 + $0xc8] sm:$0xf]
  %v71 = vld [vmem:[%s1 + $0xcc] sm:$0xf]
  %v72 = vld [vmem:[%s1 + $0xd0] sm:$0xf]
  %v73 = vld [vmem:[%s1 + $0xd4] sm:$0xf]
  %v74 = vld [vmem:[%s1 + $0xd8] sm:$0xf]
  %v75 = vld [vmem:[%s1 + $0xdc] sm:$0xf]
  %v76 = vld [vmem:[%s1 + $0xe0] sm:$0xf]
  %v77 = vld [vmem:[%s1 + $0xe4] sm:$0xf]
  %v78 = vld [vmem:[%s1 + $0xe8] sm:$0xf]
  %v79 = vld [vmem:[%s1 + $0xec] sm:$0xf]
  %v80 = vld [vmem:[%s1 + $0xf0] sm:$0xf]
  %v81 = vld [vmem:[%s1 + $0xf4] sm:$0xf]
  %v82 = vld [vmem:[%s1 + $0xf8] sm:$0xf]
  %v83 = vld [vmem:[%s1 + $0xfc] sm:$0xf]
  %v84 = vld [vmem:[%s1 + $0x100] sm:$0xf]
  %v85 = vld [vmem:[%s1 + $0x104] sm:$0xf]
  %v86 = vld [vmem:[%s1 + $0x108] sm:$0xf]
  %v87 = vld [vmem:[%s1 + $0x10c] sm:$0xf]
  %v88 = vld [vmem:[%s1 + $0x110] sm:$0xf]
  %v89 = vld [vmem:[%s1 + $0x114] sm:$0xf]
  %v90 = vld [vmem:[%s1 + $0x118] sm:$0xf]
  %v91 = vld [vmem:[%s1 + $0x11c] sm:$0xf]
  %v92 = vld [vmem:[%s1 + $0x120] sm:$0xf]
  %v93 = vld [vmem:[%s1 + $0x124] sm:$0xf]
  %v94 = vld [vmem:[%s1 + $0x128] sm:$0xf]
  %v95 = vld [vmem:[%s1 + $0x12c] sm:$0xf]
  %v96 = vld [vmem:[%s1 + $0x130] sm:$0xf]
  %v97 = vld [vmem:[%s1 + $0x134] sm:$0xf]
  %v98 = vld [vmem:[%s1 + $0x138] sm:$0xf]
  %v99 = vld [vmem:[%s1 + $0x13c] sm:$0xf]
  %v100 = vld [vmem:[%s1 + $0x140] sm:$0xf]
  %v101 = vld [vmem:[%s1 + $0x144] sm:$0xf]
  %v102 = vld [vmem:[%s1 + $0x148] sm:$0xf]
  %v103 = vld [vmem:[%s1 + $0x14c] sm:$0xf]
  %v104 = vld [vmem:[%s1 + $0x150] sm:$0xf]
  %v105 = vld [vmem:[%s1 + $0x154] sm:$0xf]
  %v106 = vld [vmem:[%s1 + $0x158] sm:$0xf]
  %v107 = vld [vmem:[%s1 + $0x15c] sm:$0xf]
  %v108 = vld [vmem:[%s1 + $0x160] sm:$0xf]
  %v109 = vld [vmem:[%s1 + $0x164] sm:$0xf]
  %v110 = vld [vmem:[%s1 + $0x168] sm:$0xf]
  %v111 = vld [vmem:[%s1 + $0x16c] sm:$0xf]
  %v112 = vld [vmem:[%s1 + $0x170] sm:$0xf]
  %v113 = vld [vmem:[%s1 + $0x174] sm:$0xf]
  %v114 = vld [vmem:[%s1 + $0x178] sm:$0xf]
  %v115 = vld [vmem:[%s1 + $0x17c] sm:$0xf]
  %v116 = vld [vmem:[%s1 + $0x180] sm:$0xf]
  %v117 = vld [vmem:[%s1 + $0x184] sm:$0xf]
  %v118 = vld [vmem:[%s1 + $0x188] sm:$0xf]
  %v119 = vld [vmem:[%s1 + $0x18c] sm:$0xf]
  %v120 = vld [vmem:[%s1 + $0x190] sm:$0xf]
  %v121 = vld [vmem:[%s1 + $0x194] sm:$0xf]
  %v122 = vld [vmem:[%s1 + $0x198] sm:$0xf]
  %v123 = vld [vmem:[%s1 + $0x19c] sm:$0xf]
  %v124 = vld [vmem:[%s1 + $0x1a0] sm:$0xf]
  %v125 = vld [vmem:[%s1 + $0x1a4] sm:$0xf]
  %v126 = vld [vmem:[%s1 + $0x1a8] sm:$0xf]
  %v127 = vld [vmem:[%s1 + $0x1ac] sm:$0xf]
  %v128 = vld [vmem:[%s1 + $0x1b0] sm:$0xf]
  %v129 = vld [vmem:[%s1 + $0x1b4] sm:$0xf]
  %v130 = vld [vmem:[%s1 + $0x1b8] sm:$0xf]
  %v131 = vld [vmem:[%s1 + $0x1bc] sm:$0xf]
  %v132 = vld [vmem:[%s1 + $0x1c0] sm:$0xf]
  %v133 = vld [vmem:[%s1 + $0x1c4] sm:$0xf]
  %v134 = vld [vmem:[%s1 + $0x1c8] sm:$0xf]
  %v135 = vld [vmem:[%s1 + $0x1cc] sm:$0xf]
  %v136 = vld [vmem:[%s1 + $0x1d0] sm:$0xf]
  %v137 = vld [vmem:[%s1 + $0x1d4] sm:$0xf]
  %v138 = vld [vmem:[%s1 + $0x1d8] sm:$0xf]
  %v139 = vld [vmem:[%s1 + $0x1dc] sm:$0xf]
  %v140 = vld [vmem:[%s1 + $0x1e0] sm:$0xf]
  %v141 = vld [vmem:[%s1 + $0x1e4] sm:$0xf]
  %v142 = vld [vmem:[%s1 + $0x1e8] sm:$0xf]
  %v143 = vld [vmem:[%s1 + $0x1ec] sm:$0xf]
  %v144 = vld [vmem:[%s1 + $0x1f0] sm:$0xf]
  %v145 = vld [vmem:[%s1 + $0x1f4] sm:$0xf]
  %v146 = vld [vmem:[%s1 + $0x1f8] sm:$0xf]
  %v147 = vld [vmem:[%s1 + $0x1fc] sm:$0xf]
  %v156 = vunpack.c.l.b16 %v12
  %v157 = vunpack.c.h.b16 %v12
  %v158 = vunpack.c.l.b16 %v13
  %v159 = vunpack.c.h.b16 %v13
  %v160 = vunpack.c.l.b16 %v14
  %v161 = vunpack.c.h.b16 %v14
  %v162 = vunpack.c.l.b16 %v15
  %v163 = vunpack.c.h.b16 %v15
  %v164 = vunpack.c.l.b16 %v16
  %v165 = vunpack.c.h.b16 %v16
  %v166 = vunpack.c.l.b16 %v17
  %v167 = vunpack.c.h.b16 %v17
  %v168 = vunpack.c.l.b16 %v18
  %v169 = vunpack.c.h.b16 %v18
  %v170 = vunpack.c.l.b16 %v19
  %v171 = vunpack.c.h.b16 %v19
  %v172 = vpack.c.b16 %v164, %v156
  %v173 = vpack.c.b16 %v165, %v157
  %v174 = vpack.c.b16 %v166, %v158
  %v175 = vpack.c.b16 %v167, %v159
  %v176 = vpack.c.b16 %v168, %v160
  %v177 = vpack.c.b16 %v169, %v161
  %v178 = vpack.c.b16 %v170, %v162
  %v179 = vpack.c.b16 %v171, %v163
  %v316 = vunpack.c.l.b16 %v20
  %v317 = vunpack.c.l.b16 %v21
  %v318 = vunpack.c.l.b16 %v22
  %v319 = vunpack.c.l.b16 %v23
  %v320 = vunpack.c.l.b16 %v24
  %v321 = vunpack.c.l.b16 %v25
  %v322 = vunpack.c.l.b16 %v26
  %v323 = vunpack.c.l.b16 %v27
  %v324 = vunpack.c.l.b16 %v28
  %v325 = vunpack.c.l.b16 %v29
  %v326 = vunpack.c.l.b16 %v30
  %v327 = vunpack.c.l.b16 %v31
  %v328 = vunpack.c.l.b16 %v32
  %v329 = vunpack.c.l.b16 %v33
  %v330 = vunpack.c.l.b16 %v34
  %v331 = vunpack.c.l.b16 %v35
  %v332 = vunpack.c.l.b16 %v36
  %v333 = vunpack.c.l.b16 %v37
  %v334 = vunpack.c.l.b16 %v38
  %v335 = vunpack.c.l.b16 %v39
  %v336 = vunpack.c.l.b16 %v40
  %v337 = vunpack.c.l.b16 %v41
  %v338 = vunpack.c.l.b16 %v42
  %v339 = vunpack.c.l.b16 %v43
  %v340 = vunpack.c.l.b16 %v44
  %v341 = vunpack.c.l.b16 %v45
  %v342 = vunpack.c.l.b16 %v46
  %v343 = vunpack.c.l.b16 %v47
  %v344 = vunpack.c.l.b16 %v48
  %v345 = vunpack.c.l.b16 %v49
  %v346 = vunpack.c.l.b16 %v50
  %v347 = vunpack.c.l.b16 %v51
  %v348 = vunpack.c.l.b16 %v52
  %v349 = vunpack.c.l.b16 %v53
  %v350 = vunpack.c.l.b16 %v54
  %v351 = vunpack.c.l.b16 %v55
  %v352 = vunpack.c.l.b16 %v56
  %v353 = vunpack.c.l.b16 %v57
  %v354 = vunpack.c.l.b16 %v58
  %v355 = vunpack.c.l.b16 %v59
  %v356 = vunpack.c.l.b16 %v60
  %v357 = vunpack.c.l.b16 %v61
  %v358 = vunpack.c.l.b16 %v62
  %v359 = vunpack.c.l.b16 %v63
  %v360 = vunpack.c.l.b16 %v64
  %v361 = vunpack.c.l.b16 %v65
  %v362 = vunpack.c.l.b16 %v66
  %v363 = vunpack.c.l.b16 %v67
  %v364 = vunpack.c.l.b16 %v68
  %v365 = vunpack.c.l.b16 %v69
  %v366 = vunpack.c.l.b16 %v70
  %v367 = vunpack.c.l.b16 %v71
  %v368 = vunpack.c.l.b16 %v72
  %v369 = vunpack.c.l.b16 %v73
  %v370 = vunpack.c.l.b16 %v74
  %v371 = vunpack.c.l.b16 %v75
  %v372 = vunpack.c.l.b16 %v76
  %v373 = vunpack.c.l.b16 %v77
  %v374 = vunpack.c.l.b16 %v78
  %v375 = vunpack.c.l.b16 %v79
  %v376 = vunpack.c.l.b16 %v80
  %v377 = vunpack.c.l.b16 %v81
  %v378 = vunpack.c.l.b16 %v82
  %v379 = vunpack.c.l.b16 %v83
  %v380 = vunpack.c.l.b16 %v84
  %v381 = vunpack.c.l.b16 %v85
  %v382 = vunpack.c.l.b16 %v86
  %v383 = vunpack.c.l.b16 %v87
  %v384 = vunpack.c.l.b16 %v88
  %v385 = vunpack.c.l.b16 %v89
  %v386 = vunpack.c.l.b16 %v90
  %v387 = vunpack.c.l.b16 %v91
  %v388 = vunpack.c.l.b16 %v92
  %v389 = vunpack.c.l.b16 %v93
  %v390 = vunpack.c.l.b16 %v94
  %v391 = vunpack.c.l.b16 %v95
  %v392 = vunpack.c.l.b16 %v96
  %v393 = vunpack.c.l.b16 %v97
  %v394 = vunpack.c.l.b16 %v98
  %v395 = vunpack.c.l.b16 %v99
  %v396 = vunpack.c.l.b16 %v100
  %v397 = vunpack.c.l.b16 %v101
  %v398 = vunpack.c.l.b16 %v102
  %v399 = vunpack.c.l.b16 %v103
  %v400 = vunpack.c.l.b16 %v104
  %v401 = vunpack.c.l.b16 %v105
  %v402 = vunpack.c.l.b16 %v106
  %v403 = vunpack.c.l.b16 %v107
  %v404 = vunpack.c.l.b16 %v108
  %v405 = vunpack.c.l.b16 %v109
  %v406 = vunpack.c.l.b16 %v110
  %v407 = vunpack.c.l.b16 %v111
  %v408 = vunpack.c.l.b16 %v112
  %v409 = vunpack.c.l.b16 %v113
  %v410 = vunpack.c.l.b16 %v114
  %v411 = vunpack.c.l.b16 %v115
  %v412 = vunpack.c.l.b16 %v116
  %v413 = vunpack.c.l.b16 %v117
  %v414 = vunpack.c.l.b16 %v118
  %v415 = vunpack.c.l.b16 %v119
  %v416 = vunpack.c.l.b16 %v120
  %v417 = vunpack.c.l.b16 %v121
  %v418 = vunpack.c.l.b16 %v122
  %v419 = vunpack.c.l.b16 %v123
  %v420 = vunpack.c.l.b16 %v124
  %v421 = vunpack.c.l.b16 %v125
  %v422 = vunpack.c.l.b16 %v126
  %v423 = vunpack.c.l.b16 %v127
  %v424 = vunpack.c.l.b16 %v128
  %v425 = vunpack.c.l.b16 %v129
  %v426 = vunpack.c.l.b16 %v130
  %v427 = vunpack.c.l.b16 %v131
  %v428 = vunpack.c.l.b16 %v132
  %v429 = vunpack.c.l.b16 %v133
  %v430 = vunpack.c.l.b16 %v134
  %v431 = vunpack.c.l.b16 %v135
  %v432 = vunpack.c.l.b16 %v136
  %v433 = vunpack.c.l.b16 %v137
  %v434 = vunpack.c.l.b16 %v138
  %v435 = vunpack.c.l.b16 %v139
  %v436 = vunpack.c.l.b16 %v140
  %v437 = vunpack.c.l.b16 %v141
  %v438 = vunpack.c.l.b16 %v142
  %v439 = vunpack.c.l.b16 %v143
  %v440 = vunpack.c.l.b16 %v144
  %v441 = vunpack.c.l.b16 %v145
  %v442 = vunpack.c.l.b16 %v146
  %v443 = vunpack.c.l.b16 %v147
  %v444 = vpack.c.b16 %v317, %v316
  %v445 = vpack.c.b16 %v319, %v318
  %v446 = vpack.c.b16 %v321, %v320
  %v447 = vpack.c.b16 %v323, %v322
  %v448 = vpack.c.b16 %v325, %v324
  %v449 = vpack.c.b16 %v327, %v326
  %v450 = vpack.c.b16 %v329, %v328
  %v451 = vpack.c.b16 %v331, %v330
  %v452 = vpack.c.b16 %v333, %v332
  %v453 = vpack.c.b16 %v335, %v334
  %v454 = vpack.c.b16 %v337, %v336
  %v455 = vpack.c.b16 %v339, %v338
  %v456 = vpack.c.b16 %v341, %v340
  %v457 = vpack.c.b16 %v343, %v342
  %v458 = vpack.c.b16 %v345, %v344
  %v459 = vpack.c.b16 %v347, %v346
  %v460 = vpack.c.b16 %v349, %v348
  %v461 = vpack.c.b16 %v351, %v350
  %v462 = vpack.c.b16 %v353, %v352
  %v463 = vpack.c.b16 %v355, %v354
  %v464 = vpack.c.b16 %v357, %v356
  %v465 = vpack.c.b16 %v359, %v358
  %v466 = vpack.c.b16 %v361, %v360
  %v467 = vpack.c.b16 %v363, %v362
  %v468 = vpack.c.b16 %v365, %v364
  %v469 = vpack.c.b16 %v367, %v366
  %v470 = vpack.c.b16 %v369, %v368
  %v471 = vpack.c.b16 %v371, %v370
  %v472 = vpack.c.b16 %v373, %v372
  %v473 = vpack.c.b16 %v375, %v374
  %v474 = vpack.c.b16 %v377, %v376
  %v475 = vpack.c.b16 %v379, %v378
  %v476 = vpack.c.b16 %v381, %v380
  %v477 = vpack.c.b16 %v383, %v382
  %v478 = vpack.c.b16 %v385, %v384
  %v479 = vpack.c.b16 %v387, %v386
  %v480 = vpack.c.b16 %v389, %v388
  %v481 = vpack.c.b16 %v391, %v390
  %v482 = vpack.c.b16 %v393, %v392
  %v483 = vpack.c.b16 %v395, %v394
  %v484 = vpack.c.b16 %v397, %v396
  %v485 = vpack.c.b16 %v399, %v398
  %v486 = vpack.c.b16 %v401, %v400
  %v487 = vpack.c.b16 %v403, %v402
  %v488 = vpack.c.b16 %v405, %v404
  %v489 = vpack.c.b16 %v407, %v406
  %v490 = vpack.c.b16 %v409, %v408
  %v491 = vpack.c.b16 %v411, %v410
  %v492 = vpack.c.b16 %v413, %v412
  %v493 = vpack.c.b16 %v415, %v414
  %v494 = vpack.c.b16 %v417, %v416
  %v495 = vpack.c.b16 %v419, %v418
  %v496 = vpack.c.b16 %v421, %v420
  %v497 = vpack.c.b16 %v423, %v422
  %v498 = vpack.c.b16 %v425, %v424
  %v499 = vpack.c.b16 %v427, %v426
  %v500 = vpack.c.b16 %v429, %v428
  %v501 = vpack.c.b16 %v431, %v430
  %v502 = vpack.c.b16 %v433, %v432
  %v503 = vpack.c.b16 %v435, %v434
  %v504 = vpack.c.b16 %v437, %v436
  %v505 = vpack.c.b16 %v439, %v438
  %v506 = vpack.c.b16 %v441, %v440
  %v507 = vpack.c.b16 %v443, %v442
  %572 = vmatprep.subr.bf16.mxu0 0
  %573 = vmatpush1.bf16.msra.mxu0 %v444
  %574 = vmatprep.subr.bf16.mxu0 0
  %575 = vmatpush1.bf16.msra.mxu0 %v445
  %576 = vmatprep.subr.bf16.mxu0 0
  %577 = vmatpush1.bf16.msra.mxu0 %v446
  %578 = vmatprep.subr.bf16.mxu0 0
  %579 = vmatpush1.bf16.msra.mxu0 %v447
  %580 = vmatprep.subr.bf16.mxu0 0
  %581 = vmatpush1.bf16.msra.mxu0 %v448
  %582 = vmatprep.subr.bf16.mxu0 0
  %583 = vmatpush1.bf16.msra.mxu0 %v449
  %584 = vmatprep.subr.bf16.mxu0 0
  %585 = vmatpush1.bf16.msra.mxu0 %v450
  %586 = vmatprep.subr.bf16.mxu0 0
  %587 = vmatpush1.bf16.msra.mxu0 %v451
  %588 = vmatprep.subr.bf16.mxu0 0
  %589 = vmatpush1.bf16.msra.mxu0 %v452
  %590 = vmatprep.subr.bf16.mxu0 0
  %591 = vmatpush1.bf16.msra.mxu0 %v453
  %592 = vmatprep.subr.bf16.mxu0 0
  %593 = vmatpush1.bf16.msra.mxu0 %v454
  %594 = vmatprep.subr.bf16.mxu0 0
  %595 = vmatpush1.bf16.msra.mxu0 %v455
  %596 = vmatprep.subr.bf16.mxu0 0
  %597 = vmatpush1.bf16.msra.mxu0 %v456
  %598 = vmatprep.subr.bf16.mxu0 0
  %599 = vmatpush1.bf16.msra.mxu0 %v457
  %600 = vmatprep.subr.bf16.mxu0 0
  %601 = vmatpush1.bf16.msra.mxu0 %v458
  %602 = vmatprep.subr.bf16.mxu0 0
  %603 = vmatpush1.bf16.msra.mxu0 %v459
  %604 = vmatprep.mubr.bf16.mxu0 %v173
  %605 = vmatmul.mubr.bf16.gmra.mrb[0].mxu0 %v172
  %v606 = vpop.f32.mrb[0].mxu0
  %v607 = vadd.f32 0.0, %v606
  %v608 = vpop.f32.mrb[0].mxu0
  %v609 = vpop.f32.mrb[0].mxu0
  %v610 = vadd.f32 0.0, %v609
  %v611 = vpop.f32.mrb[0].mxu0
  %612 = vdwg.mxu0
  %613 = vmatprep.subr.bf16.mxu0 0
  %614 = vmatpush1.bf16.msra.mxu0 %v460
  %615 = vmatprep.subr.bf16.mxu0 0
  %616 = vmatpush1.bf16.msra.mxu0 %v461
  %617 = vmatprep.subr.bf16.mxu0 0
  %618 = vmatpush1.bf16.msra.mxu0 %v462
  %619 = vmatprep.subr.bf16.mxu0 0
  %620 = vmatpush1.bf16.msra.mxu0 %v463
  %621 = vmatprep.subr.bf16.mxu0 0
  %622 = vmatpush1.bf16.msra.mxu0 %v464
  %623 = vmatprep.subr.bf16.mxu0 0
  %624 = vmatpush1.bf16.msra.mxu0 %v465
  %625 = vmatprep.subr.bf16.mxu0 0
  %626 = vmatpush1.bf16.msra.mxu0 %v466
  %627 = vmatprep.subr.bf16.mxu0 0
  %628 = vmatpush1.bf16.msra.mxu0 %v467
  %629 = vmatprep.subr.bf16.mxu0 0
  %630 = vmatpush1.bf16.msra.mxu0 %v468
  %631 = vmatprep.subr.bf16.mxu0 0
  %632 = vmatpush1.bf16.msra.mxu0 %v469
  %633 = vmatprep.subr.bf16.mxu0 0
  %634 = vmatpush1.bf16.msra.mxu0 %v470
  %635 = vmatprep.subr.bf16.mxu0 0
  %636 = vmatpush1.bf16.msra.mxu0 %v471
  %637 = vmatprep.subr.bf16.mxu0 0
  %638 = vmatpush1.bf16.msra.mxu0 %v472
  %639 = vmatprep.subr.bf16.mxu0 0
  %640 = vmatpush1.bf16.msra.mxu0 %v473
  %641 = vmatprep.subr.bf16.mxu0 0
  %642 = vmatpush1.bf16.msra.mxu0 %v474
  %643 = vmatprep.subr.bf16.mxu0 0
  %644 = vmatpush1.bf16.msra.mxu0 %v475
  %645 = vmatprep.mubr.bf16.mxu0 %v175
  %646 = vmatmul.mubr.bf16.gmra.mrb[0].mxu0 %v174
  %v647 = vpop.f32.mrb[0].mxu0
  %v648 = vadd.f32 %v607, %v647
  %v649 = vpop.f32.mrb[0].mxu0
  %v650 = vpop.f32.mrb[0].mxu0
  %v651 = vadd.f32 %v610, %v650
  %v652 = vpop.f32.mrb[0].mxu0
  %653 = vdwg.mxu0
  %654 = vmatprep.subr.bf16.mxu0 0
  %655 = vmatpush1.bf16.msra.mxu0 %v476
  %656 = vmatprep.subr.bf16.mxu0 0
  %657 = vmatpush1.bf16.msra.mxu0 %v477
  %658 = vmatprep.subr.bf16.mxu0 0
  %659 = vmatpush1.bf16.msra.mxu0 %v478
  %660 = vmatprep.subr.bf16.mxu0 0
  %661 = vmatpush1.bf16.msra.mxu0 %v479
  %662 = vmatprep.subr.bf16.mxu0 0
  %663 = vmatpush1.bf16.msra.mxu0 %v480
  %664 = vmatprep.subr.bf16.mxu0 0
  %665 = vmatpush1.bf16.msra.mxu0 %v481
  %666 = vmatprep.subr.bf16.mxu0 0
  %667 = vmatpush1.bf16.msra.mxu0 %v482
  %668 = vmatprep.subr.bf16.mxu0 0
  %669 = vmatpush1.bf16.msra.mxu0 %v483
  %670 = vmatprep.subr.bf16.mxu0 0
  %671 = vmatpush1.bf16.msra.mxu0 %v484
  %672 = vmatprep.subr.bf16.mxu0 0
  %673 = vmatpush1.bf16.msra.mxu0 %v485
  %674 = vmatprep.subr.bf16.mxu0 0
  %675 = vmatpush1.bf16.msra.mxu0 %v486
  %676 = vmatprep.subr.bf16.mxu0 0
  %677 = vmatpush1.bf16.msra.mxu0 %v487
  %678 = vmatprep.subr.bf16.mxu0 0
  %679 = vmatpush1.bf16.msra.mxu0 %v488
  %680 = vmatprep.subr.bf16.mxu0 0
  %681 = vmatpush1.bf16.msra.mxu0 %v489
  %682 = vmatprep.subr.bf16.mxu0 0
  %683 = vmatpush1.bf16.msra.mxu0 %v490
  %684 = vmatprep.subr.bf16.mxu0 0
  %685 = vmatpush1.bf16.msra.mxu0 %v491
  %686 = vmatprep.mubr.bf16.mxu0 %v177
  %687 = vmatmul.mubr.bf16.gmra.mrb[0].mxu0 %v176
  %v688 = vpop.f32.mrb[0].mxu0
  %v689 = vadd.f32 %v648, %v688
  %v690 = vpop.f32.mrb[0].mxu0
  %v691 = vpop.f32.mrb[0].mxu0
  %v692 = vadd.f32 %v651, %v691
  %v693 = vpop.f32.mrb[0].mxu0
  %694 = vdwg.mxu0
  %695 = vmatprep.subr.bf16.mxu0 0
  %696 = vmatpush1.bf16.msra.mxu0 %v492
  %697 = vmatprep.subr.bf16.mxu0 0
  %698 = vmatpush1.bf16.msra.mxu0 %v493
  %699 = vmatprep.subr.bf16.mxu0 0
  %700 = vmatpush1.bf16.msra.mxu0 %v494
  %701 = vmatprep.subr.bf16.mxu0 0
  %702 = vmatpush1.bf16.msra.mxu0 %v495
  %703 = vmatprep.subr.bf16.mxu0 0
  %704 = vmatpush1.bf16.msra.mxu0 %v496
  %705 = vmatprep.subr.bf16.mxu0 0
  %706 = vmatpush1.bf16.msra.mxu0 %v497
  %707 = vmatprep.subr.bf16.mxu0 0
  %708 = vmatpush1.bf16.msra.mxu0 %v498
  %709 = vmatprep.subr.bf16.mxu0 0
  %710 = vmatpush1.bf16.msra.mxu0 %v499
  %711 = vmatprep.subr.bf16.mxu0 0
  %712 = vmatpush1.bf16.msra.mxu0 %v500
  %713 = vmatprep.subr.bf16.mxu0 0
  %714 = vmatpush1.bf16.msra.mxu0 %v501
  %715 = vmatprep.subr.bf16.mxu0 0
  %716 = vmatpush1.bf16.msra.mxu0 %v502
  %717 = vmatprep.subr.bf16.mxu0 0
  %718 = vmatpush1.bf16.msra.mxu0 %v503
  %719 = vmatprep.subr.bf16.mxu0 0
  %720 = vmatpush1.bf16.msra.mxu0 %v504
  %721 = vmatprep.subr.bf16.mxu0 0
  %722 = vmatpush1.bf16.msra.mxu0 %v505
  %723 = vmatprep.subr.bf16.mxu0 0
  %724 = vmatpush1.bf16.msra.mxu0 %v506
  %725 = vmatprep.subr.bf16.mxu0 0
  %726 = vmatpush1.bf16.msra.mxu0 %v507
  %727 = vmatprep.mubr.bf16.mxu0 %v179
  %728 = vmatmul.mubr.bf16.gmra.mrb[0].mxu0 %v178
  %v729 = vpop.f32.mrb[0].mxu0
  %v730 = vadd.f32 %v689, %v729
  %v731 = vpop.f32.mrb[0].mxu0
  %v732 = vpop.f32.mrb[0].mxu0
  %v733 = vadd.f32 %v692, %v732
  %v734 = vpop.f32.mrb[0].mxu0
  %735 = vdwg.mxu0
  %v736 = vand.u32 2147483647, %v730
  %v737 = vand.u32 2147483647, %v733
  %v738 = vsub.f32 0.0, %v736
  %v739 = vsub.f32 0.0, %v737
  %v740 = vmul.f32 %v738, 1.442695
  %v741 = vpow.pop %v740
  %v742 = vmul.f32 %v739, 1.442695
  %v743 = vpow.pop %v742
  %vm744 = vcmp.ge.f32.partialorder %v730, 0.0
  %vm745 = vcmp.ge.f32.partialorder %v733, 0.0
  %v746 = vadd.f32 %v741, 1.0
  %v747 = vadd.f32 %v743, 1.0
  %v748 = vrcp.pop %v746
  %v749 = vmul.f32 1.0, %v748
  %v750 = vrcp.pop %v747
  %v751 = vmul.f32 1.0, %v750
  %v752 = vmul.f32 %v741, %v748
  %v753 = vmul.f32 %v743, %v750
  %v754 = vsel %vm744, %v749, %v752
  %v755 = vsel %vm745, %v751, %v753
  %756 = vst [vmem:[%s2] sm:$0xff] %v754
  %757 = vst [vmem:[%s2 + $0x8] sm:$0xff] %v755
  // Predicated region
  $region10: #{dcgan_d_forward.15} parent=0 // pred_check
    _
  $region11: #{dcgan_d_forward.15} parent=0 // pred_check_branch
    %759 = sbr.rel (0) target = $region13
  $region12: #{dcgan_d_forward.15} parent=0 // pred_region
    _
  $region13: #{dcgan_d_forward.15} parent=0 // pred_fallthru
    _
  // Predicated region
  $region14: #{dcgan_d_forward.15} parent=0 // pred_check
    _
  $region15: #{dcgan_d_forward.15} parent=0 // pred_check_branch
    %761 = sbr.rel (0) target = $region17
  $region16: #{dcgan_d_forward.15} parent=0 // pred_region
    _
  $region17: #{dcgan_d_forward.15} parent=0 // pred_fallthru
    _

</llo_original>
